<compile_context>
chip_gen: v7x
topology: tpu7x:2x2x1
jax: 0.10.0
libtpu: 0.0.40
codegen_flags: <defaults>
</compile_context>

<pallas_src>
import functools

import jax
import jax.numpy as jnp
from jax.experimental import pallas as pl
from jax.experimental.pallas import tpu as pltpu


# ---------------------------------------------------------------------------
# helpers
# ---------------------------------------------------------------------------

def _round_up(x, m):
    return ((x + m - 1) // m) * m


def _row_tile(m, cap=512):
    """Largest multiple-of-8 divisor of m that is <= cap (else m itself)."""
    if m % 8 != 0:
        return m
    best = 8
    t = 8
    while t <= min(m, cap):
        if m % t == 0:
            best = t
        t += 8
    return best


def _block_diag(w, heads):
    """(hd, hd) per-head weight -> (E, E) block-diagonal weight (bf16)."""
    return jnp.kron(jnp.eye(heads, dtype=w.dtype), w).astype(jnp.bfloat16)


# ---------------------------------------------------------------------------
# in-kernel building blocks (operate on VMEM values, all f32 math / bf16 MXU)
# ---------------------------------------------------------------------------

def _layernorm(x, g, b):
    mean = jnp.mean(x, axis=-1, keepdims=True)
    c = x - mean
    var = jnp.mean(c * c, axis=-1, keepdims=True)
    return c * jax.lax.rsqrt(var + jnp.float32(1e-5)) * g + b


def _mha(q, kv, bias, wq, wk, wv, wo, bo, heads, inv_scale):
    """Multi-head attention with keys == values, plus fc_out.

    q : (Lq, E) f32, kv : (Lk, E) f32, bias broadcastable to (Lq, Lk) f32.
    wq/wk/wv : (E, E) block-diagonal bf16, wo : (E, E) bf16, bo : (1, E) f32.
    Returns (Lq, E) f32 = fc_out(concat_h(attn_h)) + bo.
    """
    Lq, E = q.shape
    hd = E // heads
    qb = q.astype(jnp.bfloat16)
    kvb = kv.astype(jnp.bfloat16)
    wq = wq.astype(jnp.bfloat16)
    wk = wk.astype(jnp.bfloat16)
    wv = wv.astype(jnp.bfloat16)
    wo = wo.astype(jnp.bfloat16)

    # one lane-dense matmul projects all heads at once (block-diagonal weights)
    qp = jnp.dot(qb, wq, preferred_element_type=jnp.float32)   # (Lq, E)
    kp = jnp.dot(kvb, wk, preferred_element_type=jnp.float32)  # (Lk, E)
    vp = jnp.dot(kvb, wv, preferred_element_type=jnp.float32)  # (Lk, E)

    # fc_out(concat_h(att_h)) == sum_h att_h @ Wo[h*hd:(h+1)*hd, :]
    y = jnp.zeros((Lq, E), jnp.float32)
    for h in range(heads):                      # heads is a small static int -> unrolled
        lo = h * hd
        qh = qp[:, lo:lo + hd].astype(jnp.bfloat16)
        kh = kp[:, lo:lo + hd].astype(jnp.bfloat16)
        vh = vp[:, lo:lo + hd].astype(jnp.bfloat16)

        # energy = q @ k^T (contract last dims of both; no materialized transpose)
        energy = jax.lax.dot_general(
            qh, kh, (((1,), (1,)), ((), ())),
            preferred_element_type=jnp.float32)                 # (Lq, Lk)

        # faithful to the source: mask first (-1e20), then / (head_dim / 2)
        s = (energy + bias) * jnp.float32(inv_scale)
        s = s - jnp.max(s, axis=-1, keepdims=True)
        p = jnp.exp(s)
        p = p * pl.reciprocal(jnp.sum(p, axis=-1, keepdims=True), approx=True)

        oh = jnp.dot(p.astype(jnp.bfloat16), vh,
                     preferred_element_type=jnp.float32)        # (Lq, hd)
        y = y + jnp.dot(oh.astype(jnp.bfloat16), wo[lo:lo + hd, :],
                        preferred_element_type=jnp.float32)     # (Lq, E)
    return y + bo


def _ffn(x, w1, b1, w2, b2):
    h = jnp.dot(x.astype(jnp.bfloat16), w1.astype(jnp.bfloat16),
                preferred_element_type=jnp.float32) + b1
    h = jnp.maximum(h, 0.0)
    return jnp.dot(h.astype(jnp.bfloat16), w2.astype(jnp.bfloat16),
                   preferred_element_type=jnp.float32) + b2


# ---------------------------------------------------------------------------
# Pallas kernels
# ---------------------------------------------------------------------------

def encoder_block_kernel(x_ref, bias_ref,
                         wq_ref, wk_ref, wv_ref, wo_ref, bo_ref,
                         ln1g_ref, ln1b_ref,
                         w1_ref, b1_ref, w2_ref, b2_ref,
                         ln2g_ref, ln2b_ref,
                         o_ref, *, heads, inv_scale):
    """Fully fused TransformerBlock (self-attention, K=V=Q=x) for one batch element."""
    x = x_ref[0]                                        # (L, E) f32
    att = _mha(x, x, bias_ref[0], wq_ref[...], wk_ref[...], wv_ref[...],
               wo_ref[...], bo_ref[...], heads, inv_scale)
    y = _layernorm(att + x, ln1g_ref[...], ln1b_ref[...])
    ff = _ffn(y, w1_ref[...], b1_ref[...], w2_ref[...], b2_ref[...])
    o_ref[0] = _layernorm(ff + y, ln2g_ref[...], ln2b_ref[...])


def decoder_block_kernel(x_ref, enc_ref, sbias_ref, cbias_ref,
                         swq_ref, swk_ref, swv_ref, swo_ref, sbo_ref,
                         slng_ref, slnb_ref,
                         cwq_ref, cwk_ref, cwv_ref, cwo_ref, cbo_ref,
                         ln1g_ref, ln1b_ref,
                         w1_ref, b1_ref, w2_ref, b2_ref,
                         ln2g_ref, ln2b_ref,
                         o_ref, *, heads, inv_scale):
    """Fully fused DecoderBlock (masked self-attn + cross-attn + FFN) for one batch element."""
    x = x_ref[0]                                        # (Lt, E) f32
    att = _mha(x, x, sbias_ref[0], swq_ref[...], swk_ref[...], swv_ref[...],
               swo_ref[...], sbo_ref[...], heads, inv_scale)
    query = _layernorm(att + x, slng_ref[...], slnb_ref[...])

    att2 = _mha(query, enc_ref[0], cbias_ref[0], cwq_ref[...], cwk_ref[...], cwv_ref[...],
                cwo_ref[...], cbo_ref[...], heads, inv_scale)
    y = _layernorm(att2 + query, ln1g_ref[...], ln1b_ref[...])

    ff = _ffn(y, w1_ref[...], b1_ref[...], w2_ref[...], b2_ref[...])
    o_ref[0] = _layernorm(ff + y, ln2g_ref[...], ln2b_ref[...])


def linear_matmul_kernel(x_ref, w_ref, b_ref, o_ref, acc_ref):
    @pl.when(pl.program_id(2) == 0)
    def _():
        acc_ref[...] = jnp.zeros_like(acc_ref)

    acc_ref[...] += jnp.dot(x_ref[...].astype(jnp.bfloat16),
                            w_ref[...].astype(jnp.bfloat16),
                            preferred_element_type=jnp.float32)

    @pl.when(pl.program_id(2) == pl.num_programs(2) - 1)
    def _():
        o_ref[...] = acc_ref[...] + b_ref[...]


# ---------------------------------------------------------------------------
# pallas_call wrappers
# ---------------------------------------------------------------------------

def _rep(shape):
    """BlockSpec for a weight replicated across the batch grid."""
    nd = len(shape)
    return pl.BlockSpec(shape, lambda n, _nd=nd: (0,) * _nd)


def encoder_block(x, key_bias, p, heads):
    """x:(N,L,E) f32, key_bias:(N,1,L) additive bias -> LN2(FFN(LN1(attn(x)+x))+...)."""
    N, L, E = x.shape
    hd = E // heads
    assert hd * heads == E
    F = p["W1"].shape[1]
    inv_scale = 2.0 / hd                       # == 1 / (head_dim ** 1 / 2)

    a = p["attn"]
    wq, wk, wv = (_block_diag(a["Wq"], heads), _block_diag(a["Wk"], heads),
                  _block_diag(a["Wv"], heads))

    kern = functools.partial(encoder_block_kernel, heads=heads, inv_scale=inv_scale)
    return pl.pallas_call(
        kern,
        out_shape=jax.ShapeDtypeStruct((N, L, E), jnp.float32),
        grid=(N,),
        in_specs=[
            pl.BlockSpec((1, L, E), lambda n: (n, 0, 0)),
            pl.BlockSpec((1, 1, L), lambda n: (n, 0, 0)),
            _rep((E, E)), _rep((E, E)), _rep((E, E)), _rep((E, E)), _rep((1, E)),
            _rep((1, E)), _rep((1, E)),
            _rep((E, F)), _rep((1, F)), _rep((F, E)), _rep((1, E)),
            _rep((1, E)), _rep((1, E)),
        ],
        out_specs=pl.BlockSpec((1, L, E), lambda n: (n, 0, 0)),
        compiler_params=pltpu.CompilerParams(dimension_semantics=("parallel",)),
    )(x, key_bias,
      wq, wk, wv, a["Wo"], a["bo"].reshape(1, E),
      p["ln1_g"].reshape(1, E), p["ln1_b"].reshape(1, E),
      p["W1"], p["b1"].reshape(1, F), p["W2"], p["b2"].reshape(1, E),
      p["ln2_g"].reshape(1, E), p["ln2_b"].reshape(1, E))


def decoder_block(x, enc_out, self_bias, cross_bias, p, heads):
    """x:(N,Lt,E), enc_out:(N,Ls,E), self_bias:(1,Lt,Lt), cross_bias:(N,1,Ls)."""
    N, Lt, E = x.shape
    Ls = enc_out.shape[1]
    hd = E // heads
    assert hd * heads == E
    tb = p["tb"]
    F = tb["W1"].shape[1]
    inv_scale = 2.0 / hd

    sa, ca = p["attn"], tb["attn"]
    swq, swk, swv = (_block_diag(sa["Wq"], heads), _block_diag(sa["Wk"], heads),
                     _block_diag(sa["Wv"], heads))
    cwq, cwk, cwv = (_block_diag(ca["Wq"], heads), _block_diag(ca["Wk"], heads),
                     _block_diag(ca["Wv"], heads))

    kern = functools.partial(decoder_block_kernel, heads=heads, inv_scale=inv_scale)
    return pl.pallas_call(
        kern,
        out_shape=jax.ShapeDtypeStruct((N, Lt, E), jnp.float32),
        grid=(N,),
        in_specs=[
            pl.BlockSpec((1, Lt, E), lambda n: (n, 0, 0)),
            pl.BlockSpec((1, Ls, E), lambda n: (n, 0, 0)),
            _rep((1, Lt, Lt)),                          # causal bias, shared over batch
            pl.BlockSpec((1, 1, Ls), lambda n: (n, 0, 0)),
            _rep((E, E)), _rep((E, E)), _rep((E, E)), _rep((E, E)), _rep((1, E)),
            _rep((1, E)), _rep((1, E)),
            _rep((E, E)), _rep((E, E)), _rep((E, E)), _rep((E, E)), _rep((1, E)),
            _rep((1, E)), _rep((1, E)),
            _rep((E, F)), _rep((1, F)), _rep((F, E)), _rep((1, E)),
            _rep((1, E)), _rep((1, E)),
        ],
        out_specs=pl.BlockSpec((1, Lt, E), lambda n: (n, 0, 0)),
        compiler_params=pltpu.CompilerParams(dimension_semantics=("parallel",)),
    )(x, enc_out, self_bias, cross_bias,
      swq, swk, swv, sa["Wo"], sa["bo"].reshape(1, E),
      p["ln_g"].reshape(1, E), p["ln_b"].reshape(1, E),
      cwq, cwk, cwv, ca["Wo"], ca["bo"].reshape(1, E),
      tb["ln1_g"].reshape(1, E), tb["ln1_b"].reshape(1, E),
      tb["W1"], tb["b1"].reshape(1, F), tb["W2"], tb["b2"].reshape(1, E),
      tb["ln2_g"].reshape(1, E), tb["ln2_b"].reshape(1, E))


def linear(x, w, b):
    """x:(M,K) f32, w:(K,N) bf16/f32, b:(N,) f32 -> (M,N) f32 (tiled, f32 accumulator)."""
    M, K = x.shape
    N = w.shape[1]
    Np = _round_up(N, 128)                     # lane-dense output stores
    if Np != N:
        w = jnp.pad(w, ((0, 0), (0, Np - N)))
        b = jnp.pad(b, (0, Np - N))
    tm = _row_tile(M)
    tn = Np if (Np <= 512 or Np % 512 != 0) else 512
    tk = K if (K <= 512 or K % 512 != 0) else 512
    out = pl.pallas_call(
        linear_matmul_kernel,
        out_shape=jax.ShapeDtypeStruct((M, Np), jnp.float32),
        grid=(M // tm, Np // tn, K // tk),
        in_specs=[
            pl.BlockSpec((tm, tk), lambda i, j, k: (i, k)),
            pl.BlockSpec((tk, tn), lambda i, j, k: (k, j)),
            pl.BlockSpec((1, tn), lambda i, j, k: (0, j)),
        ],
        out_specs=pl.BlockSpec((tm, tn), lambda i, j, k: (i, j)),
        scratch_shapes=[pltpu.VMEM((tm, tn), jnp.float32)],
        compiler_params=pltpu.CompilerParams(
            dimension_semantics=("parallel", "parallel", "arbitrary")),
    )(x, w, b.reshape(1, Np).astype(jnp.float32))
    return out[:, :N]


# ---------------------------------------------------------------------------
# Model forward (glue in JAX, compute in Pallas)
# ---------------------------------------------------------------------------

def key_padding_bias(src, pad_idx):
    """(N, Ls) tokens -> (N, 1, Ls) additive bias: 0 where kept, -1e20 where pad."""
    return jnp.where(src != pad_idx, 0.0, -1e20).astype(jnp.float32)[:, None, :]


def causal_bias(L):
    tri = jnp.tril(jnp.ones((L, L), jnp.float32))
    return jnp.where(tri > 0, 0.0, -1e20).astype(jnp.float32)[None]     # (1, L, L)


def encoder_fwd(p, src_tokens, key_bias, heads):
    L = src_tokens.shape[1]
    # TODO(synk): embedding gathers stay in XLA (no tiled Pallas win at this size).
    word = jnp.take(p["word_emb"], src_tokens, axis=0)                  # (N, L, E)
    out = word + p["pos_emb"][:L][None]                                 # dropout p=0 -> identity
    for lp in p["layers"]:
        out = encoder_block(out, key_bias, lp, heads)
    return out


def decoder_fwd(p, trg_tokens, enc_out, cross_bias, self_bias, heads):
    N, L = trg_tokens.shape
    E = enc_out.shape[-1]
    word = jnp.take(p["word_emb"], trg_tokens, axis=0)
    x = word + p["pos_emb"][:L][None]
    for lp in p["layers"]:
        x = decoder_block(x, enc_out, self_bias, cross_bias, lp, heads)
    out = linear(x.reshape(-1, E), p["Wout"], p["bout"])
    return out.reshape(N, L, -1)


def transformer_fwd(params, src, trg, src_pad_idx, trg_pad_idx, heads):
    del trg_pad_idx  # unused, exactly like the source's make_trg_mask
    enc_bias = key_padding_bias(src, src_pad_idx)     # (N, 1, Ls): encoder self / decoder cross
    self_bias = causal_bias(trg.shape[1])             # (1, Lt, Lt): decoder self-attn
    enc = encoder_fwd(params["enc"], src, enc_bias, heads)
    return decoder_fwd(params["dec"], trg, enc, enc_bias, self_bias, heads)


# ---------------------------------------------------------------------------
# Deterministic parameter init (synthetic weights; shapes follow the nn.Module).
# Matmul weights stored in bf16 (MXU-native), biases/LN/embeddings in f32.
# ---------------------------------------------------------------------------

def init_params(key, src_vocab, trg_vocab, E, heads, num_layers, fe, max_len):
    hd = E // heads
    keys = iter(jax.random.split(key, 512))

    def nrm(shape, scale=0.05, dtype=jnp.bfloat16):
        return (scale * jax.random.normal(next(keys), shape)).astype(dtype)

    def attn_p():
        return dict(
            Wq=nrm((hd, hd)), Wk=nrm((hd, hd)), Wv=nrm((hd, hd)),
            Wo=nrm((E, E)), bo=jnp.zeros((E,), jnp.float32),
        )

    def tb_p():
        return dict(
            attn=attn_p(),
            ln1_g=jnp.ones((E,), jnp.float32), ln1_b=jnp.zeros((E,), jnp.float32),
            ln2_g=jnp.ones((E,), jnp.float32), ln2_b=jnp.zeros((E,), jnp.float32),
            W1=nrm((E, fe * E)), b1=jnp.zeros((fe * E,), jnp.float32),
            W2=nrm((fe * E, E)), b2=jnp.zeros((E,), jnp.float32),
        )

    def db_p():
        return dict(
            attn=attn_p(),
            ln_g=jnp.ones((E,), jnp.float32), ln_b=jnp.zeros((E,), jnp.float32),
            tb=tb_p(),
        )

    enc = dict(
        word_emb=nrm((src_vocab, E), dtype=jnp.float32),
        pos_emb=nrm((max_len, E), dtype=jnp.float32),
        layers=[tb_p() for _ in range(num_layers)],
    )
    dec = dict(
        word_emb=nrm((trg_vocab, E), dtype=jnp.float32),
        pos_emb=nrm((max_len, E), dtype=jnp.float32),
        layers=[db_p() for _ in range(num_layers)],
        Wout=nrm((E, trg_vocab)),
        bout=jnp.zeros((trg_vocab,), jnp.float32),
    )
    return dict(enc=enc, dec=dec)


# ---------------------------------------------------------------------------
# Main
# ---------------------------------------------------------------------------

if __name__ == "__main__":
    SRC_VOCAB, TRG_VOCAB = 11, 13
    SRC_PAD, TRG_PAD = 0, 0
    E, HEADS, LAYERS, FE, MAX_LEN = 32, 2, 2, 4, 16
    N, SRC_LEN, TRG_LEN = 2, 8, 8

    key = jax.random.PRNGKey(0)
    kp, ks, kt = jax.random.split(key, 3)

    params = init_params(kp, SRC_VOCAB, TRG_VOCAB, E, HEADS, LAYERS, FE, MAX_LEN)
    src = jax.random.randint(ks, (N, SRC_LEN), 0, SRC_VOCAB, dtype=jnp.int32)
    trg = jax.random.randint(kt, (N, TRG_LEN), 0, TRG_VOCAB, dtype=jnp.int32)

    fwd = jax.jit(functools.partial(transformer_fwd, src_pad_idx=SRC_PAD,
                                    trg_pad_idx=TRG_PAD, heads=HEADS))
    out = jax.block_until_ready(fwd(params, src, trg))

    assert out.shape == (N, TRG_LEN, TRG_VOCAB), out.shape
    assert bool(jnp.all(jnp.isfinite(out)))
    print("KERNEL_OK")
</pallas_src>

<mosaic_0001>
module attributes {stable_mosaic.version = 11 : i64} {
  func.func @encoder_block_kernel(%arg0: i32, %arg1: memref<1x8x32xf32, #tpu.memory_space<vmem>>, %arg2: memref<1x1x8xf32, #tpu.memory_space<vmem>>, %arg3: memref<32x32xbf16, #tpu.memory_space<vmem>>, %arg4: memref<32x32xbf16, #tpu.memory_space<vmem>>, %arg5: memref<32x32xbf16, #tpu.memory_space<vmem>>, %arg6: memref<32x32xbf16, #tpu.memory_space<vmem>>, %arg7: memref<1x32xf32, #tpu.memory_space<vmem>>, %arg8: memref<1x32xf32, #tpu.memory_space<vmem>>, %arg9: memref<1x32xf32, #tpu.memory_space<vmem>>, %arg10: memref<32x128xbf16, #tpu.memory_space<vmem>>, %arg11: memref<1x128xf32, #tpu.memory_space<vmem>>, %arg12: memref<128x32xbf16, #tpu.memory_space<vmem>>, %arg13: memref<1x32xf32, #tpu.memory_space<vmem>>, %arg14: memref<1x32xf32, #tpu.memory_space<vmem>>, %arg15: memref<1x32xf32, #tpu.memory_space<vmem>>, %arg16: memref<1x8x32xf32, #tpu.memory_space<vmem>>) attributes {dimension_semantics = [#tpu.dimension_semantics<parallel>], iteration_bounds = array<i64: 2>, scalar_prefetch = 0 : i64, scratch_operands = 0 : i64, tpu.core_type = #tpu.core_type<tc>, window_params = [{transform_indices = @transform_0, window_bounds = array<i64: 1, 8, 32>}, {transform_indices = @transform_1, window_bounds = array<i64: 1, 1, 8>}, {pipeline_mode = #tpu.pipeline_mode<synchronous>, transform_indices = @transform_2, window_bounds = array<i64: 32, 32>}, {pipeline_mode = #tpu.pipeline_mode<synchronous>, transform_indices = @transform_3, window_bounds = array<i64: 32, 32>}, {pipeline_mode = #tpu.pipeline_mode<synchronous>, transform_indices = @transform_4, window_bounds = array<i64: 32, 32>}, {pipeline_mode = #tpu.pipeline_mode<synchronous>, transform_indices = @transform_5, window_bounds = array<i64: 32, 32>}, {pipeline_mode = #tpu.pipeline_mode<synchronous>, transform_indices = @transform_6, window_bounds = array<i64: 1, 32>}, {pipeline_mode = #tpu.pipeline_mode<synchronous>, transform_indices = @transform_7, window_bounds = array<i64: 1, 32>}, {pipeline_mode = #tpu.pipeline_mode<synchronous>, transform_indices = @transform_8, window_bounds = array<i64: 1, 32>}, {pipeline_mode = #tpu.pipeline_mode<synchronous>, transform_indices = @transform_9, window_bounds = array<i64: 32, 128>}, {pipeline_mode = #tpu.pipeline_mode<synchronous>, transform_indices = @transform_10, window_bounds = array<i64: 1, 128>}, {pipeline_mode = #tpu.pipeline_mode<synchronous>, transform_indices = @transform_11, window_bounds = array<i64: 128, 32>}, {pipeline_mode = #tpu.pipeline_mode<synchronous>, transform_indices = @transform_12, window_bounds = array<i64: 1, 32>}, {pipeline_mode = #tpu.pipeline_mode<synchronous>, transform_indices = @transform_13, window_bounds = array<i64: 1, 32>}, {pipeline_mode = #tpu.pipeline_mode<synchronous>, transform_indices = @transform_14, window_bounds = array<i64: 1, 32>}, {transform_indices = @transform_15, window_bounds = array<i64: 1, 8, 32>}]} {
    %c0 = arith.constant 0 : index
    %c0_0 = arith.constant 0 : index
    %c0_1 = arith.constant 0 : index
    %0 = vector.load %arg1[%c0, %c0_0, %c0_1] : memref<1x8x32xf32, #tpu.memory_space<vmem>>, vector<1x8x32xf32>
    %1 = vector.shape_cast %0 : vector<1x8x32xf32> to vector<8x32xf32>
    %c0_2 = arith.constant 0 : index
    %c0_3 = arith.constant 0 : index
    %c0_4 = arith.constant 0 : index
    %2 = vector.load %arg2[%c0_2, %c0_3, %c0_4] : memref<1x1x8xf32, #tpu.memory_space<vmem>>, vector<1x1x8xf32>
    %3 = vector.shape_cast %2 : vector<1x1x8xf32> to vector<1x8xf32>
    %c0_5 = arith.constant 0 : index
    %c0_6 = arith.constant 0 : index
    %4 = vector.load %arg3[%c0_5, %c0_6] : memref<32x32xbf16, #tpu.memory_space<vmem>>, vector<32x32xbf16>
    %c0_7 = arith.constant 0 : index
    %c0_8 = arith.constant 0 : index
    %5 = vector.load %arg4[%c0_7, %c0_8] : memref<32x32xbf16, #tpu.memory_space<vmem>>, vector<32x32xbf16>
    %c0_9 = arith.constant 0 : index
    %c0_10 = arith.constant 0 : index
    %6 = vector.load %arg5[%c0_9, %c0_10] : memref<32x32xbf16, #tpu.memory_space<vmem>>, vector<32x32xbf16>
    %c0_11 = arith.constant 0 : index
    %c0_12 = arith.constant 0 : index
    %7 = vector.load %arg6[%c0_11, %c0_12] : memref<32x32xbf16, #tpu.memory_space<vmem>>, vector<32x32xbf16>
    %c0_13 = arith.constant 0 : index
    %c0_14 = arith.constant 0 : index
    %8 = vector.load %arg7[%c0_13, %c0_14] : memref<1x32xf32, #tpu.memory_space<vmem>>, vector<1x32xf32>
    %9 = arith.truncf %1 : vector<8x32xf32> to vector<8x32xbf16>
    %10 = arith.truncf %1 : vector<8x32xf32> to vector<8x32xbf16>
    %cst = arith.constant dense<0.000000e+00> : vector<8x32xf32>
    %11 = tpu.matmul %9, %4, %cst {dimension_numbers = #tpu.dot_dimension_numbers<[1], [0], [0], [1], [0, 0, 1, 1], [], []>} : vector<8x32xbf16>, vector<32x32xbf16>, vector<8x32xf32> -> vector<8x32xf32>
    %cst_15 = arith.constant dense<0.000000e+00> : vector<8x32xf32>
    %12 = tpu.matmul %10, %5, %cst_15 {dimension_numbers = #tpu.dot_dimension_numbers<[1], [0], [0], [1], [0, 0, 1, 1], [], []>} : vector<8x32xbf16>, vector<32x32xbf16>, vector<8x32xf32> -> vector<8x32xf32>
    %cst_16 = arith.constant dense<0.000000e+00> : vector<8x32xf32>
    %13 = tpu.matmul %10, %6, %cst_16 {dimension_numbers = #tpu.dot_dimension_numbers<[1], [0], [0], [1], [0, 0, 1, 1], [], []>} : vector<8x32xbf16>, vector<32x32xbf16>, vector<8x32xf32> -> vector<8x32xf32>
    %cst_17 = arith.constant 0.000000e+00 : f32
    %14 = vector.broadcast %cst_17 : f32 to vector<8x32xf32>
    %15 = vector.extract_strided_slice %11 {offsets = [0, 0], sizes = [8, 16], strides = [1, 1]} : vector<8x32xf32> to vector<8x16xf32>
    %16 = arith.truncf %15 : vector<8x16xf32> to vector<8x16xbf16>
    %17 = vector.extract_strided_slice %12 {offsets = [0, 0], sizes = [8, 16], strides = [1, 1]} : vector<8x32xf32> to vector<8x16xf32>
    %18 = arith.truncf %17 : vector<8x16xf32> to vector<8x16xbf16>
    %19 = vector.extract_strided_slice %13 {offsets = [0, 0], sizes = [8, 16], strides = [1, 1]} : vector<8x32xf32> to vector<8x16xf32>
    %20 = arith.truncf %19 : vector<8x16xf32> to vector<8x16xbf16>
    %cst_18 = arith.constant dense<0.000000e+00> : vector<8x8xf32>
    %21 = tpu.matmul %16, %18, %cst_18 {dimension_numbers = #tpu.dot_dimension_numbers<[1], [1], [0], [0], [0, 0, 1, 0], [], []>} : vector<8x16xbf16>, vector<8x16xbf16>, vector<8x8xf32> -> vector<8x8xf32>
    %22 = vector.broadcast %3 : vector<1x8xf32> to vector<8x8xf32>
    %23 = arith.addf %21, %22 : vector<8x8xf32>
    %cst_19 = arith.constant 1.250000e-01 : f32
    %24 = vector.broadcast %cst_19 : f32 to vector<8x8xf32>
    %25 = arith.mulf %23, %24 : vector<8x8xf32>
    %cst_20 = arith.constant dense<0xFF800000> : vector<8xf32>
    %26 = vector.multi_reduction <maximumf>, %25, %cst_20 [1] : vector<8x8xf32> to vector<8xf32>
    %27 = vector.shape_cast %26 : vector<8xf32> to vector<8x1xf32>
    %28 = vector.broadcast %27 : vector<8x1xf32> to vector<8x8xf32>
    %29 = arith.subf %25, %28 : vector<8x8xf32>
    %30 = math.exp %29 : vector<8x8xf32>
    %cst_21 = arith.constant dense<0.000000e+00> : vector<8xf32>
    %31 = vector.multi_reduction <add>, %30, %cst_21 [1] : vector<8x8xf32> to vector<8xf32>
    %32 = vector.shape_cast %31 : vector<8xf32> to vector<8x1xf32>
    %33 = tpu.reciprocal %32 {approx = true} : vector<8x1xf32> -> vector<8x1xf32>
    %34 = vector.broadcast %33 : vector<8x1xf32> to vector<8x8xf32>
    %35 = arith.mulf %30, %34 : vector<8x8xf32>
    %36 = arith.truncf %35 : vector<8x8xf32> to vector<8x8xbf16>
    %cst_22 = arith.constant dense<0.000000e+00> : vector<8x16xf32>
    %37 = tpu.matmul %36, %20, %cst_22 {dimension_numbers = #tpu.dot_dimension_numbers<[1], [0], [0], [1], [0, 0, 1, 1], [], []>} : vector<8x8xbf16>, vector<8x16xbf16>, vector<8x16xf32> -> vector<8x16xf32>
    %38 = arith.truncf %37 : vector<8x16xf32> to vector<8x16xbf16>
    %39 = vector.extract_strided_slice %7 {offsets = [0, 0], sizes = [16, 32], strides = [1, 1]} : vector<32x32xbf16> to vector<16x32xbf16>
    %cst_23 = arith.constant dense<0.000000e+00> : vector<8x32xf32>
    %40 = tpu.matmul %38, %39, %cst_23 {dimension_numbers = #tpu.dot_dimension_numbers<[1], [0], [0], [1], [0, 0, 1, 1], [], []>} : vector<8x16xbf16>, vector<16x32xbf16>, vector<8x32xf32> -> vector<8x32xf32>
    %41 = arith.addf %14, %40 : vector<8x32xf32>
    %42 = vector.extract_strided_slice %11 {offsets = [0, 16], sizes = [8, 16], strides = [1, 1]} : vector<8x32xf32> to vector<8x16xf32>
    %43 = arith.truncf %42 : vector<8x16xf32> to vector<8x16xbf16>
    %44 = vector.extract_strided_slice %12 {offsets = [0, 16], sizes = [8, 16], strides = [1, 1]} : vector<8x32xf32> to vector<8x16xf32>
    %45 = arith.truncf %44 : vector<8x16xf32> to vector<8x16xbf16>
    %46 = vector.extract_strided_slice %13 {offsets = [0, 16], sizes = [8, 16], strides = [1, 1]} : vector<8x32xf32> to vector<8x16xf32>
    %47 = arith.truncf %46 : vector<8x16xf32> to vector<8x16xbf16>
    %cst_24 = arith.constant dense<0.000000e+00> : vector<8x8xf32>
    %48 = tpu.matmul %43, %45, %cst_24 {dimension_numbers = #tpu.dot_dimension_numbers<[1], [1], [0], [0], [0, 0, 1, 0], [], []>} : vector<8x16xbf16>, vector<8x16xbf16>, vector<8x8xf32> -> vector<8x8xf32>
    %49 = vector.broadcast %3 : vector<1x8xf32> to vector<8x8xf32>
    %50 = arith.addf %48, %49 : vector<8x8xf32>
    %cst_25 = arith.constant 1.250000e-01 : f32
    %51 = vector.broadcast %cst_25 : f32 to vector<8x8xf32>
    %52 = arith.mulf %50, %51 : vector<8x8xf32>
    %cst_26 = arith.constant dense<0xFF800000> : vector<8xf32>
    %53 = vector.multi_reduction <maximumf>, %52, %cst_26 [1] : vector<8x8xf32> to vector<8xf32>
    %54 = vector.shape_cast %53 : vector<8xf32> to vector<8x1xf32>
    %55 = vector.broadcast %54 : vector<8x1xf32> to vector<8x8xf32>
    %56 = arith.subf %52, %55 : vector<8x8xf32>
    %57 = math.exp %56 : vector<8x8xf32>
    %cst_27 = arith.constant dense<0.000000e+00> : vector<8xf32>
    %58 = vector.multi_reduction <add>, %57, %cst_27 [1] : vector<8x8xf32> to vector<8xf32>
    %59 = vector.shape_cast %58 : vector<8xf32> to vector<8x1xf32>
    %60 = tpu.reciprocal %59 {approx = true} : vector<8x1xf32> -> vector<8x1xf32>
    %61 = vector.broadcast %60 : vector<8x1xf32> to vector<8x8xf32>
    %62 = arith.mulf %57, %61 : vector<8x8xf32>
    %63 = arith.truncf %62 : vector<8x8xf32> to vector<8x8xbf16>
    %cst_28 = arith.constant dense<0.000000e+00> : vector<8x16xf32>
    %64 = tpu.matmul %63, %47, %cst_28 {dimension_numbers = #tpu.dot_dimension_numbers<[1], [0], [0], [1], [0, 0, 1, 1], [], []>} : vector<8x8xbf16>, vector<8x16xbf16>, vector<8x16xf32> -> vector<8x16xf32>
    %65 = arith.truncf %64 : vector<8x16xf32> to vector<8x16xbf16>
    %66 = vector.extract_strided_slice %7 {offsets = [16, 0], sizes = [16, 32], strides = [1, 1]} : vector<32x32xbf16> to vector<16x32xbf16>
    %cst_29 = arith.constant dense<0.000000e+00> : vector<8x32xf32>
    %67 = tpu.matmul %65, %66, %cst_29 {dimension_numbers = #tpu.dot_dimension_numbers<[1], [0], [0], [1], [0, 0, 1, 1], [], []>} : vector<8x16xbf16>, vector<16x32xbf16>, vector<8x32xf32> -> vector<8x32xf32>
    %68 = arith.addf %41, %67 : vector<8x32xf32>
    %69 = vector.broadcast %8 : vector<1x32xf32> to vector<8x32xf32>
    %70 = arith.addf %68, %69 : vector<8x32xf32>
    %71 = arith.addf %70, %1 : vector<8x32xf32>
    %c0_30 = arith.constant 0 : index
    %c0_31 = arith.constant 0 : index
    %72 = vector.load %arg8[%c0_30, %c0_31] : memref<1x32xf32, #tpu.memory_space<vmem>>, vector<1x32xf32>
    %c0_32 = arith.constant 0 : index
    %c0_33 = arith.constant 0 : index
    %73 = vector.load %arg9[%c0_32, %c0_33] : memref<1x32xf32, #tpu.memory_space<vmem>>, vector<1x32xf32>
    %cst_34 = arith.constant dense<0.000000e+00> : vector<8xf32>
    %74 = vector.multi_reduction <add>, %71, %cst_34 [1] : vector<8x32xf32> to vector<8xf32>
    %75 = vector.shape_cast %74 : vector<8xf32> to vector<8x1xf32>
    %cst_35 = arith.constant 3.200000e+01 : f32
    %76 = vector.broadcast %cst_35 : f32 to vector<8x1xf32>
    %77 = arith.divf %75, %76 : vector<8x1xf32>
    %78 = vector.broadcast %77 : vector<8x1xf32> to vector<8x32xf32>
    %79 = arith.subf %71, %78 : vector<8x32xf32>
    %80 = arith.mulf %79, %79 : vector<8x32xf32>
    %cst_36 = arith.constant dense<0.000000e+00> : vector<8xf32>
    %81 = vector.multi_reduction <add>, %80, %cst_36 [1] : vector<8x32xf32> to vector<8xf32>
    %82 = vector.shape_cast %81 : vector<8xf32> to vector<8x1xf32>
    %cst_37 = arith.constant 3.200000e+01 : f32
    %83 = vector.broadcast %cst_37 : f32 to vector<8x1xf32>
    %84 = arith.divf %82, %83 : vector<8x1xf32>
    %cst_38 = arith.constant 9.99999974E-6 : f32
    %85 = vector.broadcast %cst_38 : f32 to vector<8x1xf32>
    %86 = arith.addf %84, %85 : vector<8x1xf32>
    %87 = math.rsqrt %86 : vector<8x1xf32>
    %88 = vector.broadcast %87 : vector<8x1xf32> to vector<8x32xf32>
    %89 = arith.mulf %79, %88 : vector<8x32xf32>
    %90 = vector.broadcast %72 : vector<1x32xf32> to vector<8x32xf32>
    %91 = arith.mulf %89, %90 : vector<8x32xf32>
    %92 = vector.broadcast %73 : vector<1x32xf32> to vector<8x32xf32>
    %93 = arith.addf %91, %92 : vector<8x32xf32>
    %c0_39 = arith.constant 0 : index
    %c0_40 = arith.constant 0 : index
    %94 = vector.load %arg10[%c0_39, %c0_40] : memref<32x128xbf16, #tpu.memory_space<vmem>>, vector<32x128xbf16>
    %c0_41 = arith.constant 0 : index
    %c0_42 = arith.constant 0 : index
    %95 = vector.load %arg11[%c0_41, %c0_42] : memref<1x128xf32, #tpu.memory_space<vmem>>, vector<1x128xf32>
    %c0_43 = arith.constant 0 : index
    %c0_44 = arith.constant 0 : index
    %96 = vector.load %arg12[%c0_43, %c0_44] : memref<128x32xbf16, #tpu.memory_space<vmem>>, vector<128x32xbf16>
    %c0_45 = arith.constant 0 : index
    %c0_46 = arith.constant 0 : index
    %97 = vector.load %arg13[%c0_45, %c0_46] : memref<1x32xf32, #tpu.memory_space<vmem>>, vector<1x32xf32>
    %98 = arith.truncf %93 : vector<8x32xf32> to vector<8x32xbf16>
    %cst_47 = arith.constant dense<0.000000e+00> : vector<8x128xf32>
    %99 = tpu.matmul %98, %94, %cst_47 {dimension_numbers = #tpu.dot_dimension_numbers<[1], [0], [0], [1], [0, 0, 1, 1], [], []>} : vector<8x32xbf16>, vector<32x128xbf16>, vector<8x128xf32> -> vector<8x128xf32>
    %100 = vector.broadcast %95 : vector<1x128xf32> to vector<8x128xf32>
    %101 = arith.addf %99, %100 : vector<8x128xf32>
    %cst_48 = arith.constant 0.000000e+00 : f32
    %102 = vector.broadcast %cst_48 : f32 to vector<8x128xf32>
    %103 = arith.maximumf %101, %102 : vector<8x128xf32>
    %104 = arith.truncf %103 : vector<8x128xf32> to vector<8x128xbf16>
    %cst_49 = arith.constant dense<0.000000e+00> : vector<8x32xf32>
    %105 = tpu.matmul %104, %96, %cst_49 {dimension_numbers = #tpu.dot_dimension_numbers<[1], [0], [0], [1], [0, 0, 1, 1], [], []>} : vector<8x128xbf16>, vector<128x32xbf16>, vector<8x32xf32> -> vector<8x32xf32>
    %106 = vector.broadcast %97 : vector<1x32xf32> to vector<8x32xf32>
    %107 = arith.addf %105, %106 : vector<8x32xf32>
    %108 = arith.addf %107, %93 : vector<8x32xf32>
    %c0_50 = arith.constant 0 : index
    %c0_51 = arith.constant 0 : index
    %109 = vector.load %arg14[%c0_50, %c0_51] : memref<1x32xf32, #tpu.memory_space<vmem>>, vector<1x32xf32>
    %c0_52 = arith.constant 0 : index
    %c0_53 = arith.constant 0 : index
    %110 = vector.load %arg15[%c0_52, %c0_53] : memref<1x32xf32, #tpu.memory_space<vmem>>, vector<1x32xf32>
    %cst_54 = arith.constant dense<0.000000e+00> : vector<8xf32>
    %111 = vector.multi_reduction <add>, %108, %cst_54 [1] : vector<8x32xf32> to vector<8xf32>
    %112 = vector.shape_cast %111 : vector<8xf32> to vector<8x1xf32>
    %cst_55 = arith.constant 3.200000e+01 : f32
    %113 = vector.broadcast %cst_55 : f32 to vector<8x1xf32>
    %114 = arith.divf %112, %113 : vector<8x1xf32>
    %115 = vector.broadcast %114 : vector<8x1xf32> to vector<8x32xf32>
    %116 = arith.subf %108, %115 : vector<8x32xf32>
    %117 = arith.mulf %116, %116 : vector<8x32xf32>
    %cst_56 = arith.constant dense<0.000000e+00> : vector<8xf32>
    %118 = vector.multi_reduction <add>, %117, %cst_56 [1] : vector<8x32xf32> to vector<8xf32>
    %119 = vector.shape_cast %118 : vector<8xf32> to vector<8x1xf32>
    %cst_57 = arith.constant 3.200000e+01 : f32
    %120 = vector.broadcast %cst_57 : f32 to vector<8x1xf32>
    %121 = arith.divf %119, %120 : vector<8x1xf32>
    %cst_58 = arith.constant 9.99999974E-6 : f32
    %122 = vector.broadcast %cst_58 : f32 to vector<8x1xf32>
    %123 = arith.addf %121, %122 : vector<8x1xf32>
    %124 = math.rsqrt %123 : vector<8x1xf32>
    %125 = vector.broadcast %124 : vector<8x1xf32> to vector<8x32xf32>
    %126 = arith.mulf %116, %125 : vector<8x32xf32>
    %127 = vector.broadcast %109 : vector<1x32xf32> to vector<8x32xf32>
    %128 = arith.mulf %126, %127 : vector<8x32xf32>
    %129 = vector.broadcast %110 : vector<1x32xf32> to vector<8x32xf32>
    %130 = arith.addf %128, %129 : vector<8x32xf32>
    %c0_59 = arith.constant 0 : index
    %c0_60 = arith.constant 0 : index
    %c0_61 = arith.constant 0 : index
    %131 = vector.load %arg16[%c0_59, %c0_60, %c0_61] : memref<1x8x32xf32, #tpu.memory_space<vmem>>, vector<1x8x32xf32>
    %132 = vector.shape_cast %131 : vector<1x8x32xf32> to vector<8x32xf32>
    %133 = vector.shape_cast %130 : vector<8x32xf32> to vector<1x8x32xf32>
    tpu.vector_store %arg16[%c0_59, %c0_60, %c0_61], %133 {strides = array<i32>} : memref<1x8x32xf32, #tpu.memory_space<vmem>>, vector<1x8x32xf32>,
    return
  }
  func.func @transform_0(%arg0: i32) -> (i32, i32, i32) {
    %c0_i32 = arith.constant 0 : i32
    %c0_i32_0 = arith.constant 0 : i32
    %c0_i32_1 = arith.constant 0 : i32
    return %arg0, %c0_i32, %c0_i32_0 : i32, i32, i32
  }
  func.func @transform_1(%arg0: i32) -> (i32, i32, i32) {
    %c0_i32 = arith.constant 0 : i32
    %c0_i32_0 = arith.constant 0 : i32
    %c0_i32_1 = arith.constant 0 : i32
    return %arg0, %c0_i32, %c0_i32_0 : i32, i32, i32
  }
  func.func @transform_2(%arg0: i32) -> (i32, i32) {
    %c0_i32 = arith.constant 0 : i32
    %c0_i32_0 = arith.constant 0 : i32
    %c0_i32_1 = arith.constant 0 : i32
    return %c0_i32, %c0_i32_0 : i32, i32
  }
  func.func @transform_3(%arg0: i32) -> (i32, i32) {
    %c0_i32 = arith.constant 0 : i32
    %c0_i32_0 = arith.constant 0 : i32
    %c0_i32_1 = arith.constant 0 : i32
    return %c0_i32, %c0_i32_0 : i32, i32
  }
  func.func @transform_4(%arg0: i32) -> (i32, i32) {
    %c0_i32 = arith.constant 0 : i32
    %c0_i32_0 = arith.constant 0 : i32
    %c0_i32_1 = arith.constant 0 : i32
    return %c0_i32, %c0_i32_0 : i32, i32
  }
  func.func @transform_5(%arg0: i32) -> (i32, i32) {
    %c0_i32 = arith.constant 0 : i32
    %c0_i32_0 = arith.constant 0 : i32
    %c0_i32_1 = arith.constant 0 : i32
    return %c0_i32, %c0_i32_0 : i32, i32
  }
  func.func @transform_6(%arg0: i32) -> (i32, i32) {
    %c0_i32 = arith.constant 0 : i32
    %c0_i32_0 = arith.constant 0 : i32
    %c0_i32_1 = arith.constant 0 : i32
    return %c0_i32, %c0_i32_0 : i32, i32
  }
  func.func @transform_7(%arg0: i32) -> (i32, i32) {
    %c0_i32 = arith.constant 0 : i32
    %c0_i32_0 = arith.constant 0 : i32
    %c0_i32_1 = arith.constant 0 : i32
    return %c0_i32, %c0_i32_0 : i32, i32
  }
  func.func @transform_8(%arg0: i32) -> (i32, i32) {
    %c0_i32 = arith.constant 0 : i32
    %c0_i32_0 = arith.constant 0 : i32
    %c0_i32_1 = arith.constant 0 : i32
    return %c0_i32, %c0_i32_0 : i32, i32
  }
  func.func @transform_9(%arg0: i32) -> (i32, i32) {
    %c0_i32 = arith.constant 0 : i32
    %c0_i32_0 = arith.constant 0 : i32
    %c0_i32_1 = arith.constant 0 : i32
    return %c0_i32, %c0_i32_0 : i32, i32
  }
  func.func @transform_10(%arg0: i32) -> (i32, i32) {
    %c0_i32 = arith.constant 0 : i32
    %c0_i32_0 = arith.constant 0 : i32
    %c0_i32_1 = arith.constant 0 : i32
    return %c0_i32, %c0_i32_0 : i32, i32
  }
  func.func @transform_11(%arg0: i32) -> (i32, i32) {
    %c0_i32 = arith.constant 0 : i32
    %c0_i32_0 = arith.constant 0 : i32
    %c0_i32_1 = arith.constant 0 : i32
    return %c0_i32, %c0_i32_0 : i32, i32
  }
  func.func @transform_12(%arg0: i32) -> (i32, i32) {
    %c0_i32 = arith.constant 0 : i32
    %c0_i32_0 = arith.constant 0 : i32
    %c0_i32_1 = arith.constant 0 : i32
    return %c0_i32, %c0_i32_0 : i32, i32
  }
  func.func @transform_13(%arg0: i32) -> (i32, i32) {
    %c0_i32 = arith.constant 0 : i32
    %c0_i32_0 = arith.constant 0 : i32
    %c0_i32_1 = arith.constant 0 : i32
    return %c0_i32, %c0_i32_0 : i32, i32
  }
  func.func @transform_14(%arg0: i32) -> (i32, i32) {
    %c0_i32 = arith.constant 0 : i32
    %c0_i32_0 = arith.constant 0 : i32
    %c0_i32_1 = arith.constant 0 : i32
    return %c0_i32, %c0_i32_0 : i32, i32
  }
  func.func @transform_15(%arg0: i32) -> (i32, i32, i32) {
    %c0_i32 = arith.constant 0 : i32
    %c0_i32_0 = arith.constant 0 : i32
    %c0_i32_1 = arith.constant 0 : i32
    return %arg0, %c0_i32, %c0_i32_0 : i32, i32, i32
  }
}

module attributes {stable_mosaic.version = 11 : i64} {
  func.func @linear_matmul_kernel(%arg0: i32, %arg1: i32, %arg2: i32, %arg3: memref<16x32xf32, #tpu.memory_space<vmem>>, %arg4: memref<32x128xbf16, #tpu.memory_space<vmem>>, %arg5: memref<1x128xf32, #tpu.memory_space<vmem>>, %arg6: memref<16x128xf32, #tpu.memory_space<vmem>>, %arg7: memref<16x128xf32, #tpu.memory_space<vmem>>) attributes {dimension_semantics = [#tpu.dimension_semantics<parallel>, #tpu.dimension_semantics<parallel>, #tpu.dimension_semantics<arbitrary>], iteration_bounds = array<i64: 1, 1, 1>, scalar_prefetch = 0 : i64, scratch_operands = 1 : i64, tpu.core_type = #tpu.core_type<tc>, window_params = [{transform_indices = @transform_0, window_bounds = array<i64: 16, 32>}, {transform_indices = @transform_1, window_bounds = array<i64: 32, 128>}, {transform_indices = @transform_2, window_bounds = array<i64: 1, 128>}, {transform_indices = @transform_3, window_bounds = array<i64: 16, 128>}]} {
    %c0_i32 = arith.constant 0 : i32
    %0 = arith.cmpi eq, %arg2, %c0_i32 : i32
    %1 = arith.extui %0 : i1 to i32
    %c0_i32_0 = arith.constant 0 : i32
    %2 = arith.cmpi ne, %1, %c0_i32_0 : i32
    scf.if %2 {
      %cst_10 = arith.constant 0.000000e+00 : f32
      %13 = vector.broadcast %cst_10 : f32 to vector<16x128xf32>
      %c0_11 = arith.constant 0 : index
      %c0_12 = arith.constant 0 : index
      %14 = vector.load %arg7[%c0_11, %c0_12] : memref<16x128xf32, #tpu.memory_space<vmem>>, vector<16x128xf32>
      tpu.vector_store %arg7[%c0_11, %c0_12], %13 {strides = array<i32>} : memref<16x128xf32, #tpu.memory_space<vmem>>, vector<16x128xf32>,
    } else {
    }
    %c0 = arith.constant 0 : index
    %c0_1 = arith.constant 0 : index
    %3 = vector.load %arg7[%c0, %c0_1] : memref<16x128xf32, #tpu.memory_space<vmem>>, vector<16x128xf32>
    %c0_2 = arith.constant 0 : index
    %c0_3 = arith.constant 0 : index
    %4 = vector.load %arg3[%c0_2, %c0_3] : memref<16x32xf32, #tpu.memory_space<vmem>>, vector<16x32xf32>
    %5 = arith.truncf %4 : vector<16x32xf32> to vector<16x32xbf16>
    %c0_4 = arith.constant 0 : index
    %c0_5 = arith.constant 0 : index
    %6 = vector.load %arg4[%c0_4, %c0_5] : memref<32x128xbf16, #tpu.memory_space<vmem>>, vector<32x128xbf16>
    %cst = arith.constant dense<0.000000e+00> : vector<16x128xf32>
    %7 = tpu.matmul %5, %6, %cst {dimension_numbers = #tpu.dot_dimension_numbers<[1], [0], [0], [1], [0, 0, 1, 1], [], []>} : vector<16x32xbf16>, vector<32x128xbf16>, vector<16x128xf32> -> vector<16x128xf32>
    %8 = arith.addf %3, %7 : vector<16x128xf32>
    %c0_6 = arith.constant 0 : index
    %c0_7 = arith.constant 0 : index
    %9 = vector.load %arg7[%c0_6, %c0_7] : memref<16x128xf32, #tpu.memory_space<vmem>>, vector<16x128xf32>
    tpu.vector_store %arg7[%c0_6, %c0_7], %8 {strides = array<i32>} : memref<16x128xf32, #tpu.memory_space<vmem>>, vector<16x128xf32>,
    %c0_i32_8 = arith.constant 0 : i32
    %10 = arith.cmpi eq, %arg2, %c0_i32_8 : i32
    %11 = arith.extui %10 : i1 to i32
    %c0_i32_9 = arith.constant 0 : i32
    %12 = arith.cmpi ne, %11, %c0_i32_9 : i32
    scf.if %12 {
      %c0_10 = arith.constant 0 : index
      %c0_11 = arith.constant 0 : index
      %13 = vector.load %arg7[%c0_10, %c0_11] : memref<16x128xf32, #tpu.memory_space<vmem>>, vector<16x128xf32>
      %c0_12 = arith.constant 0 : index
      %c0_13 = arith.constant 0 : index
      %14 = vector.load %arg5[%c0_12, %c0_13] : memref<1x128xf32, #tpu.memory_space<vmem>>, vector<1x128xf32>
      %15 = vector.broadcast %14 : vector<1x128xf32> to vector<16x128xf32>
      %16 = arith.addf %13, %15 : vector<16x128xf32>
      %c0_14 = arith.constant 0 : index
      %c0_15 = arith.constant 0 : index
      %17 = vector.load %arg6[%c0_14, %c0_15] : memref<16x128xf32, #tpu.memory_space<vmem>>, vector<16x128xf32>
      tpu.vector_store %arg6[%c0_14, %c0_15], %16 {strides = array<i32>} : memref<16x128xf32, #tpu.memory_space<vmem>>, vector<16x128xf32>,
    } else {
    }
    return
  }
  func.func @transform_0(%arg0: i32, %arg1: i32, %arg2: i32) -> (i32, i32) {
    %c0_i32 = arith.constant 0 : i32
    return %arg0, %arg2 : i32, i32
  }
  func.func @transform_1(%arg0: i32, %arg1: i32, %arg2: i32) -> (i32, i32) {
    %c0_i32 = arith.constant 0 : i32
    return %arg2, %arg1 : i32, i32
  }
  func.func @transform_2(%arg0: i32, %arg1: i32, %arg2: i32) -> (i32, i32) {
    %c0_i32 = arith.constant 0 : i32
    %c0_i32_0 = arith.constant 0 : i32
    return %c0_i32, %arg1 : i32, i32
  }
  func.func @transform_3(%arg0: i32, %arg1: i32, %arg2: i32) -> (i32, i32) {
    %c0_i32 = arith.constant 0 : i32
    return %arg0, %arg1 : i32, i32
  }
}

module attributes {stable_mosaic.version = 11 : i64} {
  func.func @decoder_block_kernel(%arg0: i32, %arg1: memref<1x8x32xf32, #tpu.memory_space<vmem>>, %arg2: memref<1x8x32xf32, #tpu.memory_space<vmem>>, %arg3: memref<1x8x8xf32, #tpu.memory_space<vmem>>, %arg4: memref<1x1x8xf32, #tpu.memory_space<vmem>>, %arg5: memref<32x32xbf16, #tpu.memory_space<vmem>>, %arg6: memref<32x32xbf16, #tpu.memory_space<vmem>>, %arg7: memref<32x32xbf16, #tpu.memory_space<vmem>>, %arg8: memref<32x32xbf16, #tpu.memory_space<vmem>>, %arg9: memref<1x32xf32, #tpu.memory_space<vmem>>, %arg10: memref<1x32xf32, #tpu.memory_space<vmem>>, %arg11: memref<1x32xf32, #tpu.memory_space<vmem>>, %arg12: memref<32x32xbf16, #tpu.memory_space<vmem>>, %arg13: memref<32x32xbf16, #tpu.memory_space<vmem>>, %arg14: memref<32x32xbf16, #tpu.memory_space<vmem>>, %arg15: memref<32x32xbf16, #tpu.memory_space<vmem>>, %arg16: memref<1x32xf32, #tpu.memory_space<vmem>>, %arg17: memref<1x32xf32, #tpu.memory_space<vmem>>, %arg18: memref<1x32xf32, #tpu.memory_space<vmem>>, %arg19: memref<32x128xbf16, #tpu.memory_space<vmem>>, %arg20: memref<1x128xf32, #tpu.memory_space<vmem>>, %arg21: memref<128x32xbf16, #tpu.memory_space<vmem>>, %arg22: memref<1x32xf32, #tpu.memory_space<vmem>>, %arg23: memref<1x32xf32, #tpu.memory_space<vmem>>, %arg24: memref<1x32xf32, #tpu.memory_space<vmem>>, %arg25: memref<1x8x32xf32, #tpu.memory_space<vmem>>) attributes {dimension_semantics = [#tpu.dimension_semantics<parallel>], iteration_bounds = array<i64: 2>, scalar_prefetch = 0 : i64, scratch_operands = 0 : i64, tpu.core_type = #tpu.core_type<tc>, window_params = [{transform_indices = @transform_0, window_bounds = array<i64: 1, 8, 32>}, {transform_indices = @transform_1, window_bounds = array<i64: 1, 8, 32>}, {pipeline_mode = #tpu.pipeline_mode<synchronous>, transform_indices = @transform_2, window_bounds = array<i64: 1, 8, 8>}, {transform_indices = @transform_3, window_bounds = array<i64: 1, 1, 8>}, {pipeline_mode = #tpu.pipeline_mode<synchronous>, transform_indices = @transform_4, window_bounds = array<i64: 32, 32>}, {pipeline_mode = #tpu.pipeline_mode<synchronous>, transform_indices = @transform_5, window_bounds = array<i64: 32, 32>}, {pipeline_mode = #tpu.pipeline_mode<synchronous>, transform_indices = @transform_6, window_bounds = array<i64: 32, 32>}, {pipeline_mode = #tpu.pipeline_mode<synchronous>, transform_indices = @transform_7, window_bounds = array<i64: 32, 32>}, {pipeline_mode = #tpu.pipeline_mode<synchronous>, transform_indices = @transform_8, window_bounds = array<i64: 1, 32>}, {pipeline_mode = #tpu.pipeline_mode<synchronous>, transform_indices = @transform_9, window_bounds = array<i64: 1, 32>}, {pipeline_mode = #tpu.pipeline_mode<synchronous>, transform_indices = @transform_10, window_bounds = array<i64: 1, 32>}, {pipeline_mode = #tpu.pipeline_mode<synchronous>, transform_indices = @transform_11, window_bounds = array<i64: 32, 32>}, {pipeline_mode = #tpu.pipeline_mode<synchronous>, transform_indices = @transform_12, window_bounds = array<i64: 32, 32>}, {pipeline_mode = #tpu.pipeline_mode<synchronous>, transform_indices = @transform_13, window_bounds = array<i64: 32, 32>}, {pipeline_mode = #tpu.pipeline_mode<synchronous>, transform_indices = @transform_14, window_bounds = array<i64: 32, 32>}, {pipeline_mode = #tpu.pipeline_mode<synchronous>, transform_indices = @transform_15, window_bounds = array<i64: 1, 32>}, {pipeline_mode = #tpu.pipeline_mode<synchronous>, transform_indices = @transform_16, window_bounds = array<i64: 1, 32>}, {pipeline_mode = #tpu.pipeline_mode<synchronous>, transform_indices = @transform_17, window_bounds = array<i64: 1, 32>}, {pipeline_mode = #tpu.pipeline_mode<synchronous>, transform_indices = @transform_18, window_bounds = array<i64: 32, 128>}, {pipeline_mode = #tpu.pipeline_mode<synchronous>, transform_indices = @transform_19, window_bounds = array<i64: 1, 128>}, {pipeline_mode = #tpu.pipeline_mode<synchronous>, transform_indices = @transform_20, window_bounds = array<i64: 128, 32>}, {pipeline_mode = #tpu.pipeline_mode<synchronous>, transform_indices = @transform_21, window_bounds = array<i64: 1, 32>}, {pipeline_mode = #tpu.pipeline_mode<synchronous>, transform_indices = @transform_22, window_bounds = array<i64: 1, 32>}, {pipeline_mode = #tpu.pipeline_mode<synchronous>, transform_indices = @transform_23, window_bounds = array<i64: 1, 32>}, {transform_indices = @transform_24, window_bounds = array<i64: 1, 8, 32>}]} {
    %c0 = arith.constant 0 : index
    %c0_0 = arith.constant 0 : index
    %c0_1 = arith.constant 0 : index
    %0 = vector.load %arg1[%c0, %c0_0, %c0_1] : memref<1x8x32xf32, #tpu.memory_space<vmem>>, vector<1x8x32xf32>
    %1 = vector.shape_cast %0 : vector<1x8x32xf32> to vector<8x32xf32>
    %c0_2 = arith.constant 0 : index
    %c0_3 = arith.constant 0 : index
    %c0_4 = arith.constant 0 : index
    %2 = vector.load %arg3[%c0_2, %c0_3, %c0_4] : memref<1x8x8xf32, #tpu.memory_space<vmem>>, vector<1x8x8xf32>
    %3 = vector.shape_cast %2 : vector<1x8x8xf32> to vector<8x8xf32>
    %c0_5 = arith.constant 0 : index
    %c0_6 = arith.constant 0 : index
    %4 = vector.load %arg5[%c0_5, %c0_6] : memref<32x32xbf16, #tpu.memory_space<vmem>>, vector<32x32xbf16>
    %c0_7 = arith.constant 0 : index
    %c0_8 = arith.constant 0 : index
    %5 = vector.load %arg6[%c0_7, %c0_8] : memref<32x32xbf16, #tpu.memory_space<vmem>>, vector<32x32xbf16>
    %c0_9 = arith.constant 0 : index
    %c0_10 = arith.constant 0 : index
    %6 = vector.load %arg7[%c0_9, %c0_10] : memref<32x32xbf16, #tpu.memory_space<vmem>>, vector<32x32xbf16>
    %c0_11 = arith.constant 0 : index
    %c0_12 = arith.constant 0 : index
    %7 = vector.load %arg8[%c0_11, %c0_12] : memref<32x32xbf16, #tpu.memory_space<vmem>>, vector<32x32xbf16>
    %c0_13 = arith.constant 0 : index
    %c0_14 = arith.constant 0 : index
    %8 = vector.load %arg9[%c0_13, %c0_14] : memref<1x32xf32, #tpu.memory_space<vmem>>, vector<1x32xf32>
    %9 = arith.truncf %1 : vector<8x32xf32> to vector<8x32xbf16>
    %10 = arith.truncf %1 : vector<8x32xf32> to vector<8x32xbf16>
    %cst = arith.constant dense<0.000000e+00> : vector<8x32xf32>
    %11 = tpu.matmul %9, %4, %cst {dimension_numbers = #tpu.dot_dimension_numbers<[1], [0], [0], [1], [0, 0, 1, 1], [], []>} : vector<8x32xbf16>, vector<32x32xbf16>, vector<8x32xf32> -> vector<8x32xf32>
    %cst_15 = arith.constant dense<0.000000e+00> : vector<8x32xf32>
    %12 = tpu.matmul %10, %5, %cst_15 {dimension_numbers = #tpu.dot_dimension_numbers<[1], [0], [0], [1], [0, 0, 1, 1], [], []>} : vector<8x32xbf16>, vector<32x32xbf16>, vector<8x32xf32> -> vector<8x32xf32>
    %cst_16 = arith.constant dense<0.000000e+00> : vector<8x32xf32>
    %13 = tpu.matmul %10, %6, %cst_16 {dimension_numbers = #tpu.dot_dimension_numbers<[1], [0], [0], [1], [0, 0, 1, 1], [], []>} : vector<8x32xbf16>, vector<32x32xbf16>, vector<8x32xf32> -> vector<8x32xf32>
    %cst_17 = arith.constant 0.000000e+00 : f32
    %14 = vector.broadcast %cst_17 : f32 to vector<8x32xf32>
    %15 = vector.extract_strided_slice %11 {offsets = [0, 0], sizes = [8, 16], strides = [1, 1]} : vector<8x32xf32> to vector<8x16xf32>
    %16 = arith.truncf %15 : vector<8x16xf32> to vector<8x16xbf16>
    %17 = vector.extract_strided_slice %12 {offsets = [0, 0], sizes = [8, 16], strides = [1, 1]} : vector<8x32xf32> to vector<8x16xf32>
    %18 = arith.truncf %17 : vector<8x16xf32> to vector<8x16xbf16>
    %19 = vector.extract_strided_slice %13 {offsets = [0, 0], sizes = [8, 16], strides = [1, 1]} : vector<8x32xf32> to vector<8x16xf32>
    %20 = arith.truncf %19 : vector<8x16xf32> to vector<8x16xbf16>
    %cst_18 = arith.constant dense<0.000000e+00> : vector<8x8xf32>
    %21 = tpu.matmul %16, %18, %cst_18 {dimension_numbers = #tpu.dot_dimension_numbers<[1], [1], [0], [0], [0, 0, 1, 0], [], []>} : vector<8x16xbf16>, vector<8x16xbf16>, vector<8x8xf32> -> vector<8x8xf32>
    %22 = arith.addf %21, %3 : vector<8x8xf32>
    %cst_19 = arith.constant 1.250000e-01 : f32
    %23 = vector.broadcast %cst_19 : f32 to vector<8x8xf32>
    %24 = arith.mulf %22, %23 : vector<8x8xf32>
    %cst_20 = arith.constant dense<0xFF800000> : vector<8xf32>
    %25 = vector.multi_reduction <maximumf>, %24, %cst_20 [1] : vector<8x8xf32> to vector<8xf32>
    %26 = vector.shape_cast %25 : vector<8xf32> to vector<8x1xf32>
    %27 = vector.broadcast %26 : vector<8x1xf32> to vector<8x8xf32>
    %28 = arith.subf %24, %27 : vector<8x8xf32>
    %29 = math.exp %28 : vector<8x8xf32>
    %cst_21 = arith.constant dense<0.000000e+00> : vector<8xf32>
    %30 = vector.multi_reduction <add>, %29, %cst_21 [1] : vector<8x8xf32> to vector<8xf32>
    %31 = vector.shape_cast %30 : vector<8xf32> to vector<8x1xf32>
    %32 = tpu.reciprocal %31 {approx = true} : vector<8x1xf32> -> vector<8x1xf32>
    %33 = vector.broadcast %32 : vector<8x1xf32> to vector<8x8xf32>
    %34 = arith.mulf %29, %33 : vector<8x8xf32>
    %35 = arith.truncf %34 : vector<8x8xf32> to vector<8x8xbf16>
    %cst_22 = arith.constant dense<0.000000e+00> : vector<8x16xf32>
    %36 = tpu.matmul %35, %20, %cst_22 {dimension_numbers = #tpu.dot_dimension_numbers<[1], [0], [0], [1], [0, 0, 1, 1], [], []>} : vector<8x8xbf16>, vector<8x16xbf16>, vector<8x16xf32> -> vector<8x16xf32>
    %37 = arith.truncf %36 : vector<8x16xf32> to vector<8x16xbf16>
    %38 = vector.extract_strided_slice %7 {offsets = [0, 0], sizes = [16, 32], strides = [1, 1]} : vector<32x32xbf16> to vector<16x32xbf16>
    %cst_23 = arith.constant dense<0.000000e+00> : vector<8x32xf32>
    %39 = tpu.matmul %37, %38, %cst_23 {dimension_numbers = #tpu.dot_dimension_numbers<[1], [0], [0], [1], [0, 0, 1, 1], [], []>} : vector<8x16xbf16>, vector<16x32xbf16>, vector<8x32xf32> -> vector<8x32xf32>
    %40 = arith.addf %14, %39 : vector<8x32xf32>
    %41 = vector.extract_strided_slice %11 {offsets = [0, 16], sizes = [8, 16], strides = [1, 1]} : vector<8x32xf32> to vector<8x16xf32>
    %42 = arith.truncf %41 : vector<8x16xf32> to vector<8x16xbf16>
    %43 = vector.extract_strided_slice %12 {offsets = [0, 16], sizes = [8, 16], strides = [1, 1]} : vector<8x32xf32> to vector<8x16xf32>
    %44 = arith.truncf %43 : vector<8x16xf32> to vector<8x16xbf16>
    %45 = vector.extract_strided_slice %13 {offsets = [0, 16], sizes = [8, 16], strides = [1, 1]} : vector<8x32xf32> to vector<8x16xf32>
    %46 = arith.truncf %45 : vector<8x16xf32> to vector<8x16xbf16>
    %cst_24 = arith.constant dense<0.000000e+00> : vector<8x8xf32>
    %47 = tpu.matmul %42, %44, %cst_24 {dimension_numbers = #tpu.dot_dimension_numbers<[1], [1], [0], [0], [0, 0, 1, 0], [], []>} : vector<8x16xbf16>, vector<8x16xbf16>, vector<8x8xf32> -> vector<8x8xf32>
    %48 = arith.addf %47, %3 : vector<8x8xf32>
    %cst_25 = arith.constant 1.250000e-01 : f32
    %49 = vector.broadcast %cst_25 : f32 to vector<8x8xf32>
    %50 = arith.mulf %48, %49 : vector<8x8xf32>
    %cst_26 = arith.constant dense<0xFF800000> : vector<8xf32>
    %51 = vector.multi_reduction <maximumf>, %50, %cst_26 [1] : vector<8x8xf32> to vector<8xf32>
    %52 = vector.shape_cast %51 : vector<8xf32> to vector<8x1xf32>
    %53 = vector.broadcast %52 : vector<8x1xf32> to vector<8x8xf32>
    %54 = arith.subf %50, %53 : vector<8x8xf32>
    %55 = math.exp %54 : vector<8x8xf32>
    %cst_27 = arith.constant dense<0.000000e+00> : vector<8xf32>
    %56 = vector.multi_reduction <add>, %55, %cst_27 [1] : vector<8x8xf32> to vector<8xf32>
    %57 = vector.shape_cast %56 : vector<8xf32> to vector<8x1xf32>
    %58 = tpu.reciprocal %57 {approx = true} : vector<8x1xf32> -> vector<8x1xf32>
    %59 = vector.broadcast %58 : vector<8x1xf32> to vector<8x8xf32>
    %60 = arith.mulf %55, %59 : vector<8x8xf32>
    %61 = arith.truncf %60 : vector<8x8xf32> to vector<8x8xbf16>
    %cst_28 = arith.constant dense<0.000000e+00> : vector<8x16xf32>
    %62 = tpu.matmul %61, %46, %cst_28 {dimension_numbers = #tpu.dot_dimension_numbers<[1], [0], [0], [1], [0, 0, 1, 1], [], []>} : vector<8x8xbf16>, vector<8x16xbf16>, vector<8x16xf32> -> vector<8x16xf32>
    %63 = arith.truncf %62 : vector<8x16xf32> to vector<8x16xbf16>
    %64 = vector.extract_strided_slice %7 {offsets = [16, 0], sizes = [16, 32], strides = [1, 1]} : vector<32x32xbf16> to vector<16x32xbf16>
    %cst_29 = arith.constant dense<0.000000e+00> : vector<8x32xf32>
    %65 = tpu.matmul %63, %64, %cst_29 {dimension_numbers = #tpu.dot_dimension_numbers<[1], [0], [0], [1], [0, 0, 1, 1], [], []>} : vector<8x16xbf16>, vector<16x32xbf16>, vector<8x32xf32> -> vector<8x32xf32>
    %66 = arith.addf %40, %65 : vector<8x32xf32>
    %67 = vector.broadcast %8 : vector<1x32xf32> to vector<8x32xf32>
    %68 = arith.addf %66, %67 : vector<8x32xf32>
    %69 = arith.addf %68, %1 : vector<8x32xf32>
    %c0_30 = arith.constant 0 : index
    %c0_31 = arith.constant 0 : index
    %70 = vector.load %arg10[%c0_30, %c0_31] : memref<1x32xf32, #tpu.memory_space<vmem>>, vector<1x32xf32>
    %c0_32 = arith.constant 0 : index
    %c0_33 = arith.constant 0 : index
    %71 = vector.load %arg11[%c0_32, %c0_33] : memref<1x32xf32, #tpu.memory_space<vmem>>, vector<1x32xf32>
    %cst_34 = arith.constant dense<0.000000e+00> : vector<8xf32>
    %72 = vector.multi_reduction <add>, %69, %cst_34 [1] : vector<8x32xf32> to vector<8xf32>
    %73 = vector.shape_cast %72 : vector<8xf32> to vector<8x1xf32>
    %cst_35 = arith.constant 3.200000e+01 : f32
    %74 = vector.broadcast %cst_35 : f32 to vector<8x1xf32>
    %75 = arith.divf %73, %74 : vector<8x1xf32>
    %76 = vector.broadcast %75 : vector<8x1xf32> to vector<8x32xf32>
    %77 = arith.subf %69, %76 : vector<8x32xf32>
    %78 = arith.mulf %77, %77 : vector<8x32xf32>
    %cst_36 = arith.constant dense<0.000000e+00> : vector<8xf32>
    %79 = vector.multi_reduction <add>, %78, %cst_36 [1] : vector<8x32xf32> to vector<8xf32>
    %80 = vector.shape_cast %79 : vector<8xf32> to vector<8x1xf32>
    %cst_37 = arith.constant 3.200000e+01 : f32
    %81 = vector.broadcast %cst_37 : f32 to vector<8x1xf32>
    %82 = arith.divf %80, %81 : vector<8x1xf32>
    %cst_38 = arith.constant 9.99999974E-6 : f32
    %83 = vector.broadcast %cst_38 : f32 to vector<8x1xf32>
    %84 = arith.addf %82, %83 : vector<8x1xf32>
    %85 = math.rsqrt %84 : vector<8x1xf32>
    %86 = vector.broadcast %85 : vector<8x1xf32> to vector<8x32xf32>
    %87 = arith.mulf %77, %86 : vector<8x32xf32>
    %88 = vector.broadcast %70 : vector<1x32xf32> to vector<8x32xf32>
    %89 = arith.mulf %87, %88 : vector<8x32xf32>
    %90 = vector.broadcast %71 : vector<1x32xf32> to vector<8x32xf32>
    %91 = arith.addf %89, %90 : vector<8x32xf32>
    %c0_39 = arith.constant 0 : index
    %c0_40 = arith.constant 0 : index
    %c0_41 = arith.constant 0 : index
    %92 = vector.load %arg2[%c0_39, %c0_40, %c0_41] : memref<1x8x32xf32, #tpu.memory_space<vmem>>, vector<1x8x32xf32>
    %93 = vector.shape_cast %92 : vector<1x8x32xf32> to vector<8x32xf32>
    %c0_42 = arith.constant 0 : index
    %c0_43 = arith.constant 0 : index
    %c0_44 = arith.constant 0 : index
    %94 = vector.load %arg4[%c0_42, %c0_43, %c0_44] : memref<1x1x8xf32, #tpu.memory_space<vmem>>, vector<1x1x8xf32>
    %95 = vector.shape_cast %94 : vector<1x1x8xf32> to vector<1x8xf32>
    %c0_45 = arith.constant 0 : index
    %c0_46 = arith.constant 0 : index
    %96 = vector.load %arg12[%c0_45, %c0_46] : memref<32x32xbf16, #tpu.memory_space<vmem>>, vector<32x32xbf16>
    %c0_47 = arith.constant 0 : index
    %c0_48 = arith.constant 0 : index
    %97 = vector.load %arg13[%c0_47, %c0_48] : memref<32x32xbf16, #tpu.memory_space<vmem>>, vector<32x32xbf16>
    %c0_49 = arith.constant 0 : index
    %c0_50 = arith.constant 0 : index
    %98 = vector.load %arg14[%c0_49, %c0_50] : memref<32x32xbf16, #tpu.memory_space<vmem>>, vector<32x32xbf16>
    %c0_51 = arith.constant 0 : index
    %c0_52 = arith.constant 0 : index
    %99 = vector.load %arg15[%c0_51, %c0_52] : memref<32x32xbf16, #tpu.memory_space<vmem>>, vector<32x32xbf16>
    %c0_53 = arith.constant 0 : index
    %c0_54 = arith.constant 0 : index
    %100 = vector.load %arg16[%c0_53, %c0_54] : memref<1x32xf32, #tpu.memory_space<vmem>>, vector<1x32xf32>
    %101 = arith.truncf %91 : vector<8x32xf32> to vector<8x32xbf16>
    %102 = arith.truncf %93 : vector<8x32xf32> to vector<8x32xbf16>
    %cst_55 = arith.constant dense<0.000000e+00> : vector<8x32xf32>
    %103 = tpu.matmul %101, %96, %cst_55 {dimension_numbers = #tpu.dot_dimension_numbers<[1], [0], [0], [1], [0, 0, 1, 1], [], []>} : vector<8x32xbf16>, vector<32x32xbf16>, vector<8x32xf32> -> vector<8x32xf32>
    %cst_56 = arith.constant dense<0.000000e+00> : vector<8x32xf32>
    %104 = tpu.matmul %102, %97, %cst_56 {dimension_numbers = #tpu.dot_dimension_numbers<[1], [0], [0], [1], [0, 0, 1, 1], [], []>} : vector<8x32xbf16>, vector<32x32xbf16>, vector<8x32xf32> -> vector<8x32xf32>
    %cst_57 = arith.constant dense<0.000000e+00> : vector<8x32xf32>
    %105 = tpu.matmul %102, %98, %cst_57 {dimension_numbers = #tpu.dot_dimension_numbers<[1], [0], [0], [1], [0, 0, 1, 1], [], []>} : vector<8x32xbf16>, vector<32x32xbf16>, vector<8x32xf32> -> vector<8x32xf32>
    %cst_58 = arith.constant 0.000000e+00 : f32
    %106 = vector.broadcast %cst_58 : f32 to vector<8x32xf32>
    %107 = vector.extract_strided_slice %103 {offsets = [0, 0], sizes = [8, 16], strides = [1, 1]} : vector<8x32xf32> to vector<8x16xf32>
    %108 = arith.truncf %107 : vector<8x16xf32> to vector<8x16xbf16>
    %109 = vector.extract_strided_slice %104 {offsets = [0, 0], sizes = [8, 16], strides = [1, 1]} : vector<8x32xf32> to vector<8x16xf32>
    %110 = arith.truncf %109 : vector<8x16xf32> to vector<8x16xbf16>
    %111 = vector.extract_strided_slice %105 {offsets = [0, 0], sizes = [8, 16], strides = [1, 1]} : vector<8x32xf32> to vector<8x16xf32>
    %112 = arith.truncf %111 : vector<8x16xf32> to vector<8x16xbf16>
    %cst_59 = arith.constant dense<0.000000e+00> : vector<8x8xf32>
    %113 = tpu.matmul %108, %110, %cst_59 {dimension_numbers = #tpu.dot_dimension_numbers<[1], [1], [0], [0], [0, 0, 1, 0], [], []>} : vector<8x16xbf16>, vector<8x16xbf16>, vector<8x8xf32> -> vector<8x8xf32>
    %114 = vector.broadcast %95 : vector<1x8xf32> to vector<8x8xf32>
    %115 = arith.addf %113, %114 : vector<8x8xf32>
    %cst_60 = arith.constant 1.250000e-01 : f32
    %116 = vector.broadcast %cst_60 : f32 to vector<8x8xf32>
    %117 = arith.mulf %115, %116 : vector<8x8xf32>
    %cst_61 = arith.constant dense<0xFF800000> : vector<8xf32>
    %118 = vector.multi_reduction <maximumf>, %117, %cst_61 [1] : vector<8x8xf32> to vector<8xf32>
    %119 = vector.shape_cast %118 : vector<8xf32> to vector<8x1xf32>
    %120 = vector.broadcast %119 : vector<8x1xf32> to vector<8x8xf32>
    %121 = arith.subf %117, %120 : vector<8x8xf32>
    %122 = math.exp %121 : vector<8x8xf32>
    %cst_62 = arith.constant dense<0.000000e+00> : vector<8xf32>
    %123 = vector.multi_reduction <add>, %122, %cst_62 [1] : vector<8x8xf32> to vector<8xf32>
    %124 = vector.shape_cast %123 : vector<8xf32> to vector<8x1xf32>
    %125 = tpu.reciprocal %124 {approx = true} : vector<8x1xf32> -> vector<8x1xf32>
    %126 = vector.broadcast %125 : vector<8x1xf32> to vector<8x8xf32>
    %127 = arith.mulf %122, %126 : vector<8x8xf32>
    %128 = arith.truncf %127 : vector<8x8xf32> to vector<8x8xbf16>
    %cst_63 = arith.constant dense<0.000000e+00> : vector<8x16xf32>
    %129 = tpu.matmul %128, %112, %cst_63 {dimension_numbers = #tpu.dot_dimension_numbers<[1], [0], [0], [1], [0, 0, 1, 1], [], []>} : vector<8x8xbf16>, vector<8x16xbf16>, vector<8x16xf32> -> vector<8x16xf32>
    %130 = arith.truncf %129 : vector<8x16xf32> to vector<8x16xbf16>
    %131 = vector.extract_strided_slice %99 {offsets = [0, 0], sizes = [16, 32], strides = [1, 1]} : vector<32x32xbf16> to vector<16x32xbf16>
    %cst_64 = arith.constant dense<0.000000e+00> : vector<8x32xf32>
    %132 = tpu.matmul %130, %131, %cst_64 {dimension_numbers = #tpu.dot_dimension_numbers<[1], [0], [0], [1], [0, 0, 1, 1], [], []>} : vector<8x16xbf16>, vector<16x32xbf16>, vector<8x32xf32> -> vector<8x32xf32>
    %133 = arith.addf %106, %132 : vector<8x32xf32>
    %134 = vector.extract_strided_slice %103 {offsets = [0, 16], sizes = [8, 16], strides = [1, 1]} : vector<8x32xf32> to vector<8x16xf32>
    %135 = arith.truncf %134 : vector<8x16xf32> to vector<8x16xbf16>
    %136 = vector.extract_strided_slice %104 {offsets = [0, 16], sizes = [8, 16], strides = [1, 1]} : vector<8x32xf32> to vector<8x16xf32>
    %137 = arith.truncf %136 : vector<8x16xf32> to vector<8x16xbf16>
    %138 = vector.extract_strided_slice %105 {offsets = [0, 16], sizes = [8, 16], strides = [1, 1]} : vector<8x32xf32> to vector<8x16xf32>
    %139 = arith.truncf %138 : vector<8x16xf32> to vector<8x16xbf16>
    %cst_65 = arith.constant dense<0.000000e+00> : vector<8x8xf32>
    %140 = tpu.matmul %135, %137, %cst_65 {dimension_numbers = #tpu.dot_dimension_numbers<[1], [1], [0], [0], [0, 0, 1, 0], [], []>} : vector<8x16xbf16>, vector<8x16xbf16>, vector<8x8xf32> -> vector<8x8xf32>
    %141 = vector.broadcast %95 : vector<1x8xf32> to vector<8x8xf32>
    %142 = arith.addf %140, %141 : vector<8x8xf32>
    %cst_66 = arith.constant 1.250000e-01 : f32
    %143 = vector.broadcast %cst_66 : f32 to vector<8x8xf32>
    %144 = arith.mulf %142, %143 : vector<8x8xf32>
    %cst_67 = arith.constant dense<0xFF800000> : vector<8xf32>
    %145 = vector.multi_reduction <maximumf>, %144, %cst_67 [1] : vector<8x8xf32> to vector<8xf32>
    %146 = vector.shape_cast %145 : vector<8xf32> to vector<8x1xf32>
    %147 = vector.broadcast %146 : vector<8x1xf32> to vector<8x8xf32>
    %148 = arith.subf %144, %147 : vector<8x8xf32>
    %149 = math.exp %148 : vector<8x8xf32>
    %cst_68 = arith.constant dense<0.000000e+00> : vector<8xf32>
    %150 = vector.multi_reduction <add>, %149, %cst_68 [1] : vector<8x8xf32> to vector<8xf32>
    %151 = vector.shape_cast %150 : vector<8xf32> to vector<8x1xf32>
    %152 = tpu.reciprocal %151 {approx = true} : vector<8x1xf32> -> vector<8x1xf32>
    %153 = vector.broadcast %152 : vector<8x1xf32> to vector<8x8xf32>
    %154 = arith.mulf %149, %153 : vector<8x8xf32>
    %155 = arith.truncf %154 : vector<8x8xf32> to vector<8x8xbf16>
    %cst_69 = arith.constant dense<0.000000e+00> : vector<8x16xf32>
    %156 = tpu.matmul %155, %139, %cst_69 {dimension_numbers = #tpu.dot_dimension_numbers<[1], [0], [0], [1], [0, 0, 1, 1], [], []>} : vector<8x8xbf16>, vector<8x16xbf16>, vector<8x16xf32> -> vector<8x16xf32>
    %157 = arith.truncf %156 : vector<8x16xf32> to vector<8x16xbf16>
    %158 = vector.extract_strided_slice %99 {offsets = [16, 0], sizes = [16, 32], strides = [1, 1]} : vector<32x32xbf16> to vector<16x32xbf16>
    %cst_70 = arith.constant dense<0.000000e+00> : vector<8x32xf32>
    %159 = tpu.matmul %157, %158, %cst_70 {dimension_numbers = #tpu.dot_dimension_numbers<[1], [0], [0], [1], [0, 0, 1, 1], [], []>} : vector<8x16xbf16>, vector<16x32xbf16>, vector<8x32xf32> -> vector<8x32xf32>
    %160 = arith.addf %133, %159 : vector<8x32xf32>
    %161 = vector.broadcast %100 : vector<1x32xf32> to vector<8x32xf32>
    %162 = arith.addf %160, %161 : vector<8x32xf32>
    %163 = arith.addf %162, %91 : vector<8x32xf32>
    %c0_71 = arith.constant 0 : index
    %c0_72 = arith.constant 0 : index
    %164 = vector.load %arg17[%c0_71, %c0_72] : memref<1x32xf32, #tpu.memory_space<vmem>>, vector<1x32xf32>
    %c0_73 = arith.constant 0 : index
    %c0_74 = arith.constant 0 : index
    %165 = vector.load %arg18[%c0_73, %c0_74] : memref<1x32xf32, #tpu.memory_space<vmem>>, vector<1x32xf32>
    %cst_75 = arith.constant dense<0.000000e+00> : vector<8xf32>
    %166 = vector.multi_reduction <add>, %163, %cst_75 [1] : vector<8x32xf32> to vector<8xf32>
    %167 = vector.shape_cast %166 : vector<8xf32> to vector<8x1xf32>
    %cst_76 = arith.constant 3.200000e+01 : f32
    %168 = vector.broadcast %cst_76 : f32 to vector<8x1xf32>
    %169 = arith.divf %167, %168 : vector<8x1xf32>
    %170 = vector.broadcast %169 : vector<8x1xf32> to vector<8x32xf32>
    %171 = arith.subf %163, %170 : vector<8x32xf32>
    %172 = arith.mulf %171, %171 : vector<8x32xf32>
    %cst_77 = arith.constant dense<0.000000e+00> : vector<8xf32>
    %173 = vector.multi_reduction <add>, %172, %cst_77 [1] : vector<8x32xf32> to vector<8xf32>
    %174 = vector.shape_cast %173 : vector<8xf32> to vector<8x1xf32>
    %cst_78 = arith.constant 3.200000e+01 : f32
    %175 = vector.broadcast %cst_78 : f32 to vector<8x1xf32>
    %176 = arith.divf %174, %175 : vector<8x1xf32>
    %cst_79 = arith.constant 9.99999974E-6 : f32
    %177 = vector.broadcast %cst_79 : f32 to vector<8x1xf32>
    %178 = arith.addf %176, %177 : vector<8x1xf32>
    %179 = math.rsqrt %178 : vector<8x1xf32>
    %180 = vector.broadcast %179 : vector<8x1xf32> to vector<8x32xf32>
    %181 = arith.mulf %171, %180 : vector<8x32xf32>
    %182 = vector.broadcast %164 : vector<1x32xf32> to vector<8x32xf32>
    %183 = arith.mulf %181, %182 : vector<8x32xf32>
    %184 = vector.broadcast %165 : vector<1x32xf32> to vector<8x32xf32>
    %185 = arith.addf %183, %184 : vector<8x32xf32>
    %c0_80 = arith.constant 0 : index
    %c0_81 = arith.constant 0 : index
    %186 = vector.load %arg19[%c0_80, %c0_81] : memref<32x128xbf16, #tpu.memory_space<vmem>>, vector<32x128xbf16>
    %c0_82 = arith.constant 0 : index
    %c0_83 = arith.constant 0 : index
    %187 = vector.load %arg20[%c0_82, %c0_83] : memref<1x128xf32, #tpu.memory_space<vmem>>, vector<1x128xf32>
    %c0_84 = arith.constant 0 : index
    %c0_85 = arith.constant 0 : index
    %188 = vector.load %arg21[%c0_84, %c0_85] : memref<128x32xbf16, #tpu.memory_space<vmem>>, vector<128x32xbf16>
    %c0_86 = arith.constant 0 : index
    %c0_87 = arith.constant 0 : index
    %189 = vector.load %arg22[%c0_86, %c0_87] : memref<1x32xf32, #tpu.memory_space<vmem>>, vector<1x32xf32>
    %190 = arith.truncf %185 : vector<8x32xf32> to vector<8x32xbf16>
    %cst_88 = arith.constant dense<0.000000e+00> : vector<8x128xf32>
    %191 = tpu.matmul %190, %186, %cst_88 {dimension_numbers = #tpu.dot_dimension_numbers<[1], [0], [0], [1], [0, 0, 1, 1], [], []>} : vector<8x32xbf16>, vector<32x128xbf16>, vector<8x128xf32> -> vector<8x128xf32>
    %192 = vector.broadcast %187 : vector<1x128xf32> to vector<8x128xf32>
    %193 = arith.addf %191, %192 : vector<8x128xf32>
    %cst_89 = arith.constant 0.000000e+00 : f32
    %194 = vector.broadcast %cst_89 : f32 to vector<8x128xf32>
    %195 = arith.maximumf %193, %194 : vector<8x128xf32>
    %196 = arith.truncf %195 : vector<8x128xf32> to vector<8x128xbf16>
    %cst_90 = arith.constant dense<0.000000e+00> : vector<8x32xf32>
    %197 = tpu.matmul %196, %188, %cst_90 {dimension_numbers = #tpu.dot_dimension_numbers<[1], [0], [0], [1], [0, 0, 1, 1], [], []>} : vector<8x128xbf16>, vector<128x32xbf16>, vector<8x32xf32> -> vector<8x32xf32>
    %198 = vector.broadcast %189 : vector<1x32xf32> to vector<8x32xf32>
    %199 = arith.addf %197, %198 : vector<8x32xf32>
    %200 = arith.addf %199, %185 : vector<8x32xf32>
    %c0_91 = arith.constant 0 : index
    %c0_92 = arith.constant 0 : index
    %201 = vector.load %arg23[%c0_91, %c0_92] : memref<1x32xf32, #tpu.memory_space<vmem>>, vector<1x32xf32>
    %c0_93 = arith.constant 0 : index
    %c0_94 = arith.constant 0 : index
    %202 = vector.load %arg24[%c0_93, %c0_94] : memref<1x32xf32, #tpu.memory_space<vmem>>, vector<1x32xf32>
    %cst_95 = arith.constant dense<0.000000e+00> : vector<8xf32>
    %203 = vector.multi_reduction <add>, %200, %cst_95 [1] : vector<8x32xf32> to vector<8xf32>
    %204 = vector.shape_cast %203 : vector<8xf32> to vector<8x1xf32>
    %cst_96 = arith.constant 3.200000e+01 : f32
    %205 = vector.broadcast %cst_96 : f32 to vector<8x1xf32>
    %206 = arith.divf %204, %205 : vector<8x1xf32>
    %207 = vector.broadcast %206 : vector<8x1xf32> to vector<8x32xf32>
    %208 = arith.subf %200, %207 : vector<8x32xf32>
    %209 = arith.mulf %208, %208 : vector<8x32xf32>
    %cst_97 = arith.constant dense<0.000000e+00> : vector<8xf32>
    %210 = vector.multi_reduction <add>, %209, %cst_97 [1] : vector<8x32xf32> to vector<8xf32>
    %211 = vector.shape_cast %210 : vector<8xf32> to vector<8x1xf32>
    %cst_98 = arith.constant 3.200000e+01 : f32
    %212 = vector.broadcast %cst_98 : f32 to vector<8x1xf32>
    %213 = arith.divf %211, %212 : vector<8x1xf32>
    %cst_99 = arith.constant 9.99999974E-6 : f32
    %214 = vector.broadcast %cst_99 : f32 to vector<8x1xf32>
    %215 = arith.addf %213, %214 : vector<8x1xf32>
    %216 = math.rsqrt %215 : vector<8x1xf32>
    %217 = vector.broadcast %216 : vector<8x1xf32> to vector<8x32xf32>
    %218 = arith.mulf %208, %217 : vector<8x32xf32>
    %219 = vector.broadcast %201 : vector<1x32xf32> to vector<8x32xf32>
    %220 = arith.mulf %218, %219 : vector<8x32xf32>
    %221 = vector.broadcast %202 : vector<1x32xf32> to vector<8x32xf32>
    %222 = arith.addf %220, %221 : vector<8x32xf32>
    %c0_100 = arith.constant 0 : index
    %c0_101 = arith.constant 0 : index
    %c0_102 = arith.constant 0 : index
    %223 = vector.load %arg25[%c0_100, %c0_101, %c0_102] : memref<1x8x32xf32, #tpu.memory_space<vmem>>, vector<1x8x32xf32>
    %224 = vector.shape_cast %223 : vector<1x8x32xf32> to vector<8x32xf32>
    %225 = vector.shape_cast %222 : vector<8x32xf32> to vector<1x8x32xf32>
    tpu.vector_store %arg25[%c0_100, %c0_101, %c0_102], %225 {strides = array<i32>} : memref<1x8x32xf32, #tpu.memory_space<vmem>>, vector<1x8x32xf32>,
    return
  }
  func.func @transform_0(%arg0: i32) -> (i32, i32, i32) {
    %c0_i32 = arith.constant 0 : i32
    %c0_i32_0 = arith.constant 0 : i32
    %c0_i32_1 = arith.constant 0 : i32
    return %arg0, %c0_i32, %c0_i32_0 : i32, i32, i32
  }
  func.func @transform_1(%arg0: i32) -> (i32, i32, i32) {
    %c0_i32 = arith.constant 0 : i32
    %c0_i32_0 = arith.constant 0 : i32
    %c0_i32_1 = arith.constant 0 : i32
    return %arg0, %c0_i32, %c0_i32_0 : i32, i32, i32
  }
  func.func @transform_2(%arg0: i32) -> (i32, i32, i32) {
    %c0_i32 = arith.constant 0 : i32
    %c0_i32_0 = arith.constant 0 : i32
    %c0_i32_1 = arith.constant 0 : i32
    %c0_i32_2 = arith.constant 0 : i32
    return %c0_i32, %c0_i32_0, %c0_i32_1 : i32, i32, i32
  }
  func.func @transform_3(%arg0: i32) -> (i32, i32, i32) {
    %c0_i32 = arith.constant 0 : i32
    %c0_i32_0 = arith.constant 0 : i32
    %c0_i32_1 = arith.constant 0 : i32
    return %arg0, %c0_i32, %c0_i32_0 : i32, i32, i32
  }
  func.func @transform_4(%arg0: i32) -> (i32, i32) {
    %c0_i32 = arith.constant 0 : i32
    %c0_i32_0 = arith.constant 0 : i32
    %c0_i32_1 = arith.constant 0 : i32
    return %c0_i32, %c0_i32_0 : i32, i32
  }
  func.func @transform_5(%arg0: i32) -> (i32, i32) {
    %c0_i32 = arith.constant 0 : i32
    %c0_i32_0 = arith.constant 0 : i32
    %c0_i32_1 = arith.constant 0 : i32
    return %c0_i32, %c0_i32_0 : i32, i32
  }
  func.func @transform_6(%arg0: i32) -> (i32, i32) {
    %c0_i32 = arith.constant 0 : i32
    %c0_i32_0 = arith.constant 0 : i32
    %c0_i32_1 = arith.constant 0 : i32
    return %c0_i32, %c0_i32_0 : i32, i32
  }
  func.func @transform_7(%arg0: i32) -> (i32, i32) {
    %c0_i32 = arith.constant 0 : i32
    %c0_i32_0 = arith.constant 0 : i32
    %c0_i32_1 = arith.constant 0 : i32
    return %c0_i32, %c0_i32_0 : i32, i32
  }
  func.func @transform_8(%arg0: i32) -> (i32, i32) {
    %c0_i32 = arith.constant 0 : i32
    %c0_i32_0 = arith.constant 0 : i32
    %c0_i32_1 = arith.constant 0 : i32
    return %c0_i32, %c0_i32_0 : i32, i32
  }
  func.func @transform_9(%arg0: i32) -> (i32, i32) {
    %c0_i32 = arith.constant 0 : i32
    %c0_i32_0 = arith.constant 0 : i32
    %c0_i32_1 = arith.constant 0 : i32
    return %c0_i32, %c0_i32_0 : i32, i32
  }
  func.func @transform_10(%arg0: i32) -> (i32, i32) {
    %c0_i32 = arith.constant 0 : i32
    %c0_i32_0 = arith.constant 0 : i32
    %c0_i32_1 = arith.constant 0 : i32
    return %c0_i32, %c0_i32_0 : i32, i32
  }
  func.func @transform_11(%arg0: i32) -> (i32, i32) {
    %c0_i32 = arith.constant 0 : i32
    %c0_i32_0 = arith.constant 0 : i32
    %c0_i32_1 = arith.constant 0 : i32
    return %c0_i32, %c0_i32_0 : i32, i32
  }
  func.func @transform_12(%arg0: i32) -> (i32, i32) {
    %c0_i32 = arith.constant 0 : i32
    %c0_i32_0 = arith.constant 0 : i32
    %c0_i32_1 = arith.constant 0 : i32
    return %c0_i32, %c0_i32_0 : i32, i32
  }
  func.func @transform_13(%arg0: i32) -> (i32, i32) {
    %c0_i32 = arith.constant 0 : i32
    %c0_i32_0 = arith.constant 0 : i32
    %c0_i32_1 = arith.constant 0 : i32
    return %c0_i32, %c0_i32_0 : i32, i32
  }
  func.func @transform_14(%arg0: i32) -> (i32, i32) {
    %c0_i32 = arith.constant 0 : i32
    %c0_i32_0 = arith.constant 0 : i32
    %c0_i32_1 = arith.constant 0 : i32
    return %c0_i32, %c0_i32_0 : i32, i32
  }
  func.func @transform_15(%arg0: i32) -> (i32, i32) {
    %c0_i32 = arith.constant 0 : i32
    %c0_i32_0 = arith.constant 0 : i32
    %c0_i32_1 = arith.constant 0 : i32
    return %c0_i32, %c0_i32_0 : i32, i32
  }
  func.func @transform_16(%arg0: i32) -> (i32, i32) {
    %c0_i32 = arith.constant 0 : i32
    %c0_i32_0 = arith.constant 0 : i32
    %c0_i32_1 = arith.constant 0 : i32
    return %c0_i32, %c0_i32_0 : i32, i32
  }
  func.func @transform_17(%arg0: i32) -> (i32, i32) {
    %c0_i32 = arith.constant 0 : i32
    %c0_i32_0 = arith.constant 0 : i32
    %c0_i32_1 = arith.constant 0 : i32
    return %c0_i32, %c0_i32_0 : i32, i32
  }
  func.func @transform_18(%arg0: i32) -> (i32, i32) {
    %c0_i32 = arith.constant 0 : i32
    %c0_i32_0 = arith.constant 0 : i32
    %c0_i32_1 = arith.constant 0 : i32
    return %c0_i32, %c0_i32_0 : i32, i32
  }
  func.func @transform_19(%arg0: i32) -> (i32, i32) {
    %c0_i32 = arith.constant 0 : i32
    %c0_i32_0 = arith.constant 0 : i32
    %c0_i32_1 = arith.constant 0 : i32
    return %c0_i32, %c0_i32_0 : i32, i32
  }
  func.func @transform_20(%arg0: i32) -> (i32, i32) {
    %c0_i32 = arith.constant 0 : i32
    %c0_i32_0 = arith.constant 0 : i32
    %c0_i32_1 = arith.constant 0 : i32
    return %c0_i32, %c0_i32_0 : i32, i32
  }
  func.func @transform_21(%arg0: i32) -> (i32, i32) {
    %c0_i32 = arith.constant 0 : i32
    %c0_i32_0 = arith.constant 0 : i32
    %c0_i32_1 = arith.constant 0 : i32
    return %c0_i32, %c0_i32_0 : i32, i32
  }
  func.func @transform_22(%arg0: i32) -> (i32, i32) {
    %c0_i32 = arith.constant 0 : i32
    %c0_i32_0 = arith.constant 0 : i32
    %c0_i32_1 = arith.constant 0 : i32
    return %c0_i32, %c0_i32_0 : i32, i32
  }
  func.func @transform_23(%arg0: i32) -> (i32, i32) {
    %c0_i32 = arith.constant 0 : i32
    %c0_i32_0 = arith.constant 0 : i32
    %c0_i32_1 = arith.constant 0 : i32
    return %c0_i32, %c0_i32_0 : i32, i32
  }
  func.func @transform_24(%arg0: i32) -> (i32, i32, i32) {
    %c0_i32 = arith.constant 0 : i32
    %c0_i32_0 = arith.constant 0 : i32
    %c0_i32_1 = arith.constant 0 : i32
    return %arg0, %c0_i32, %c0_i32_0 : i32, i32, i32
  }
}

</mosaic_0001>

<llo_original>
// kernel: transformer_fwd.9
$region0: #{transformer_fwd.9}
  #allocation0 [shape = 'u32[]', space=smem, size = 0x4, offset = 0x4, fixed_abs, tag = 'smem constant byte address 0x4 - core index']
  #allocation1 [shape = 'u32[144,128]{1,0:T(1,128)}', space=vmem, size = 0x12000, scoped, tag = 'internal scratch']
  #allocation2 [shape = 'f32[16,128]{1,0:T(8,128)}', space=vmem, size = 0x2000, scoped, tag = 'scratch operand']
  %s0 = inlined_call_operand.vmem [shape: f32[16,32], index: 0, kind: input, shape index: {}]
  %s1 = inlined_call_operand.vmem [shape: bf16[32,128], index: 1, kind: input, shape index: {}]
  %s2 = inlined_call_operand.vmem [shape: f32[1,128], index: 2, kind: input, shape index: {}]
  %s3 = inlined_call_operand.vmem [shape: f32[16,128], index: 3, kind: output, shape index: {}]
  %s4 = sld [smem:[#allocation0]]
  $region30: #{transformer_fwd.9} parent=0
    _
  %s6 = ssub.s32 1, %s4
  %s7 = scalar_select 0, %s6, %s4
  // Predicated region
  $region2: #{transformer_fwd.9} parent=0 // pred_check
    _
  $region3: #{transformer_fwd.9} parent=0 // pred_check_branch
    %9 = sbr.rel (0) target = $region5
  $region4: #{transformer_fwd.9} parent=0 // pred_region
    _
  $region5: #{transformer_fwd.9} parent=0 // pred_fallthru
    _
  // Predicated region
  $region6: #{transformer_fwd.9} parent=0 // pred_check
    _
  $region7: #{transformer_fwd.9} parent=0 // pred_check_branch
    %11 = sbr.rel (0) target = $region9
  $region8: #{transformer_fwd.9} parent=0 // pred_region
    _
  $region9: #{transformer_fwd.9} parent=0 // pred_fallthru
    _
  // Predicated region
  $region10: #{transformer_fwd.9} parent=0 // pred_check
    _
  $region11: #{transformer_fwd.9} parent=0 // pred_check_branch
    %13 = sbr.rel (0) target = $region13
  $region12: #{transformer_fwd.9} parent=0 // pred_region
    _
  $region13: #{transformer_fwd.9} parent=0 // pred_fallthru
    _
  %p15 = scmp.eq.s32.totalorder 0, 0
  // Predicated region
  $region14: #{transformer_fwd.9} parent=0 // pred_check
    %p16 = pneg %p15
  $region15: #{transformer_fwd.9} parent=0 // pred_check_branch
    %18 = sbr.rel (%p16) target = $region17
  $region16: #{transformer_fwd.9} parent=0 // pred_region
    %19 = vst [vmem:[#allocation2] sm:$0xff] 0.0
    %20 = vst [vmem:[#allocation2 + $0x8] sm:$0xff] 0.0
  $region17: #{transformer_fwd.9} parent=0 // pred_fallthru
    _
  %v21 = vld [vmem:[#allocation2] sm:$0xff]
  %v22 = vld [vmem:[#allocation2 + $0x8] sm:$0xff]
  %v23 = vld [vmem:[%s0] sm:$0xff]
  %v24 = vld [vmem:[%s0 + $0x8] sm:$0xff]
  %v25 = vpack.c.bf16 %v24, %v23
  %v26 = vld [vmem:[%s1] sm:$0xf]
  %v27 = vld [vmem:[%s1 + $0x4] sm:$0xf]
  %v28 = vld [vmem:[%s1 + $0x8] sm:$0xf]
  %v29 = vld [vmem:[%s1 + $0xc] sm:$0xf]
  %v34 = vunpack.c.l.b16 %v26
  %v35 = vunpack.c.l.b16 %v27
  %v36 = vunpack.c.l.b16 %v28
  %v37 = vunpack.c.l.b16 %v29
  %v38 = vpack.c.b16 %v35, %v34
  %v39 = vpack.c.b16 %v37, %v36
  %vm42 = vcmask 261120
  %v44 = vsel %vm42, %v25, 0
  %46 = vmatprep.subr.bf16.mxu0 0
  %47 = vmatpush1.bf16.msra.mxu0 %v38
  %48 = vmatprep.subr.bf16.mxu0 0
  %49 = vmatpush1.bf16.msra.mxu0 %v39
  %50 = vmatprep.subr.bf16.mxu0 0
  %51 = vmatpush1.bf16.msra.mxu0 0
  %52 = vmatprep.subr.bf16.mxu0 0
  %53 = vmatpush1.bf16.msra.mxu0 0
  %54 = vmatprep.subr.bf16.mxu0 0
  %55 = vmatpush1.bf16.msra.mxu0 0
  %56 = vmatprep.subr.bf16.mxu0 0
  %57 = vmatpush1.bf16.msra.mxu0 0
  %58 = vmatprep.subr.bf16.mxu0 0
  %59 = vmatpush1.bf16.msra.mxu0 0
  %60 = vmatprep.subr.bf16.mxu0 0
  %61 = vmatpush1.bf16.msra.mxu0 0
  %62 = vmatprep.subr.bf16.mxu0 0
  %63 = vmatpush1.bf16.msra.mxu0 0
  %64 = vmatprep.subr.bf16.mxu0 0
  %65 = vmatpush1.bf16.msra.mxu0 0
  %66 = vmatprep.subr.bf16.mxu0 0
  %67 = vmatpush1.bf16.msra.mxu0 0
  %68 = vmatprep.subr.bf16.mxu0 0
  %69 = vmatpush1.bf16.msra.mxu0 0
  %70 = vmatprep.subr.bf16.mxu0 0
  %71 = vmatpush1.bf16.msra.mxu0 0
  %72 = vmatprep.subr.bf16.mxu0 0
  %73 = vmatpush1.bf16.msra.mxu0 0
  %74 = vmatprep.subr.bf16.mxu0 0
  %75 = vmatpush1.bf16.msra.mxu0 0
  %76 = vmatprep.subr.bf16.mxu0 0
  %77 = vmatpush1.bf16.msra.mxu0 0
  %78 = vmatprep.mubr.bf16.mxu0 0
  %79 = vmatmul.mubr.bf16.gmra.mrb[0].mxu0 %v44
  %v80 = vpop.f32.mrb[0].mxu0
  %v81 = vadd.f32 0.0, %v80
  %v82 = vpop.f32.mrb[0].mxu0
  %v83 = vpop.f32.mrb[0].mxu0
  %v84 = vadd.f32 0.0, %v83
  %v85 = vpop.f32.mrb[0].mxu0
  %86 = vdwg.mxu0
  %v87 = vadd.f32 %v21, %v81
  %v88 = vadd.f32 %v22, %v84
  %89 = vst [vmem:[#allocation2] sm:$0xff] %v87
  %90 = vst [vmem:[#allocation2 + $0x8] sm:$0xff] %v88
  // Predicated region
  $region18: #{transformer_fwd.9} parent=0 // pred_check
    %p91 = pneg %p15
  $region19: #{transformer_fwd.9} parent=0 // pred_check_branch
    %93 = sbr.rel (%p91) target = $region21
  $region20: #{transformer_fwd.9} parent=0 // pred_region
    %v94 = vld [vmem:[#allocation2] sm:$0xff]
    %v95 = vld [vmem:[#allocation2 + $0x8] sm:$0xff]
    %v96 = vld [vmem:[%s2] sm:$0x1]
    %v98 = vlaneseq
    %v99 = vshrl.u32 %v98, 7
    %v100 = vsub.s32 0, %v99
    %v101 = vrot.slane %v96, %v100
    %v103 = vadd.f32 %v94, %v101
    %v104 = vadd.f32 %v95, %v101
    %105 = vst [vmem:[%s3] sm:$0xff] %v103
    %106 = vst [vmem:[%s3 + $0x8] sm:$0xff] %v104
  $region21: #{transformer_fwd.9} parent=0 // pred_fallthru
    _
  // Predicated region
  $region22: #{transformer_fwd.9} parent=0 // pred_check
    _
  $region23: #{transformer_fwd.9} parent=0 // pred_check_branch
    %108 = sbr.rel (0) target = $region25
  $region24: #{transformer_fwd.9} parent=0 // pred_region
    _
  $region25: #{transformer_fwd.9} parent=0 // pred_fallthru
    _
  // Predicated region
  $region26: #{transformer_fwd.9} parent=0 // pred_check
    _
  $region27: #{transformer_fwd.9} parent=0 // pred_check_branch
    %110 = sbr.rel (0) target = $region29
  $region28: #{transformer_fwd.9} parent=0 // pred_region
    _
  $region29: #{transformer_fwd.9} parent=0 // pred_fallthru
    _

// kernel: transformer_fwd.5
$region0: #{transformer_fwd.5}
  #allocation0 [shape = 'u32[]', space=smem, size = 0x4, offset = 0x4, fixed_abs, tag = 'smem constant byte address 0x4 - core index']
  #allocation1 [shape = 'u32[144,128]{1,0:T(1,128)}', space=vmem, size = 0x12000, scoped, tag = 'internal scratch']
  %s0 = inlined_call_operand.vmem [shape: f32[2,8,32], index: 0, kind: input, shape index: {}]
  %s1 = inlined_call_operand.vmem [shape: f32[2,1,8], index: 1, kind: input, shape index: {}]
  %s2 = inlined_call_operand.vmem [shape: bf16[32,32], index: 2, kind: input, shape index: {}]
  %s3 = inlined_call_operand.vmem [shape: bf16[32,32], index: 3, kind: input, shape index: {}]
  %s4 = inlined_call_operand.vmem [shape: bf16[32,32], index: 4, kind: input, shape index: {}]
  %s5 = inlined_call_operand.vmem [shape: bf16[32,32], index: 5, kind: input, shape index: {}]
  %s6 = inlined_call_operand.vmem [shape: f32[1,32], index: 6, kind: input, shape index: {}]
  %s7 = inlined_call_operand.vmem [shape: f32[1,32], index: 7, kind: input, shape index: {}]
  %s8 = inlined_call_operand.vmem [shape: f32[1,32], index: 8, kind: input, shape index: {}]
  %s9 = inlined_call_operand.vmem [shape: bf16[32,128], index: 9, kind: input, shape index: {}]
  %s10 = inlined_call_operand.vmem [shape: f32[1,128], index: 10, kind: input, shape index: {}]
  %s11 = inlined_call_operand.vmem [shape: bf16[128,32], index: 11, kind: input, shape index: {}]
  %s12 = inlined_call_operand.vmem [shape: f32[1,32], index: 12, kind: input, shape index: {}]
  %s13 = inlined_call_operand.vmem [shape: f32[1,32], index: 13, kind: input, shape index: {}]
  %s14 = inlined_call_operand.vmem [shape: f32[1,32], index: 14, kind: input, shape index: {}]
  %s15 = inlined_call_operand.vmem [shape: f32[2,8,32], index: 15, kind: output, shape index: {}]
  %s16 = sld [smem:[#allocation0]]
  $region93: #{transformer_fwd.5} parent=0
    _
  %s18 = ssub.s32 1, %s16
  %s19 = scalar_select 0, %s18, %s16
  loop: start=0, step=1, limit=4
  $region2: #{transformer_fwd.5} parent=0 // loop_pre_header
    _
  $region3: #{transformer_fwd.5} parent=0 // loop_header
    %s21 = sphi 0, %s25
    %p22 = scmp.ge.s32.totalorder %s21, 4
    %s31 = sphi 0, %s33
    %s34 = sphi 0, %s31
    %s35 = sphi 0, %s34
    %s51 = sphi 0, %s35
    %s57 = sphi 0, %s59
    %s60 = sphi 0, %s57
    %s61 = sphi 0, %s60
    %s77 = sphi 0, %s61
    %s81 = sphi 0, %s81
    %s83 = sphi 0, %s81
    %s84 = sphi 0, %s83
    %s98 = sphi 0, %s84
    %s102 = sphi 0, %s102
    %s104 = sphi 0, %s102
    %s105 = sphi 0, %s104
    %s119 = sphi 0, %s105
    %s123 = sphi 0, %s123
    %s125 = sphi 0, %s123
    %s126 = sphi 0, %s125
    %s140 = sphi 0, %s126
    %s144 = sphi 0, %s144
    %s146 = sphi 0, %s144
    %s147 = sphi 0, %s146
    %s161 = sphi 0, %s147
    %s165 = sphi 0, %s165
    %s167 = sphi 0, %s165
    %s168 = sphi 0, %s167
    %s182 = sphi 0, %s168
    %s186 = sphi 0, %s186
    %s188 = sphi 0, %s186
    %s189 = sphi 0, %s188
    %s203 = sphi 0, %s189
    %s207 = sphi 0, %s207
    %s209 = sphi 0, %s207
    %s210 = sphi 0, %s209
    %s224 = sphi 0, %s210
    %s228 = sphi 0, %s228
    %s230 = sphi 0, %s228
    %s231 = sphi 0, %s230
    %s245 = sphi 0, %s231
    %s249 = sphi 0, %s249
    %s251 = sphi 0, %s249
    %s252 = sphi 0, %s251
    %s266 = sphi 0, %s252
    %s270 = sphi 0, %s270
    %s272 = sphi 0, %s270
    %s273 = sphi 0, %s272
    %s287 = sphi 0, %s273
    %s291 = sphi 0, %s291
    %s293 = sphi 0, %s291
    %s294 = sphi 0, %s293
    %s308 = sphi 0, %s294
    %s312 = sphi 0, %s312
    %s314 = sphi 0, %s312
    %s315 = sphi 0, %s314
    %s329 = sphi 0, %s315
    %s333 = sphi 0, %s333
    %s335 = sphi 0, %s333
    %s336 = sphi 0, %s335
    %s350 = sphi 0, %s336
    %s356 = sphi 0, %s358
    %s359 = sphi 0, %s356
    %s360 = sphi 0, %s359
    %s376 = sphi 0, %s360
  $region4: #{transformer_fwd.5} parent=0 // loop_header_branch
    %24 = sbr.rel (%p22) target = $region8
  $region5: #{transformer_fwd.5} parent=0 // loop_body
    %s26 = ssub.s32 %s21, 1
    %s27 = ssub.s32 %s21, 2
    %s28 = sadd.s32 %s21, 1
    %s29 = ssub.s32 %s21, %s28
    %p30 = scmp.eq.s32.totalorder %s29, 0
    %s32 = sadd.s32 %s31, 1
    %s33 = scalar_select %p30, %s31, %s32
    %p36 = pneg %p30
    %p37 = scmp.eq.s32.totalorder %s21, 1
    %p38 = por %p36, %p37
    %p39 = scmp.ne.s32.totalorder %s31, %s34
    %p40 = scmp.eq.s32.totalorder %s21, 0
    %p41 = por %p39, %p40
    %p42 = scmp.ne.s32.totalorder %s31, %s34
    %p43 = scmp.eq.s32.totalorder %s26, 1
    %p44 = por %p42, %p43
    %p45 = scmp.ne.s32.totalorder %s34, %s35
    %p46 = scmp.eq.s32.totalorder %s26, 0
    %p47 = por %p45, %p46
    %p48 = scmp.ne.s32.totalorder %s34, %s35
    %p49 = scmp.eq.s32.totalorder %s27, 1
    %p50 = por %p48, %p49
    %p52 = scmp.ne.s32.totalorder %s35, %s51
    %p53 = scmp.eq.s32.totalorder %s27, 0
    %p54 = por %p52, %p53
    %s55 = ssub.s32 %s21, %s28
    %p56 = scmp.eq.s32.totalorder %s55, 0
    %s58 = sadd.s32 %s57, 1
    %s59 = scalar_select %p56, %s57, %s58
    %p62 = pneg %p56
    %p63 = scmp.eq.s32.totalorder %s21, 1
    %p64 = por %p62, %p63
    %p65 = scmp.ne.s32.totalorder %s57, %s60
    %p66 = scmp.eq.s32.totalorder %s21, 0
    %p67 = por %p65, %p66
    %p68 = scmp.ne.s32.totalorder %s57, %s60
    %p69 = scmp.eq.s32.totalorder %s26, 1
    %p70 = por %p68, %p69
    %p71 = scmp.ne.s32.totalorder %s60, %s61
    %p72 = scmp.eq.s32.totalorder %s26, 0
    %p73 = por %p71, %p72
    %p74 = scmp.ne.s32.totalorder %s60, %s61
    %p75 = scmp.eq.s32.totalorder %s27, 1
    %p76 = por %p74, %p75
    %p78 = scmp.ne.s32.totalorder %s61, %s77
    %p79 = scmp.eq.s32.totalorder %s27, 0
    %p80 = por %p78, %p79
    %s82 = sadd.s32 %s81, 1
    %p85 = scmp.eq.s32.totalorder %s21, 1
    %p86 = scmp.ne.s32.totalorder %s81, %s83
    %p87 = scmp.eq.s32.totalorder %s21, 0
    %p88 = por %p86, %p87
    %p89 = scmp.ne.s32.totalorder %s81, %s83
    %p90 = scmp.eq.s32.totalorder %s26, 1
    %p91 = por %p89, %p90
    %p92 = scmp.ne.s32.totalorder %s83, %s84
    %p93 = scmp.eq.s32.totalorder %s26, 0
    %p94 = por %p92, %p93
    %p95 = scmp.ne.s32.totalorder %s83, %s84
    %p96 = scmp.eq.s32.totalorder %s27, 1
    %p97 = por %p95, %p96
    %p99 = scmp.ne.s32.totalorder %s84, %s98
    %p100 = scmp.eq.s32.totalorder %s27, 0
    %p101 = por %p99, %p100
    %s103 = sadd.s32 %s102, 1
    %p106 = scmp.eq.s32.totalorder %s21, 1
    %p107 = scmp.ne.s32.totalorder %s102, %s104
    %p108 = scmp.eq.s32.totalorder %s21, 0
    %p109 = por %p107, %p108
    %p110 = scmp.ne.s32.totalorder %s102, %s104
    %p111 = scmp.eq.s32.totalorder %s26, 1
    %p112 = por %p110, %p111
    %p113 = scmp.ne.s32.totalorder %s104, %s105
    %p114 = scmp.eq.s32.totalorder %s26, 0
    %p115 = por %p113, %p114
    %p116 = scmp.ne.s32.totalorder %s104, %s105
    %p117 = scmp.eq.s32.totalorder %s27, 1
    %p118 = por %p116, %p117
    %p120 = scmp.ne.s32.totalorder %s105, %s119
    %p121 = scmp.eq.s32.totalorder %s27, 0
    %p122 = por %p120, %p121
    %s124 = sadd.s32 %s123, 1
    %p127 = scmp.eq.s32.totalorder %s21, 1
    %p128 = scmp.ne.s32.totalorder %s123, %s125
    %p129 = scmp.eq.s32.totalorder %s21, 0
    %p130 = por %p128, %p129
    %p131 = scmp.ne.s32.totalorder %s123, %s125
    %p132 = scmp.eq.s32.totalorder %s26, 1
    %p133 = por %p131, %p132
    %p134 = scmp.ne.s32.totalorder %s125, %s126
    %p135 = scmp.eq.s32.totalorder %s26, 0
    %p136 = por %p134, %p135
    %p137 = scmp.ne.s32.totalorder %s125, %s126
    %p138 = scmp.eq.s32.totalorder %s27, 1
    %p139 = por %p137, %p138
    %p141 = scmp.ne.s32.totalorder %s126, %s140
    %p142 = scmp.eq.s32.totalorder %s27, 0
    %p143 = por %p141, %p142
    %s145 = sadd.s32 %s144, 1
    %p148 = scmp.eq.s32.totalorder %s21, 1
    %p149 = scmp.ne.s32.totalorder %s144, %s146
    %p150 = scmp.eq.s32.totalorder %s21, 0
    %p151 = por %p149, %p150
    %p152 = scmp.ne.s32.totalorder %s144, %s146
    %p153 = scmp.eq.s32.totalorder %s26, 1
    %p154 = por %p152, %p153
    %p155 = scmp.ne.s32.totalorder %s146, %s147
    %p156 = scmp.eq.s32.totalorder %s26, 0
    %p157 = por %p155, %p156
    %p158 = scmp.ne.s32.totalorder %s146, %s147
    %p159 = scmp.eq.s32.totalorder %s27, 1
    %p160 = por %p158, %p159
    %p162 = scmp.ne.s32.totalorder %s147, %s161
    %p163 = scmp.eq.s32.totalorder %s27, 0
    %p164 = por %p162, %p163
    %s166 = sadd.s32 %s165, 1
    %p169 = scmp.eq.s32.totalorder %s21, 1
    %p170 = scmp.ne.s32.totalorder %s165, %s167
    %p171 = scmp.eq.s32.totalorder %s21, 0
    %p172 = por %p170, %p171
    %p173 = scmp.ne.s32.totalorder %s165, %s167
    %p174 = scmp.eq.s32.totalorder %s26, 1
    %p175 = por %p173, %p174
    %p176 = scmp.ne.s32.totalorder %s167, %s168
    %p177 = scmp.eq.s32.totalorder %s26, 0
    %p178 = por %p176, %p177
    %p179 = scmp.ne.s32.totalorder %s167, %s168
    %p180 = scmp.eq.s32.totalorder %s27, 1
    %p181 = por %p179, %p180
    %p183 = scmp.ne.s32.totalorder %s168, %s182
    %p184 = scmp.eq.s32.totalorder %s27, 0
    %p185 = por %p183, %p184
    %s187 = sadd.s32 %s186, 1
    %p190 = scmp.eq.s32.totalorder %s21, 1
    %p191 = scmp.ne.s32.totalorder %s186, %s188
    %p192 = scmp.eq.s32.totalorder %s21, 0
    %p193 = por %p191, %p192
    %p194 = scmp.ne.s32.totalorder %s186, %s188
    %p195 = scmp.eq.s32.totalorder %s26, 1
    %p196 = por %p194, %p195
    %p197 = scmp.ne.s32.totalorder %s188, %s189
    %p198 = scmp.eq.s32.totalorder %s26, 0
    %p199 = por %p197, %p198
    %p200 = scmp.ne.s32.totalorder %s188, %s189
    %p201 = scmp.eq.s32.totalorder %s27, 1
    %p202 = por %p200, %p201
    %p204 = scmp.ne.s32.totalorder %s189, %s203
    %p205 = scmp.eq.s32.totalorder %s27, 0
    %p206 = por %p204, %p205
    %s208 = sadd.s32 %s207, 1
    %p211 = scmp.eq.s32.totalorder %s21, 1
    %p212 = scmp.ne.s32.totalorder %s207, %s209
    %p213 = scmp.eq.s32.totalorder %s21, 0
    %p214 = por %p212, %p213
    %p215 = scmp.ne.s32.totalorder %s207, %s209
    %p216 = scmp.eq.s32.totalorder %s26, 1
    %p217 = por %p215, %p216
    %p218 = scmp.ne.s32.totalorder %s209, %s210
    %p219 = scmp.eq.s32.totalorder %s26, 0
    %p220 = por %p218, %p219
    %p221 = scmp.ne.s32.totalorder %s209, %s210
    %p222 = scmp.eq.s32.totalorder %s27, 1
    %p223 = por %p221, %p222
    %p225 = scmp.ne.s32.totalorder %s210, %s224
    %p226 = scmp.eq.s32.totalorder %s27, 0
    %p227 = por %p225, %p226
    %s229 = sadd.s32 %s228, 1
    %p232 = scmp.eq.s32.totalorder %s21, 1
    %p233 = scmp.ne.s32.totalorder %s228, %s230
    %p234 = scmp.eq.s32.totalorder %s21, 0
    %p235 = por %p233, %p234
    %p236 = scmp.ne.s32.totalorder %s228, %s230
    %p237 = scmp.eq.s32.totalorder %s26, 1
    %p238 = por %p236, %p237
    %p239 = scmp.ne.s32.totalorder %s230, %s231
    %p240 = scmp.eq.s32.totalorder %s26, 0
    %p241 = por %p239, %p240
    %p242 = scmp.ne.s32.totalorder %s230, %s231
    %p243 = scmp.eq.s32.totalorder %s27, 1
    %p244 = por %p242, %p243
    %p246 = scmp.ne.s32.totalorder %s231, %s245
    %p247 = scmp.eq.s32.totalorder %s27, 0
    %p248 = por %p246, %p247
    %s250 = sadd.s32 %s249, 1
    %p253 = scmp.eq.s32.totalorder %s21, 1
    %p254 = scmp.ne.s32.totalorder %s249, %s251
    %p255 = scmp.eq.s32.totalorder %s21, 0
    %p256 = por %p254, %p255
    %p257 = scmp.ne.s32.totalorder %s249, %s251
    %p258 = scmp.eq.s32.totalorder %s26, 1
    %p259 = por %p257, %p258
    %p260 = scmp.ne.s32.totalorder %s251, %s252
    %p261 = scmp.eq.s32.totalorder %s26, 0
    %p262 = por %p260, %p261
    %p263 = scmp.ne.s32.totalorder %s251, %s252
    %p264 = scmp.eq.s32.totalorder %s27, 1
    %p265 = por %p263, %p264
    %p267 = scmp.ne.s32.totalorder %s252, %s266
    %p268 = scmp.eq.s32.totalorder %s27, 0
    %p269 = por %p267, %p268
    %s271 = sadd.s32 %s270, 1
    %p274 = scmp.eq.s32.totalorder %s21, 1
    %p275 = scmp.ne.s32.totalorder %s270, %s272
    %p276 = scmp.eq.s32.totalorder %s21, 0
    %p277 = por %p275, %p276
    %p278 = scmp.ne.s32.totalorder %s270, %s272
    %p279 = scmp.eq.s32.totalorder %s26, 1
    %p280 = por %p278, %p279
    %p281 = scmp.ne.s32.totalorder %s272, %s273
    %p282 = scmp.eq.s32.totalorder %s26, 0
    %p283 = por %p281, %p282
    %p284 = scmp.ne.s32.totalorder %s272, %s273
    %p285 = scmp.eq.s32.totalorder %s27, 1
    %p286 = por %p284, %p285
    %p288 = scmp.ne.s32.totalorder %s273, %s287
    %p289 = scmp.eq.s32.totalorder %s27, 0
    %p290 = por %p288, %p289
    %s292 = sadd.s32 %s291, 1
    %p295 = scmp.eq.s32.totalorder %s21, 1
    %p296 = scmp.ne.s32.totalorder %s291, %s293
    %p297 = scmp.eq.s32.totalorder %s21, 0
    %p298 = por %p296, %p297
    %p299 = scmp.ne.s32.totalorder %s291, %s293
    %p300 = scmp.eq.s32.totalorder %s26, 1
    %p301 = por %p299, %p300
    %p302 = scmp.ne.s32.totalorder %s293, %s294
    %p303 = scmp.eq.s32.totalorder %s26, 0
    %p304 = por %p302, %p303
    %p305 = scmp.ne.s32.totalorder %s293, %s294
    %p306 = scmp.eq.s32.totalorder %s27, 1
    %p307 = por %p305, %p306
    %p309 = scmp.ne.s32.totalorder %s294, %s308
    %p310 = scmp.eq.s32.totalorder %s27, 0
    %p311 = por %p309, %p310
    %s313 = sadd.s32 %s312, 1
    %p316 = scmp.eq.s32.totalorder %s21, 1
    %p317 = scmp.ne.s32.totalorder %s312, %s314
    %p318 = scmp.eq.s32.totalorder %s21, 0
    %p319 = por %p317, %p318
    %p320 = scmp.ne.s32.totalorder %s312, %s314
    %p321 = scmp.eq.s32.totalorder %s26, 1
    %p322 = por %p320, %p321
    %p323 = scmp.ne.s32.totalorder %s314, %s315
    %p324 = scmp.eq.s32.totalorder %s26, 0
    %p325 = por %p323, %p324
    %p326 = scmp.ne.s32.totalorder %s314, %s315
    %p327 = scmp.eq.s32.totalorder %s27, 1
    %p328 = por %p326, %p327
    %p330 = scmp.ne.s32.totalorder %s315, %s329
    %p331 = scmp.eq.s32.totalorder %s27, 0
    %p332 = por %p330, %p331
    %s334 = sadd.s32 %s333, 1
    %p337 = scmp.eq.s32.totalorder %s21, 1
    %p338 = scmp.ne.s32.totalorder %s333, %s335
    %p339 = scmp.eq.s32.totalorder %s21, 0
    %p340 = por %p338, %p339
    %p341 = scmp.ne.s32.totalorder %s333, %s335
    %p342 = scmp.eq.s32.totalorder %s26, 1
    %p343 = por %p341, %p342
    %p344 = scmp.ne.s32.totalorder %s335, %s336
    %p345 = scmp.eq.s32.totalorder %s26, 0
    %p346 = por %p344, %p345
    %p347 = scmp.ne.s32.totalorder %s335, %s336
    %p348 = scmp.eq.s32.totalorder %s27, 1
    %p349 = por %p347, %p348
    %p351 = scmp.ne.s32.totalorder %s336, %s350
    %p352 = scmp.eq.s32.totalorder %s27, 0
    %p353 = por %p351, %p352
    %s354 = ssub.s32 %s21, %s28
    %p355 = scmp.eq.s32.totalorder %s354, 0
    %s357 = sadd.s32 %s356, 1
    %s358 = scalar_select %p355, %s356, %s357
    %p361 = pneg %p355
    %p362 = scmp.eq.s32.totalorder %s21, 1
    %p363 = por %p361, %p362
    %p364 = scmp.ne.s32.totalorder %s356, %s359
    %p365 = scmp.eq.s32.totalorder %s21, 0
    %p366 = por %p364, %p365
    %p367 = scmp.ne.s32.totalorder %s356, %s359
    %p368 = scmp.eq.s32.totalorder %s26, 1
    %p369 = por %p367, %p368
    %p370 = scmp.ne.s32.totalorder %s359, %s360
    %p371 = scmp.eq.s32.totalorder %s26, 0
    %p372 = por %p370, %p371
    %p373 = scmp.ne.s32.totalorder %s359, %s360
    %p374 = scmp.eq.s32.totalorder %s27, 1
    %p375 = por %p373, %p374
    %p377 = scmp.ne.s32.totalorder %s360, %s376
    %p378 = scmp.eq.s32.totalorder %s27, 0
    %p379 = por %p377, %p378
    %p380 = scmp.le.s32.totalorder 1, %s21
    %p381 = scmp.lt.s32.totalorder %s21, 3
    %p382 = pnand %p380, %p381
    %p383 = pneg %p382
    // Predicated region
    $region9: #{transformer_fwd.5} parent=5 // pred_check
      _
    $region10: #{transformer_fwd.5} parent=5 // pred_check_branch
      %385 = sbr.rel (%p382) target = $region12
    $region11: #{transformer_fwd.5} parent=5 // pred_region
      %s386 = ssub.s32 %s21, 1
      // Predicated region
      $region13: #{transformer_fwd.5} parent=11 // pred_check
        %p387 = pneg %p94
      $region14: #{transformer_fwd.5} parent=11 // pred_check_branch
        %389 = sbr.rel (%p387) target = $region16
      $region15: #{transformer_fwd.5} parent=11 // pred_region
        _
      $region16: #{transformer_fwd.5} parent=11 // pred_fallthru
        _
      // Predicated region
      $region17: #{transformer_fwd.5} parent=11 // pred_check
        %p390 = pneg %p115
      $region18: #{transformer_fwd.5} parent=11 // pred_check_branch
        %392 = sbr.rel (%p390) target = $region20
      $region19: #{transformer_fwd.5} parent=11 // pred_region
        _
      $region20: #{transformer_fwd.5} parent=11 // pred_fallthru
        _
      // Predicated region
      $region21: #{transformer_fwd.5} parent=11 // pred_check
        %p393 = pneg %p136
      $region22: #{transformer_fwd.5} parent=11 // pred_check_branch
        %395 = sbr.rel (%p393) target = $region24
      $region23: #{transformer_fwd.5} parent=11 // pred_region
        _
      $region24: #{transformer_fwd.5} parent=11 // pred_fallthru
        _
      // Predicated region
      $region25: #{transformer_fwd.5} parent=11 // pred_check
        %p396 = pneg %p157
      $region26: #{transformer_fwd.5} parent=11 // pred_check_branch
        %398 = sbr.rel (%p396) target = $region28
      $region27: #{transformer_fwd.5} parent=11 // pred_region
        _
      $region28: #{transformer_fwd.5} parent=11 // pred_fallthru
        _
      // Predicated region
      $region29: #{transformer_fwd.5} parent=11 // pred_check
        %p399 = pneg %p178
      $region30: #{transformer_fwd.5} parent=11 // pred_check_branch
        %401 = sbr.rel (%p399) target = $region32
      $region31: #{transformer_fwd.5} parent=11 // pred_region
        _
      $region32: #{transformer_fwd.5} parent=11 // pred_fallthru
        _
      // Predicated region
      $region33: #{transformer_fwd.5} parent=11 // pred_check
        %p402 = pneg %p199
      $region34: #{transformer_fwd.5} parent=11 // pred_check_branch
        %404 = sbr.rel (%p402) target = $region36
      $region35: #{transformer_fwd.5} parent=11 // pred_region
        _
      $region36: #{transformer_fwd.5} parent=11 // pred_fallthru
        _
      // Predicated region
      $region37: #{transformer_fwd.5} parent=11 // pred_check
        %p405 = pneg %p220
      $region38: #{transformer_fwd.5} parent=11 // pred_check_branch
        %407 = sbr.rel (%p405) target = $region40
      $region39: #{transformer_fwd.5} parent=11 // pred_region
        _
      $region40: #{transformer_fwd.5} parent=11 // pred_fallthru
        _
      // Predicated region
      $region41: #{transformer_fwd.5} parent=11 // pred_check
        %p408 = pneg %p241
      $region42: #{transformer_fwd.5} parent=11 // pred_check_branch
        %410 = sbr.rel (%p408) target = $region44
      $region43: #{transformer_fwd.5} parent=11 // pred_region
        _
      $region44: #{transformer_fwd.5} parent=11 // pred_fallthru
        _
      // Predicated region
      $region45: #{transformer_fwd.5} parent=11 // pred_check
        %p411 = pneg %p262
      $region46: #{transformer_fwd.5} parent=11 // pred_check_branch
        %413 = sbr.rel (%p411) target = $region48
      $region47: #{transformer_fwd.5} parent=11 // pred_region
        _
      $region48: #{transformer_fwd.5} parent=11 // pred_fallthru
        _
      // Predicated region
      $region49: #{transformer_fwd.5} parent=11 // pred_check
        %p414 = pneg %p283
      $region50: #{transformer_fwd.5} parent=11 // pred_check_branch
        %416 = sbr.rel (%p414) target = $region52
      $region51: #{transformer_fwd.5} parent=11 // pred_region
        _
      $region52: #{transformer_fwd.5} parent=11 // pred_fallthru
        _
      // Predicated region
      $region53: #{transformer_fwd.5} parent=11 // pred_check
        %p417 = pneg %p304
      $region54: #{transformer_fwd.5} parent=11 // pred_check_branch
        %419 = sbr.rel (%p417) target = $region56
      $region55: #{transformer_fwd.5} parent=11 // pred_region
        _
      $region56: #{transformer_fwd.5} parent=11 // pred_fallthru
        _
      // Predicated region
      $region57: #{transformer_fwd.5} parent=11 // pred_check
        %p420 = pneg %p325
      $region58: #{transformer_fwd.5} parent=11 // pred_check_branch
        %422 = sbr.rel (%p420) target = $region60
      $region59: #{transformer_fwd.5} parent=11 // pred_region
        _
      $region60: #{transformer_fwd.5} parent=11 // pred_fallthru
        _
      // Predicated region
      $region61: #{transformer_fwd.5} parent=11 // pred_check
        %p423 = pneg %p346
      $region62: #{transformer_fwd.5} parent=11 // pred_check_branch
        %425 = sbr.rel (%p423) target = $region64
      $region63: #{transformer_fwd.5} parent=11 // pred_region
        _
      $region64: #{transformer_fwd.5} parent=11 // pred_fallthru
        _
    $region12: #{transformer_fwd.5} parent=5 // pred_fallthru
      _
    %p426 = scmp.lt.s32.totalorder %s21, 2
    // Predicated region
    $region65: #{transformer_fwd.5} parent=5 // pred_check
      %p427 = pneg %p426
    $region66: #{transformer_fwd.5} parent=5 // pred_check_branch
      %429 = sbr.rel (%p427) target = $region68
    $region67: #{transformer_fwd.5} parent=5 // pred_region
      // Predicated region
      $region69: #{transformer_fwd.5} parent=67 // pred_check
        %p430 = pneg %p41
      $region70: #{transformer_fwd.5} parent=67 // pred_check_branch
        %432 = sbr.rel (%p430) target = $region72
      $region71: #{transformer_fwd.5} parent=67 // pred_region
        %p433 = scmp.lt.s32.totalorder %s21, 1
        %s434 = scalar_select %p433, %s21, 1
        %s435 = smul.addr %s434, 8
        %s436 = scalar_lea.vmem %s0, %s435
      $region72: #{transformer_fwd.5} parent=67 // pred_fallthru
        _
      // Predicated region
      $region73: #{transformer_fwd.5} parent=67 // pred_check
        %p437 = pneg %p67
      $region74: #{transformer_fwd.5} parent=67 // pred_check_branch
        %439 = sbr.rel (%p437) target = $region76
      $region75: #{transformer_fwd.5} parent=67 // pred_region
        %p440 = scmp.lt.s32.totalorder %s21, 1
        %s441 = scalar_select %p440, %s21, 1
        %s442 = scalar_lea.vmem %s1, %s441
      $region76: #{transformer_fwd.5} parent=67 // pred_fallthru
        _
    $region68: #{transformer_fwd.5} parent=5 // pred_fallthru
      _
    %p443 = scmp.le.s32.totalorder 1, %s21
    %p444 = scmp.lt.s32.totalorder %s21, 3
    %p445 = pnand %p443, %p444
    %p446 = pneg %p445
    // Predicated region
    $region77: #{transformer_fwd.5} parent=5 // pred_check
      _
    $region78: #{transformer_fwd.5} parent=5 // pred_check_branch
      %448 = sbr.rel (%p445) target = $region80
    $region79: #{transformer_fwd.5} parent=5 // pred_region
      %s449 = ssub.s32 %s21, 1
      %p450 = scmp.lt.s32.totalorder %s26, 1
      %s451 = scalar_select %p450, %s26, 1
      %s452 = smul.addr %s451, 8
      %s453 = scalar_lea.vmem %s0, %s452
      %p454 = pneg %p47
      %p455 = pneg %p44
      %p456 = scmp.lt.s32.totalorder %s26, 1
      %s457 = scalar_select %p456, %s26, 1
      %s458 = scalar_lea.vmem %s1, %s457
      %p459 = pneg %p73
      %p460 = pneg %p70
      %p461 = pneg %p94
      %p462 = pneg %p91
      %p463 = pneg %p115
      %p464 = pneg %p112
      %p465 = pneg %p136
      %p466 = pneg %p133
      %p467 = pneg %p157
      %p468 = pneg %p154
      %p469 = pneg %p178
      %p470 = pneg %p175
      %p471 = pneg %p199
      %p472 = pneg %p196
      %p473 = pneg %p220
      %p474 = pneg %p217
      %p475 = pneg %p241
      %p476 = pneg %p238
      %p477 = pneg %p262
      %p478 = pneg %p259
      %p479 = pneg %p283
      %p480 = pneg %p280
      %p481 = pneg %p304
      %p482 = pneg %p301
      %p483 = pneg %p325
      %p484 = pneg %p322
      %p485 = pneg %p346
      %p486 = pneg %p343
      %p487 = pneg %p372
      %p488 = pneg %p369
      %p489 = scmp.lt.s32.totalorder %s26, 1
      %s490 = scalar_select %p489, %s26, 1
      %s491 = smul.addr %s490, 8
      %s492 = scalar_lea.vmem %s15, %s491
      %p493 = scmp.lt.s32.totalorder %s26, 1
      %s494 = scalar_select %p493, %s26, 1
      %s495 = smul.addr %s494, 8
      %s496 = scalar_lea.vmem %s0, %s495
      %p497 = scmp.lt.s32.totalorder %s26, 1
      %s498 = scalar_select %p497, %s26, 1
      %s499 = scalar_lea.vmem %s1, %s498
      %p500 = scmp.lt.s32.totalorder %s26, 1
      %s501 = scalar_select %p500, %s26, 1
      %s502 = smul.addr %s501, 8
      %s503 = scalar_lea.vmem %s15, %s502
      %v505 = vld [vmem:[%s496] sm:$0xff]
      %v506 = vld [vmem:[%s499] sm:$0x1]
      %v507 = vld [vmem:[%s2] sm:$0xf]
      %v508 = vld [vmem:[%s2 + $0x4] sm:$0xf]
      %v509 = vld [vmem:[%s2 + $0x8] sm:$0xf]
      %v510 = vld [vmem:[%s2 + $0xc] sm:$0xf]
      %v511 = vld [vmem:[%s3] sm:$0xf]
      %v512 = vld [vmem:[%s3 + $0x4] sm:$0xf]
      %v513 = vld [vmem:[%s3 + $0x8] sm:$0xf]
      %v514 = vld [vmem:[%s3 + $0xc] sm:$0xf]
      %v515 = vld [vmem:[%s4] sm:$0xf]
      %v516 = vld [vmem:[%s4 + $0x4] sm:$0xf]
      %v517 = vld [vmem:[%s4 + $0x8] sm:$0xf]
      %v518 = vld [vmem:[%s4 + $0xc] sm:$0xf]
      %v519 = vld [vmem:[%s5] sm:$0xf]
      %v520 = vld [vmem:[%s5 + $0x4] sm:$0xf]
      %v521 = vld [vmem:[%s5 + $0x8] sm:$0xf]
      %v522 = vld [vmem:[%s5 + $0xc] sm:$0xf]
      %v523 = vld [vmem:[%s6] sm:$0x1]
      %v524 = vpack.c.bf16 %v505, %v505
      %v529 = vunpack.c.l.b16 %v507
      %v530 = vunpack.c.l.b16 %v508
      %v531 = vunpack.c.l.b16 %v509
      %v532 = vunpack.c.l.b16 %v510
      %v533 = vpack.c.b16 %v530, %v529
      %v534 = vpack.c.b16 %v532, %v531
      %vm537 = vcmask 261120
      %v539 = vsel %vm537, %v524, 0
      %541 = vmatprep.subr.bf16.mxu0 0
      %542 = vmatpush1.bf16.msra.mxu0 %v533
      %543 = vmatprep.subr.bf16.mxu0 0
      %544 = vmatpush1.bf16.msra.mxu0 %v534
      %545 = vmatprep.subr.bf16.mxu0 0
      %546 = vmatpush1.bf16.msra.mxu0 0
      %547 = vmatprep.subr.bf16.mxu0 0
      %548 = vmatpush1.bf16.msra.mxu0 0
      %549 = vmatprep.subr.bf16.mxu0 0
      %550 = vmatpush1.bf16.msra.mxu0 0
      %551 = vmatprep.subr.bf16.mxu0 0
      %552 = vmatpush1.bf16.msra.mxu0 0
      %553 = vmatprep.subr.bf16.mxu0 0
      %554 = vmatpush1.bf16.msra.mxu0 0
      %555 = vmatprep.subr.bf16.mxu0 0
      %556 = vmatpush1.bf16.msra.mxu0 0
      %557 = vmatprep.subr.bf16.mxu0 0
      %558 = vmatpush1.bf16.msra.mxu0 0
      %559 = vmatprep.subr.bf16.mxu0 0
      %560 = vmatpush1.bf16.msra.mxu0 0
      %561 = vmatprep.subr.bf16.mxu0 0
      %562 = vmatpush1.bf16.msra.mxu0 0
      %563 = vmatprep.subr.bf16.mxu0 0
      %564 = vmatpush1.bf16.msra.mxu0 0
      %565 = vmatprep.subr.bf16.mxu0 0
      %566 = vmatpush1.bf16.msra.mxu0 0
      %567 = vmatprep.subr.bf16.mxu0 0
      %568 = vmatpush1.bf16.msra.mxu0 0
      %569 = vmatprep.subr.bf16.mxu0 0
      %570 = vmatpush1.bf16.msra.mxu0 0
      %571 = vmatprep.subr.bf16.mxu0 0
      %572 = vmatpush1.bf16.msra.mxu0 0
      %573 = vmatprep.mubr.bf16.mxu0 0
      %574 = vmatmul.mubr.bf16.gmra.mrb[0].mxu0 %v539
      %v575 = vpop.f32.mrb[0].mxu0
      %v576 = vadd.f32 0.0, %v575
      %v577 = vpop.f32.mrb[0].mxu0
      %v578 = vpop.f32.mrb[0].mxu0
      %v579 = vpop.f32.mrb[0].mxu0
      %580 = vdwg.mxu0
      %v585 = vunpack.c.l.b16 %v511
      %v586 = vunpack.c.l.b16 %v512
      %v587 = vunpack.c.l.b16 %v513
      %v588 = vunpack.c.l.b16 %v514
      %v589 = vpack.c.b16 %v586, %v585
      %v590 = vpack.c.b16 %v588, %v587
      %593 = vmatprep.subr.bf16.mxu0 0
      %594 = vmatpush1.bf16.msra.mxu0 %v589
      %595 = vmatprep.subr.bf16.mxu0 0
      %596 = vmatpush1.bf16.msra.mxu0 %v590
      %597 = vmatprep.subr.bf16.mxu0 0
      %598 = vmatpush1.bf16.msra.mxu0 0
      %599 = vmatprep.subr.bf16.mxu0 0
      %600 = vmatpush1.bf16.msra.mxu0 0
      %601 = vmatprep.subr.bf16.mxu0 0
      %602 = vmatpush1.bf16.msra.mxu0 0
      %603 = vmatprep.subr.bf16.mxu0 0
      %604 = vmatpush1.bf16.msra.mxu0 0
      %605 = vmatprep.subr.bf16.mxu0 0
      %606 = vmatpush1.bf16.msra.mxu0 0
      %607 = vmatprep.subr.bf16.mxu0 0
      %608 = vmatpush1.bf16.msra.mxu0 0
      %609 = vmatprep.subr.bf16.mxu0 0
      %610 = vmatpush1.bf16.msra.mxu0 0
      %611 = vmatprep.subr.bf16.mxu0 0
      %612 = vmatpush1.bf16.msra.mxu0 0
      %613 = vmatprep.subr.bf16.mxu0 0
      %614 = vmatpush1.bf16.msra.mxu0 0
      %615 = vmatprep.subr.bf16.mxu0 0
      %616 = vmatpush1.bf16.msra.mxu0 0
      %617 = vmatprep.subr.bf16.mxu0 0
      %618 = vmatpush1.bf16.msra.mxu0 0
      %619 = vmatprep.subr.bf16.mxu0 0
      %620 = vmatpush1.bf16.msra.mxu0 0
      %621 = vmatprep.subr.bf16.mxu0 0
      %622 = vmatpush1.bf16.msra.mxu0 0
      %623 = vmatprep.subr.bf16.mxu0 0
      %624 = vmatpush1.bf16.msra.mxu0 0
      %625 = vmatprep.mubr.bf16.mxu0 0
      %626 = vmatmul.mubr.bf16.gmra.mrb[0].mxu0 %v539
      %v627 = vpop.f32.mrb[0].mxu0
      %v628 = vadd.f32 0.0, %v627
      %v629 = vpop.f32.mrb[0].mxu0
      %v630 = vpop.f32.mrb[0].mxu0
      %v631 = vpop.f32.mrb[0].mxu0
      %632 = vdwg.mxu0
      %v637 = vunpack.c.l.b16 %v515
      %v638 = vunpack.c.l.b16 %v516
      %v639 = vunpack.c.l.b16 %v517
      %v640 = vunpack.c.l.b16 %v518
      %v641 = vpack.c.b16 %v638, %v637
      %v642 = vpack.c.b16 %v640, %v639
      %645 = vmatprep.subr.bf16.mxu0 0
      %646 = vmatpush1.bf16.msra.mxu0 %v641
      %647 = vmatprep.subr.bf16.mxu0 0
      %648 = vmatpush1.bf16.msra.mxu0 %v642
      %649 = vmatprep.subr.bf16.mxu0 0
      %650 = vmatpush1.bf16.msra.mxu0 0
      %651 = vmatprep.subr.bf16.mxu0 0
      %652 = vmatpush1.bf16.msra.mxu0 0
      %653 = vmatprep.subr.bf16.mxu0 0
      %654 = vmatpush1.bf16.msra.mxu0 0
      %655 = vmatprep.subr.bf16.mxu0 0
      %656 = vmatpush1.bf16.msra.mxu0 0
      %657 = vmatprep.subr.bf16.mxu0 0
      %658 = vmatpush1.bf16.msra.mxu0 0
      %659 = vmatprep.subr.bf16.mxu0 0
      %660 = vmatpush1.bf16.msra.mxu0 0
      %661 = vmatprep.subr.bf16.mxu0 0
      %662 = vmatpush1.bf16.msra.mxu0 0
      %663 = vmatprep.subr.bf16.mxu0 0
      %664 = vmatpush1.bf16.msra.mxu0 0
      %665 = vmatprep.subr.bf16.mxu0 0
      %666 = vmatpush1.bf16.msra.mxu0 0
      %667 = vmatprep.subr.bf16.mxu0 0
      %668 = vmatpush1.bf16.msra.mxu0 0
      %669 = vmatprep.subr.bf16.mxu0 0
      %670 = vmatpush1.bf16.msra.mxu0 0
      %671 = vmatprep.subr.bf16.mxu0 0
      %672 = vmatpush1.bf16.msra.mxu0 0
      %673 = vmatprep.subr.bf16.mxu0 0
      %674 = vmatpush1.bf16.msra.mxu0 0
      %675 = vmatprep.subr.bf16.mxu0 0
      %676 = vmatpush1.bf16.msra.mxu0 0
      %677 = vmatprep.mubr.bf16.mxu0 0
      %678 = vmatmul.mubr.bf16.gmra.mrb[0].mxu0 %v539
      %v679 = vpop.f32.mrb[0].mxu0
      %v680 = vadd.f32 0.0, %v679
      %v681 = vpop.f32.mrb[0].mxu0
      %v682 = vpop.f32.mrb[0].mxu0
      %v683 = vpop.f32.mrb[0].mxu0
      %684 = vdwg.mxu0
      %v685 = vpack.c.bf16 %v576, %v576
      %v686 = vpack.c.bf16 %v628, %v628
      %v687 = vpack.c.bf16 %v680, %v680
      %v689 = vlaneseq
      %v690 = vshrl.u32 %v689, 7
      %v691 = vsub.s32 0, %v690
      %v692 = vrot.slane %v506, %v691
      %vm694 = vcmask 130048
      %v696 = vsel %vm694, %v685, 0
      %v699 = vsel %vm694, %v686, 0
      %701 = vmatprep.subr.bf16.mxu0 0
      %702 = vmatpush1.bf16.xpose.msra.mxu0 %v699
      %703 = vmatprep.subr.bf16.mxu0 0
      %704 = vmatpush1.bf16.xpose.msra.mxu0 0
      %705 = vmatprep.subr.bf16.mxu0 0
      %706 = vmatpush1.bf16.xpose.msra.mxu0 0
      %707 = vmatprep.subr.bf16.mxu0 0
      %708 = vmatpush1.bf16.xpose.msra.mxu0 0
      %709 = vmatprep.subr.bf16.mxu0 0
      %710 = vmatpush1.bf16.xpose.msra.mxu0 0
      %711 = vmatprep.subr.bf16.mxu0 0
      %712 = vmatpush1.bf16.xpose.msra.mxu0 0
      %713 = vmatprep.subr.bf16.mxu0 0
      %714 = vmatpush1.bf16.xpose.msra.mxu0 0
      %715 = vmatprep.subr.bf16.mxu0 0
      %716 = vmatpush1.bf16.xpose.msra.mxu0 0
      %717 = vmatprep.subr.bf16.mxu0 0
      %718 = vmatpush1.bf16.xpose.msra.mxu0 0
      %719 = vmatprep.subr.bf16.mxu0 0
      %720 = vmatpush1.bf16.xpose.msra.mxu0 0
      %721 = vmatprep.subr.bf16.mxu0 0
      %722 = vmatpush1.bf16.xpose.msra.mxu0 0
      %723 = vmatprep.subr.bf16.mxu0 0
      %724 = vmatpush1.bf16.xpose.msra.mxu0 0
      %725 = vmatprep.subr.bf16.mxu0 0
      %726 = vmatpush1.bf16.xpose.msra.mxu0 0
      %727 = vmatprep.subr.bf16.mxu0 0
      %728 = vmatpush1.bf16.xpose.msra.mxu0 0
      %729 = vmatprep.subr.bf16.mxu0 0
      %730 = vmatpush1.bf16.xpose.msra.mxu0 0
      %731 = vmatprep.subr.bf16.mxu0 0
      %732 = vmatpush1.bf16.xpose.msra.mxu0 0
      %733 = vmatprep.mubr.bf16.mxu0 0
      %734 = vmatmul.mubr.bf16.gmra.mrb[0].mxu0 %v696
      %v735 = vpop.f32.mrb[0].mxu0
      %v736 = vadd.f32 %v692, %v735
      %v737 = vpop.f32.mrb[0].mxu0
      %v738 = vpop.f32.mrb[0].mxu0
      %v739 = vpop.f32.mrb[0].mxu0
      %740 = vdwg.mxu0
      %v741 = vmul.f32 %v736, 0.125
      %vm742 = vcmask 64512
      %v743 = vsel %vm742, %v741, -inf
      %744 = vmax.xlane.f32.xlu0 %v743
      %v745 = vpop.xlane.xlu0 %744
      %v746 = vsub.f32 %v741, %v745
      %v747 = vmul.f32 %v746, 1.442695
      %v748 = vpow.pop %v747
      %v749 = vsel %vm742, %v748, 0.0
      %750 = vadd.xlane.f32.xlu0 %v749
      %v751 = vpop.xlane.xlu0 %750
      %v752 = vrcp.pop %v751
      %v753 = vmul.f32 %v748, %v752
      %v754 = vpack.c.bf16 %v753, %v753
      %v756 = vsel %vm742, %v754, 0
      %vm758 = vcmask 1043456
      %v760 = vsel %vm758, %v687, 0
      %762 = vmatprep.subr.bf16.mxu0 0
      %763 = vmatpush1.bf16.msra.mxu0 %v760
      %764 = vmatprep.subr.bf16.mxu0 0
      %765 = vmatpush1.bf16.msra.mxu0 0
      %766 = vmatprep.subr.bf16.mxu0 0
      %767 = vmatpush1.bf16.msra.mxu0 0
      %768 = vmatprep.subr.bf16.mxu0 0
      %769 = vmatpush1.bf16.msra.mxu0 0
      %770 = vmatprep.subr.bf16.mxu0 0
      %771 = vmatpush1.bf16.msra.mxu0 0
      %772 = vmatprep.subr.bf16.mxu0 0
      %773 = vmatpush1.bf16.msra.mxu0 0
      %774 = vmatprep.subr.bf16.mxu0 0
      %775 = vmatpush1.bf16.msra.mxu0 0
      %776 = vmatprep.subr.bf16.mxu0 0
      %777 = vmatpush1.bf16.msra.mxu0 0
      %778 = vmatprep.subr.bf16.mxu0 0
      %779 = vmatpush1.bf16.msra.mxu0 0
      %780 = vmatprep.subr.bf16.mxu0 0
      %781 = vmatpush1.bf16.msra.mxu0 0
      %782 = vmatprep.subr.bf16.mxu0 0
      %783 = vmatpush1.bf16.msra.mxu0 0
      %784 = vmatprep.subr.bf16.mxu0 0
      %785 = vmatpush1.bf16.msra.mxu0 0
      %786 = vmatprep.subr.bf16.mxu0 0
      %787 = vmatpush1.bf16.msra.mxu0 0
      %788 = vmatprep.subr.bf16.mxu0 0
      %789 = vmatpush1.bf16.msra.mxu0 0
      %790 = vmatprep.subr.bf16.mxu0 0
      %791 = vmatpush1.bf16.msra.mxu0 0
      %792 = vmatprep.subr.bf16.mxu0 0
      %793 = vmatpush1.bf16.msra.mxu0 0
      %794 = vmatprep.mubr.bf16.mxu0 0
      %795 = vmatmul.mubr.bf16.gmra.mrb[0].mxu0 %v756
      %v796 = vpop.f32.mrb[0].mxu0
      %v797 = vadd.f32 0.0, %v796
      %v798 = vpop.f32.mrb[0].mxu0
      %v799 = vpop.f32.mrb[0].mxu0
      %v800 = vpop.f32.mrb[0].mxu0
      %801 = vdwg.mxu0
      %v802 = vpack.c.bf16 %v797, %v797
      %804 = vrot.lane.b32.xlu0 %v685, 112
      %v805 = vpop.permute.xlu0 %804
      %807 = vrot.lane.b32.xlu0 %v686, 112
      %v808 = vpop.permute.xlu0 %807
      %v810 = vsel %vm694, %v805, 0
      %v813 = vsel %vm694, %v808, 0
      %815 = vmatprep.subr.bf16.mxu0 0
      %816 = vmatpush1.bf16.xpose.msra.mxu0 %v813
      %817 = vmatprep.subr.bf16.mxu0 0
      %818 = vmatpush1.bf16.xpose.msra.mxu0 0
      %819 = vmatprep.subr.bf16.mxu0 0
      %820 = vmatpush1.bf16.xpose.msra.mxu0 0
      %821 = vmatprep.subr.bf16.mxu0 0
      %822 = vmatpush1.bf16.xpose.msra.mxu0 0
      %823 = vmatprep.subr.bf16.mxu0 0
      %824 = vmatpush1.bf16.xpose.msra.mxu0 0
      %825 = vmatprep.subr.bf16.mxu0 0
      %826 = vmatpush1.bf16.xpose.msra.mxu0 0
      %827 = vmatprep.subr.bf16.mxu0 0
      %828 = vmatpush1.bf16.xpose.msra.mxu0 0
      %829 = vmatprep.subr.bf16.mxu0 0
      %830 = vmatpush1.bf16.xpose.msra.mxu0 0
      %831 = vmatprep.subr.bf16.mxu0 0
      %832 = vmatpush1.bf16.xpose.msra.mxu0 0
      %833 = vmatprep.subr.bf16.mxu0 0
      %834 = vmatpush1.bf16.xpose.msra.mxu0 0
      %835 = vmatprep.subr.bf16.mxu0 0
      %836 = vmatpush1.bf16.xpose.msra.mxu0 0
      %837 = vmatprep.subr.bf16.mxu0 0
      %838 = vmatpush1.bf16.xpose.msra.mxu0 0
      %839 = vmatprep.subr.bf16.mxu0 0
      %840 = vmatpush1.bf16.xpose.msra.mxu0 0
      %841 = vmatprep.subr.bf16.mxu0 0
      %842 = vmatpush1.bf16.xpose.msra.mxu0 0
      %843 = vmatprep.subr.bf16.mxu0 0
      %844 = vmatpush1.bf16.xpose.msra.mxu0 0
      %845 = vmatprep.subr.bf16.mxu0 0
      %846 = vmatpush1.bf16.xpose.msra.mxu0 0
      %847 = vmatprep.mubr.bf16.mxu0 0
      %848 = vmatmul.mubr.bf16.gmra.mrb[0].mxu0 %v810
      %v849 = vpop.f32.mrb[0].mxu0
      %v850 = vadd.f32 %v692, %v849
      %v851 = vpop.f32.mrb[0].mxu0
      %v852 = vpop.f32.mrb[0].mxu0
      %v853 = vpop.f32.mrb[0].mxu0
      %854 = vdwg.mxu0
      %v855 = vmul.f32 %v850, 0.125
      %v856 = vsel %vm742, %v855, -inf
      %857 = vmax.xlane.f32.xlu0 %v856
      %v858 = vpop.xlane.xlu0 %857
      %v859 = vsub.f32 %v855, %v858
      %v860 = vmul.f32 %v859, 1.442695
      %v861 = vpow.pop %v860
      %v862 = vsel %vm742, %v861, 0.0
      %863 = vadd.xlane.f32.xlu0 %v862
      %v864 = vpop.xlane.xlu0 %863
      %v865 = vrcp.pop %v864
      %v866 = vmul.f32 %v861, %v865
      %v867 = vpack.c.bf16 %v866, %v866
      %869 = vrot.lane.b32.xlu0 %v687, 112
      %v870 = vpop.permute.xlu0 %869
      %v872 = vsel %vm742, %v867, 0
      %v875 = vsel %vm758, %v870, 0
      %877 = vmatprep.subr.bf16.mxu0 0
      %878 = vmatpush1.bf16.msra.mxu0 %v875
      %879 = vmatprep.subr.bf16.mxu0 0
      %880 = vmatpush1.bf16.msra.mxu0 0
      %881 = vmatprep.subr.bf16.mxu0 0
      %882 = vmatpush1.bf16.msra.mxu0 0
      %883 = vmatprep.subr.bf16.mxu0 0
      %884 = vmatpush1.bf16.msra.mxu0 0
      %885 = vmatprep.subr.bf16.mxu0 0
      %886 = vmatpush1.bf16.msra.mxu0 0
      %887 = vmatprep.subr.bf16.mxu0 0
      %888 = vmatpush1.bf16.msra.mxu0 0
      %889 = vmatprep.subr.bf16.mxu0 0
      %890 = vmatpush1.bf16.msra.mxu0 0
      %891 = vmatprep.subr.bf16.mxu0 0
      %892 = vmatpush1.bf16.msra.mxu0 0
      %893 = vmatprep.subr.bf16.mxu0 0
      %894 = vmatpush1.bf16.msra.mxu0 0
      %895 = vmatprep.subr.bf16.mxu0 0
      %896 = vmatpush1.bf16.msra.mxu0 0
      %897 = vmatprep.subr.bf16.mxu0 0
      %898 = vmatpush1.bf16.msra.mxu0 0
      %899 = vmatprep.subr.bf16.mxu0 0
      %900 = vmatpush1.bf16.msra.mxu0 0
      %901 = vmatprep.subr.bf16.mxu0 0
      %902 = vmatpush1.bf16.msra.mxu0 0
      %903 = vmatprep.subr.bf16.mxu0 0
      %904 = vmatpush1.bf16.msra.mxu0 0
      %905 = vmatprep.subr.bf16.mxu0 0
      %906 = vmatpush1.bf16.msra.mxu0 0
      %907 = vmatprep.subr.bf16.mxu0 0
      %908 = vmatpush1.bf16.msra.mxu0 0
      %909 = vmatprep.mubr.bf16.mxu0 0
      %910 = vmatmul.mubr.bf16.gmra.mrb[0].mxu0 %v872
      %v911 = vpop.f32.mrb[0].mxu0
      %v912 = vadd.f32 0.0, %v911
      %v913 = vpop.f32.mrb[0].mxu0
      %v914 = vpop.f32.mrb[0].mxu0
      %v915 = vpop.f32.mrb[0].mxu0
      %916 = vdwg.mxu0
      %v917 = vpack.c.bf16 %v912, %v912
      %v920 = vunpack.c.l.b16 %v521
      %v921 = vunpack.c.l.b16 %v522
      %v922 = vpack.c.b16 %v921, %v920
      %v925 = vsel %vm694, %v917, 0
      %927 = vmatprep.subr.bf16.mxu0 0
      %928 = vmatpush1.bf16.msra.mxu0 %v922
      %929 = vmatprep.subr.bf16.mxu0 0
      %930 = vmatpush1.bf16.msra.mxu0 0
      %931 = vmatprep.subr.bf16.mxu0 0
      %932 = vmatpush1.bf16.msra.mxu0 0
      %933 = vmatprep.subr.bf16.mxu0 0
      %934 = vmatpush1.bf16.msra.mxu0 0
      %935 = vmatprep.subr.bf16.mxu0 0
      %936 = vmatpush1.bf16.msra.mxu0 0
      %937 = vmatprep.subr.bf16.mxu0 0
      %938 = vmatpush1.bf16.msra.mxu0 0
      %939 = vmatprep.subr.bf16.mxu0 0
      %940 = vmatpush1.bf16.msra.mxu0 0
      %941 = vmatprep.subr.bf16.mxu0 0
      %942 = vmatpush1.bf16.msra.mxu0 0
      %943 = vmatprep.subr.bf16.mxu0 0
      %944 = vmatpush1.bf16.msra.mxu0 0
      %945 = vmatprep.subr.bf16.mxu0 0
      %946 = vmatpush1.bf16.msra.mxu0 0
      %947 = vmatprep.subr.bf16.mxu0 0
      %948 = vmatpush1.bf16.msra.mxu0 0
      %949 = vmatprep.subr.bf16.mxu0 0
      %950 = vmatpush1.bf16.msra.mxu0 0
      %951 = vmatprep.subr.bf16.mxu0 0
      %952 = vmatpush1.bf16.msra.mxu0 0
      %953 = vmatprep.subr.bf16.mxu0 0
      %954 = vmatpush1.bf16.msra.mxu0 0
      %955 = vmatprep.subr.bf16.mxu0 0
      %956 = vmatpush1.bf16.msra.mxu0 0
      %957 = vmatprep.subr.bf16.mxu0 0
      %958 = vmatpush1.bf16.msra.mxu0 0
      %959 = vmatprep.mubr.bf16.mxu0 0
      %960 = vmatmul.mubr.bf16.gmra.mrb[0].mxu0 %v925
      %v961 = vpop.f32.mrb[0].mxu0
      %v962 = vadd.f32 0.0, %v961
      %v963 = vpop.f32.mrb[0].mxu0
      %v964 = vpop.f32.mrb[0].mxu0
      %v965 = vpop.f32.mrb[0].mxu0
      %966 = vdwg.mxu0
      %v969 = vunpack.c.l.b16 %v519
      %v970 = vunpack.c.l.b16 %v520
      %v971 = vpack.c.b16 %v970, %v969
      %v974 = vsel %vm694, %v802, 0
      %976 = vmatprep.subr.bf16.mxu0 0
      %977 = vmatpush1.bf16.msra.mxu0 %v971
      %978 = vmatprep.subr.bf16.mxu0 0
      %979 = vmatpush1.bf16.msra.mxu0 0
      %980 = vmatprep.subr.bf16.mxu0 0
      %981 = vmatpush1.bf16.msra.mxu0 0
      %982 = vmatprep.subr.bf16.mxu0 0
      %983 = vmatpush1.bf16.msra.mxu0 0
      %984 = vmatprep.subr.bf16.mxu0 0
      %985 = vmatpush1.bf16.msra.mxu0 0
      %986 = vmatprep.subr.bf16.mxu0 0
      %987 = vmatpush1.bf16.msra.mxu0 0
      %988 = vmatprep.subr.bf16.mxu0 0
      %989 = vmatpush1.bf16.msra.mxu0 0
      %990 = vmatprep.subr.bf16.mxu0 0
      %991 = vmatpush1.bf16.msra.mxu0 0
      %992 = vmatprep.subr.bf16.mxu0 0
      %993 = vmatpush1.bf16.msra.mxu0 0
      %994 = vmatprep.subr.bf16.mxu0 0
      %995 = vmatpush1.bf16.msra.mxu0 0
      %996 = vmatprep.subr.bf16.mxu0 0
      %997 = vmatpush1.bf16.msra.mxu0 0
      %998 = vmatprep.subr.bf16.mxu0 0
      %999 = vmatpush1.bf16.msra.mxu0 0
      %1000 = vmatprep.subr.bf16.mxu0 0
      %1001 = vmatpush1.bf16.msra.mxu0 0
      %1002 = vmatprep.subr.bf16.mxu0 0
      %1003 = vmatpush1.bf16.msra.mxu0 0
      %1004 = vmatprep.subr.bf16.mxu0 0
      %1005 = vmatpush1.bf16.msra.mxu0 0
      %1006 = vmatprep.subr.bf16.mxu0 0
      %1007 = vmatpush1.bf16.msra.mxu0 0
      %1008 = vmatprep.mubr.bf16.mxu0 0
      %1009 = vmatmul.mubr.bf16.gmra.mrb[0].mxu0 %v974
      %v1010 = vpop.f32.mrb[0].mxu0
      %v1011 = vadd.f32 %v962, %v1010
      %v1012 = vpop.f32.mrb[0].mxu0
      %v1013 = vpop.f32.mrb[0].mxu0
      %v1014 = vpop.f32.mrb[0].mxu0
      %1015 = vdwg.mxu0
      %v1017 = vlaneseq
      %v1018 = vshrl.u32 %v1017, 7
      %v1019 = vsub.s32 0, %v1018
      %v1020 = vrot.slane %v523, %v1019
      %v1022 = vadd.f32 %v1011, %v1020
      %v1023 = vadd.f32 %v1022, %v505
      %v1024 = vld [vmem:[%s7] sm:$0x1]
      %v1025 = vld [vmem:[%s8] sm:$0x1]
      %v1026 = vsel %vm537, %v1023, 0.0
      %1027 = vadd.xlane.f32.xlu0 %v1026
      %v1028 = vpop.xlane.xlu0 %1027
      %v1029 = vrcp.pop 32.0
      %v1030 = vmul.f32 %v1028, %v1029
      %v1031 = vsub.f32 %v1023, %v1030
      %v1032 = vmul.f32 %v1031, %v1031
      %v1033 = vsel %vm537, %v1032, 0.0
      %1034 = vadd.xlane.f32.xlu0 %v1033
      %v1035 = vpop.xlane.xlu0 %1034
      %v1036 = vmul.f32 %v1035, %v1029
      %v1037 = vadd.f32 %v1036, 1e-05
      %v1038 = vrsqrt.pop %v1037
      %v1039 = vmul.f32 %v1031, %v1038
      %v1041 = vlaneseq
      %v1042 = vshrl.u32 %v1041, 7
      %v1043 = vsub.s32 0, %v1042
      %v1044 = vrot.slane %v1024, %v1043
      %v1046 = vmul.f32 %v1039, %v1044
      %v1048 = vlaneseq
      %v1049 = vshrl.u32 %v1048, 7
      %v1050 = vsub.s32 0, %v1049
      %v1051 = vrot.slane %v1025, %v1050
      %v1053 = vadd.f32 %v1046, %v1051
      %v1054 = vld [vmem:[%s9] sm:$0xf]
      %v1055 = vld [vmem:[%s9 + $0x4] sm:$0xf]
      %v1056 = vld [vmem:[%s9 + $0x8] sm:$0xf]
      %v1057 = vld [vmem:[%s9 + $0xc] sm:$0xf]
      %v1058 = vld [vmem:[%s10] sm:$0x1]
      %v1059 = vld [vmem:[%s11] sm:$0xf]
      %v1060 = vld [vmem:[%s11 + $0x4] sm:$0xf]
      %v1061 = vld [vmem:[%s11 + $0x8] sm:$0xf]
      %v1062 = vld [vmem:[%s11 + $0xc] sm:$0xf]
      %v1063 = vld [vmem:[%s11 + $0x10] sm:$0xf]
      %v1064 = vld [vmem:[%s11 + $0x14] sm:$0xf]
      %v1065 = vld [vmem:[%s11 + $0x18] sm:$0xf]
      %v1066 = vld [vmem:[%s11 + $0x1c] sm:$0xf]
      %v1067 = vld [vmem:[%s11 + $0x20] sm:$0xf]
      %v1068 = vld [vmem:[%s11 + $0x24] sm:$0xf]
      %v1069 = vld [vmem:[%s11 + $0x28] sm:$0xf]
      %v1070 = vld [vmem:[%s11 + $0x2c] sm:$0xf]
      %v1071 = vld [vmem:[%s11 + $0x30] sm:$0xf]
      %v1072 = vld [vmem:[%s11 + $0x34] sm:$0xf]
      %v1073 = vld [vmem:[%s11 + $0x38] sm:$0xf]
      %v1074 = vld [vmem:[%s11 + $0x3c] sm:$0xf]
      %v1075 = vld [vmem:[%s12] sm:$0x1]
      %v1076 = vpack.c.bf16 %v1053, %v1053
      %v1078 = vlaneseq
      %v1079 = vshrl.u32 %v1078, 7
      %v1080 = vsub.s32 0, %v1079
      %v1081 = vrot.slane %v1058, %v1080
      %v1087 = vunpack.c.l.b16 %v1054
      %v1088 = vunpack.c.l.b16 %v1055
      %v1089 = vunpack.c.l.b16 %v1056
      %v1090 = vunpack.c.l.b16 %v1057
      %v1091 = vpack.c.b16 %v1088, %v1087
      %v1092 = vpack.c.b16 %v1090, %v1089
      %v1096 = vsel %vm537, %v1076, 0
      %1098 = vmatprep.subr.bf16.mxu0 0
      %1099 = vmatpush1.bf16.msra.mxu0 %v1091
      %1100 = vmatprep.subr.bf16.mxu0 0
      %1101 = vmatpush1.bf16.msra.mxu0 %v1092
      %1102 = vmatprep.subr.bf16.mxu0 0
      %1103 = vmatpush1.bf16.msra.mxu0 0
      %1104 = vmatprep.subr.bf16.mxu0 0
      %1105 = vmatpush1.bf16.msra.mxu0 0
      %1106 = vmatprep.subr.bf16.mxu0 0
      %1107 = vmatpush1.bf16.msra.mxu0 0
      %1108 = vmatprep.subr.bf16.mxu0 0
      %1109 = vmatpush1.bf16.msra.mxu0 0
      %1110 = vmatprep.subr.bf16.mxu0 0
      %1111 = vmatpush1.bf16.msra.mxu0 0
      %1112 = vmatprep.subr.bf16.mxu0 0
      %1113 = vmatpush1.bf16.msra.mxu0 0
      %1114 = vmatprep.subr.bf16.mxu0 0
      %1115 = vmatpush1.bf16.msra.mxu0 0
      %1116 = vmatprep.subr.bf16.mxu0 0
      %1117 = vmatpush1.bf16.msra.mxu0 0
      %1118 = vmatprep.subr.bf16.mxu0 0
      %1119 = vmatpush1.bf16.msra.mxu0 0
      %1120 = vmatprep.subr.bf16.mxu0 0
      %1121 = vmatpush1.bf16.msra.mxu0 0
      %1122 = vmatprep.subr.bf16.mxu0 0
      %1123 = vmatpush1.bf16.msra.mxu0 0
      %1124 = vmatprep.subr.bf16.mxu0 0
      %1125 = vmatpush1.bf16.msra.mxu0 0
      %1126 = vmatprep.subr.bf16.mxu0 0
      %1127 = vmatpush1.bf16.msra.mxu0 0
      %1128 = vmatprep.subr.bf16.mxu0 0
      %1129 = vmatpush1.bf16.msra.mxu0 0
      %1130 = vmatprep.mubr.bf16.mxu0 0
      %1131 = vmatmul.mubr.bf16.gmra.mrb[0].mxu0 %v1096
      %v1132 = vpop.f32.mrb[0].mxu0
      %v1133 = vadd.f32 %v1081, %v1132
      %v1134 = vpop.f32.mrb[0].mxu0
      %v1135 = vpop.f32.mrb[0].mxu0
      %v1136 = vpop.f32.mrb[0].mxu0
      %1137 = vdwg.mxu0
      %v1138 = vmax.f32 %v1133, 0.0
      %v1139 = vpack.c.bf16 %v1138, %v1138
      %v1141 = vlaneseq
      %v1142 = vshrl.u32 %v1141, 7
      %v1143 = vsub.s32 0, %v1142
      %v1144 = vrot.slane %v1075, %v1143
      %v1162 = vunpack.c.l.b16 %v1059
      %v1163 = vunpack.c.l.b16 %v1060
      %v1164 = vunpack.c.l.b16 %v1061
      %v1165 = vunpack.c.l.b16 %v1062
      %v1166 = vunpack.c.l.b16 %v1063
      %v1167 = vunpack.c.l.b16 %v1064
      %v1168 = vunpack.c.l.b16 %v1065
      %v1169 = vunpack.c.l.b16 %v1066
      %v1170 = vunpack.c.l.b16 %v1067
      %v1171 = vunpack.c.l.b16 %v1068
      %v1172 = vunpack.c.l.b16 %v1069
      %v1173 = vunpack.c.l.b16 %v1070
      %v1174 = vunpack.c.l.b16 %v1071
      %v1175 = vunpack.c.l.b16 %v1072
      %v1176 = vunpack.c.l.b16 %v1073
      %v1177 = vunpack.c.l.b16 %v1074
      %v1178 = vpack.c.b16 %v1163, %v1162
      %v1179 = vpack.c.b16 %v1165, %v1164
      %v1180 = vpack.c.b16 %v1167, %v1166
      %v1181 = vpack.c.b16 %v1169, %v1168
      %v1182 = vpack.c.b16 %v1171, %v1170
      %v1183 = vpack.c.b16 %v1173, %v1172
      %v1184 = vpack.c.b16 %v1175, %v1174
      %v1185 = vpack.c.b16 %v1177, %v1176
      %1194 = vmatprep.subr.bf16.mxu0 0
      %1195 = vmatpush1.bf16.msra.mxu0 %v1178
      %1196 = vmatprep.subr.bf16.mxu0 0
      %1197 = vmatpush1.bf16.msra.mxu0 %v1179
      %1198 = vmatprep.subr.bf16.mxu0 0
      %1199 = vmatpush1.bf16.msra.mxu0 %v1180
      %1200 = vmatprep.subr.bf16.mxu0 0
      %1201 = vmatpush1.bf16.msra.mxu0 %v1181
      %1202 = vmatprep.subr.bf16.mxu0 0
      %1203 = vmatpush1.bf16.msra.mxu0 %v1182
      %1204 = vmatprep.subr.bf16.mxu0 0
      %1205 = vmatpush1.bf16.msra.mxu0 %v1183
      %1206 = vmatprep.subr.bf16.mxu0 0
      %1207 = vmatpush1.bf16.msra.mxu0 %v1184
      %1208 = vmatprep.subr.bf16.mxu0 0
      %1209 = vmatpush1.bf16.msra.mxu0 %v1185
      %1210 = vmatprep.subr.bf16.mxu0 0
      %1211 = vmatpush1.bf16.msra.mxu0 0
      %1212 = vmatprep.subr.bf16.mxu0 0
      %1213 = vmatpush1.bf16.msra.mxu0 0
      %1214 = vmatprep.subr.bf16.mxu0 0
      %1215 = vmatpush1.bf16.msra.mxu0 0
      %1216 = vmatprep.subr.bf16.mxu0 0
      %1217 = vmatpush1.bf16.msra.mxu0 0
      %1218 = vmatprep.subr.bf16.mxu0 0
      %1219 = vmatpush1.bf16.msra.mxu0 0
      %1220 = vmatprep.subr.bf16.mxu0 0
      %1221 = vmatpush1.bf16.msra.mxu0 0
      %1222 = vmatprep.subr.bf16.mxu0 0
      %1223 = vmatpush1.bf16.msra.mxu0 0
      %1224 = vmatprep.subr.bf16.mxu0 0
      %1225 = vmatpush1.bf16.msra.mxu0 0
      %1226 = vmatprep.mubr.bf16.mxu0 0
      %1227 = vmatmul.mubr.bf16.gmra.mrb[0].mxu0 %v1139
      %v1228 = vpop.f32.mrb[0].mxu0
      %v1229 = vadd.f32 %v1144, %v1228
      %v1230 = vpop.f32.mrb[0].mxu0
      %v1231 = vpop.f32.mrb[0].mxu0
      %v1232 = vpop.f32.mrb[0].mxu0
      %1233 = vdwg.mxu0
      %v1234 = vadd.f32 %v1229, %v1053
      %v1235 = vld [vmem:[%s13] sm:$0x1]
      %v1236 = vld [vmem:[%s14] sm:$0x1]
      %v1237 = vsel %vm537, %v1234, 0.0
      %1238 = vadd.xlane.f32.xlu0 %v1237
      %v1239 = vpop.xlane.xlu0 %1238
      %v1240 = vmul.f32 %v1239, %v1029
      %v1241 = vsub.f32 %v1234, %v1240
      %v1242 = vmul.f32 %v1241, %v1241
      %v1243 = vsel %vm537, %v1242, 0.0
      %1244 = vadd.xlane.f32.xlu0 %v1243
      %v1245 = vpop.xlane.xlu0 %1244
      %v1246 = vmul.f32 %v1245, %v1029
      %v1247 = vadd.f32 %v1246, 1e-05
      %v1248 = vrsqrt.pop %v1247
      %v1249 = vmul.f32 %v1241, %v1248
      %v1251 = vlaneseq
      %v1252 = vshrl.u32 %v1251, 7
      %v1253 = vsub.s32 0, %v1252
      %v1254 = vrot.slane %v1235, %v1253
      %v1256 = vmul.f32 %v1249, %v1254
      %v1258 = vlaneseq
      %v1259 = vshrl.u32 %v1258, 7
      %v1260 = vsub.s32 0, %v1259
      %v1261 = vrot.slane %v1236, %v1260
      %v1263 = vadd.f32 %v1256, %v1261
      %1264 = vst.msk [vmem:[%s503] sm:$0xff] %vm537, %v1263
      %p1265 = scmp.lt.s32.totalorder %s26, 1
      %s1266 = scalar_select %p1265, %s26, 1
      %s1267 = smul.addr %s1266, 8
      %s1268 = scalar_lea.vmem %s15, %s1267
      // Predicated region
      $region81: #{transformer_fwd.5} parent=79 // pred_check
        %p1269 = pneg %p369
      $region82: #{transformer_fwd.5} parent=79 // pred_check_branch
        %1271 = sbr.rel (%p1269) target = $region84
      $region83: #{transformer_fwd.5} parent=79 // pred_region
        _
      $region84: #{transformer_fwd.5} parent=79 // pred_fallthru
        _
    $region80: #{transformer_fwd.5} parent=5 // pred_fallthru
      _
    %p1272 = scmp.le.s32.totalorder 2, %s21
    // Predicated region
    $region85: #{transformer_fwd.5} parent=5 // pred_check
      %p1273 = pneg %p1272
    $region86: #{transformer_fwd.5} parent=5 // pred_check_branch
      %1275 = sbr.rel (%p1273) target = $region88
    $region87: #{transformer_fwd.5} parent=5 // pred_region
      %s1276 = ssub.s32 %s21, 2
      // Predicated region
      $region89: #{transformer_fwd.5} parent=87 // pred_check
        %p1277 = pneg %p375
      $region90: #{transformer_fwd.5} parent=87 // pred_check_branch
        %1279 = sbr.rel (%p1277) target = $region92
      $region91: #{transformer_fwd.5} parent=87 // pred_region
        %p1280 = scmp.lt.s32.totalorder %s27, 1
        %s1281 = scalar_select %p1280, %s27, 1
        %s1282 = smul.addr %s1281, 8
        %s1283 = scalar_lea.vmem %s15, %s1282
      $region92: #{transformer_fwd.5} parent=87 // pred_fallthru
        _
    $region88: #{transformer_fwd.5} parent=5 // pred_fallthru
      _
  $region6: #{transformer_fwd.5} parent=0 // loop_footer
    %s25 = sadd.s32 1, %s21
  $region7: #{transformer_fwd.5} parent=0 // loop_footer_branch
    %20 = sbr.rel target = $region3
  $region8: #{transformer_fwd.5} parent=0 // loop_exit
    _

// kernel: transformer_fwd.7
$region0: #{transformer_fwd.7}
  #allocation0 [shape = 'u32[]', space=smem, size = 0x4, offset = 0x4, fixed_abs, tag = 'smem constant byte address 0x4 - core index']
  #allocation1 [shape = 'u32[144,128]{1,0:T(1,128)}', space=vmem, size = 0x12000, scoped, tag = 'internal scratch']
  %s0 = inlined_call_operand.vmem [shape: f32[2,8,32], index: 0, kind: input, shape index: {}]
  %s1 = inlined_call_operand.vmem [shape: f32[2,8,32], index: 1, kind: input, shape index: {}]
  %s2 = inlined_call_operand.vmem [shape: f32[1,8,8], index: 2, kind: input, shape index: {}]
  %s3 = inlined_call_operand.vmem [shape: f32[2,1,8], index: 3, kind: input, shape index: {}]
  %s4 = inlined_call_operand.vmem [shape: bf16[32,32], index: 4, kind: input, shape index: {}]
  %s5 = inlined_call_operand.vmem [shape: bf16[32,32], index: 5, kind: input, shape index: {}]
  %s6 = inlined_call_operand.vmem [shape: bf16[32,32], index: 6, kind: input, shape index: {}]
  %s7 = inlined_call_operand.vmem [shape: bf16[32,32], index: 7, kind: input, shape index: {}]
  %s8 = inlined_call_operand.vmem [shape: f32[1,32], index: 8, kind: input, shape index: {}]
  %s9 = inlined_call_operand.vmem [shape: f32[1,32], index: 9, kind: input, shape index: {}]
  %s10 = inlined_call_operand.vmem [shape: f32[1,32], index: 10, kind: input, shape index: {}]
  %s11 = inlined_call_operand.vmem [shape: bf16[32,32], index: 11, kind: input, shape index: {}]
  %s12 = inlined_call_operand.vmem [shape: bf16[32,32], index: 12, kind: input, shape index: {}]
  %s13 = inlined_call_operand.vmem [shape: bf16[32,32], index: 13, kind: input, shape index: {}]
  %s14 = inlined_call_operand.vmem [shape: bf16[32,32], index: 14, kind: input, shape index: {}]
  %s15 = inlined_call_operand.vmem [shape: f32[1,32], index: 15, kind: input, shape index: {}]
  %s16 = inlined_call_operand.vmem [shape: f32[1,32], index: 16, kind: input, shape index: {}]
  %s17 = inlined_call_operand.vmem [shape: f32[1,32], index: 17, kind: input, shape index: {}]
  %s18 = inlined_call_operand.vmem [shape: bf16[32,128], index: 18, kind: input, shape index: {}]
  %s19 = inlined_call_operand.vmem [shape: f32[1,128], index: 19, kind: input, shape index: {}]
  %s20 = inlined_call_operand.vmem [shape: bf16[128,32], index: 20, kind: input, shape index: {}]
  %s21 = inlined_call_operand.vmem [shape: f32[1,32], index: 21, kind: input, shape index: {}]
  %s22 = inlined_call_operand.vmem [shape: f32[1,32], index: 22, kind: input, shape index: {}]
  %s23 = inlined_call_operand.vmem [shape: f32[1,32], index: 23, kind: input, shape index: {}]
  %s24 = inlined_call_operand.vmem [shape: f32[2,8,32], index: 24, kind: output, shape index: {}]
  %s25 = sld [smem:[#allocation0]]
  $region129: #{transformer_fwd.7} parent=0
    _
  %s27 = ssub.s32 1, %s25
  %s28 = scalar_select 0, %s27, %s25
  loop: start=0, step=1, limit=4
  $region2: #{transformer_fwd.7} parent=0 // loop_pre_header
    _
  $region3: #{transformer_fwd.7} parent=0 // loop_header
    %s30 = sphi 0, %s34
    %p31 = scmp.ge.s32.totalorder %s30, 4
    %s40 = sphi 0, %s42
    %s43 = sphi 0, %s40
    %s44 = sphi 0, %s43
    %s60 = sphi 0, %s44
    %s66 = sphi 0, %s68
    %s69 = sphi 0, %s66
    %s70 = sphi 0, %s69
    %s86 = sphi 0, %s70
    %s90 = sphi 0, %s90
    %s92 = sphi 0, %s90
    %s93 = sphi 0, %s92
    %s107 = sphi 0, %s93
    %s113 = sphi 0, %s115
    %s116 = sphi 0, %s113
    %s117 = sphi 0, %s116
    %s133 = sphi 0, %s117
    %s137 = sphi 0, %s137
    %s139 = sphi 0, %s137
    %s140 = sphi 0, %s139
    %s154 = sphi 0, %s140
    %s158 = sphi 0, %s158
    %s160 = sphi 0, %s158
    %s161 = sphi 0, %s160
    %s175 = sphi 0, %s161
    %s179 = sphi 0, %s179
    %s181 = sphi 0, %s179
    %s182 = sphi 0, %s181
    %s196 = sphi 0, %s182
    %s200 = sphi 0, %s200
    %s202 = sphi 0, %s200
    %s203 = sphi 0, %s202
    %s217 = sphi 0, %s203
    %s221 = sphi 0, %s221
    %s223 = sphi 0, %s221
    %s224 = sphi 0, %s223
    %s238 = sphi 0, %s224
    %s242 = sphi 0, %s242
    %s244 = sphi 0, %s242
    %s245 = sphi 0, %s244
    %s259 = sphi 0, %s245
    %s263 = sphi 0, %s263
    %s265 = sphi 0, %s263
    %s266 = sphi 0, %s265
    %s280 = sphi 0, %s266
    %s284 = sphi 0, %s284
    %s286 = sphi 0, %s284
    %s287 = sphi 0, %s286
    %s301 = sphi 0, %s287
    %s305 = sphi 0, %s305
    %s307 = sphi 0, %s305
    %s308 = sphi 0, %s307
    %s322 = sphi 0, %s308
    %s326 = sphi 0, %s326
    %s328 = sphi 0, %s326
    %s329 = sphi 0, %s328
    %s343 = sphi 0, %s329
    %s347 = sphi 0, %s347
    %s349 = sphi 0, %s347
    %s350 = sphi 0, %s349
    %s364 = sphi 0, %s350
    %s368 = sphi 0, %s368
    %s370 = sphi 0, %s368
    %s371 = sphi 0, %s370
    %s385 = sphi 0, %s371
    %s389 = sphi 0, %s389
    %s391 = sphi 0, %s389
    %s392 = sphi 0, %s391
    %s406 = sphi 0, %s392
    %s410 = sphi 0, %s410
    %s412 = sphi 0, %s410
    %s413 = sphi 0, %s412
    %s427 = sphi 0, %s413
    %s431 = sphi 0, %s431
    %s433 = sphi 0, %s431
    %s434 = sphi 0, %s433
    %s448 = sphi 0, %s434
    %s452 = sphi 0, %s452
    %s454 = sphi 0, %s452
    %s455 = sphi 0, %s454
    %s469 = sphi 0, %s455
    %s473 = sphi 0, %s473
    %s475 = sphi 0, %s473
    %s476 = sphi 0, %s475
    %s490 = sphi 0, %s476
    %s494 = sphi 0, %s494
    %s496 = sphi 0, %s494
    %s497 = sphi 0, %s496
    %s511 = sphi 0, %s497
    %s515 = sphi 0, %s515
    %s517 = sphi 0, %s515
    %s518 = sphi 0, %s517
    %s532 = sphi 0, %s518
    %s536 = sphi 0, %s536
    %s538 = sphi 0, %s536
    %s539 = sphi 0, %s538
    %s553 = sphi 0, %s539
    %s559 = sphi 0, %s561
    %s562 = sphi 0, %s559
    %s563 = sphi 0, %s562
    %s579 = sphi 0, %s563
  $region4: #{transformer_fwd.7} parent=0 // loop_header_branch
    %33 = sbr.rel (%p31) target = $region8
  $region5: #{transformer_fwd.7} parent=0 // loop_body
    %s35 = ssub.s32 %s30, 1
    %s36 = ssub.s32 %s30, 2
    %s37 = sadd.s32 %s30, 1
    %s38 = ssub.s32 %s30, %s37
    %p39 = scmp.eq.s32.totalorder %s38, 0
    %s41 = sadd.s32 %s40, 1
    %s42 = scalar_select %p39, %s40, %s41
    %p45 = pneg %p39
    %p46 = scmp.eq.s32.totalorder %s30, 1
    %p47 = por %p45, %p46
    %p48 = scmp.ne.s32.totalorder %s40, %s43
    %p49 = scmp.eq.s32.totalorder %s30, 0
    %p50 = por %p48, %p49
    %p51 = scmp.ne.s32.totalorder %s40, %s43
    %p52 = scmp.eq.s32.totalorder %s35, 1
    %p53 = por %p51, %p52
    %p54 = scmp.ne.s32.totalorder %s43, %s44
    %p55 = scmp.eq.s32.totalorder %s35, 0
    %p56 = por %p54, %p55
    %p57 = scmp.ne.s32.totalorder %s43, %s44
    %p58 = scmp.eq.s32.totalorder %s36, 1
    %p59 = por %p57, %p58
    %p61 = scmp.ne.s32.totalorder %s44, %s60
    %p62 = scmp.eq.s32.totalorder %s36, 0
    %p63 = por %p61, %p62
    %s64 = ssub.s32 %s30, %s37
    %p65 = scmp.eq.s32.totalorder %s64, 0
    %s67 = sadd.s32 %s66, 1
    %s68 = scalar_select %p65, %s66, %s67
    %p71 = pneg %p65
    %p72 = scmp.eq.s32.totalorder %s30, 1
    %p73 = por %p71, %p72
    %p74 = scmp.ne.s32.totalorder %s66, %s69
    %p75 = scmp.eq.s32.totalorder %s30, 0
    %p76 = por %p74, %p75
    %p77 = scmp.ne.s32.totalorder %s66, %s69
    %p78 = scmp.eq.s32.totalorder %s35, 1
    %p79 = por %p77, %p78
    %p80 = scmp.ne.s32.totalorder %s69, %s70
    %p81 = scmp.eq.s32.totalorder %s35, 0
    %p82 = por %p80, %p81
    %p83 = scmp.ne.s32.totalorder %s69, %s70
    %p84 = scmp.eq.s32.totalorder %s36, 1
    %p85 = por %p83, %p84
    %p87 = scmp.ne.s32.totalorder %s70, %s86
    %p88 = scmp.eq.s32.totalorder %s36, 0
    %p89 = por %p87, %p88
    %s91 = sadd.s32 %s90, 1
    %p94 = scmp.eq.s32.totalorder %s30, 1
    %p95 = scmp.ne.s32.totalorder %s90, %s92
    %p96 = scmp.eq.s32.totalorder %s30, 0
    %p97 = por %p95, %p96
    %p98 = scmp.ne.s32.totalorder %s90, %s92
    %p99 = scmp.eq.s32.totalorder %s35, 1
    %p100 = por %p98, %p99
    %p101 = scmp.ne.s32.totalorder %s92, %s93
    %p102 = scmp.eq.s32.totalorder %s35, 0
    %p103 = por %p101, %p102
    %p104 = scmp.ne.s32.totalorder %s92, %s93
    %p105 = scmp.eq.s32.totalorder %s36, 1
    %p106 = por %p104, %p105
    %p108 = scmp.ne.s32.totalorder %s93, %s107
    %p109 = scmp.eq.s32.totalorder %s36, 0
    %p110 = por %p108, %p109
    %s111 = ssub.s32 %s30, %s37
    %p112 = scmp.eq.s32.totalorder %s111, 0
    %s114 = sadd.s32 %s113, 1
    %s115 = scalar_select %p112, %s113, %s114
    %p118 = pneg %p112
    %p119 = scmp.eq.s32.totalorder %s30, 1
    %p120 = por %p118, %p119
    %p121 = scmp.ne.s32.totalorder %s113, %s116
    %p122 = scmp.eq.s32.totalorder %s30, 0
    %p123 = por %p121, %p122
    %p124 = scmp.ne.s32.totalorder %s113, %s116
    %p125 = scmp.eq.s32.totalorder %s35, 1
    %p126 = por %p124, %p125
    %p127 = scmp.ne.s32.totalorder %s116, %s117
    %p128 = scmp.eq.s32.totalorder %s35, 0
    %p129 = por %p127, %p128
    %p130 = scmp.ne.s32.totalorder %s116, %s117
    %p131 = scmp.eq.s32.totalorder %s36, 1
    %p132 = por %p130, %p131
    %p134 = scmp.ne.s32.totalorder %s117, %s133
    %p135 = scmp.eq.s32.totalorder %s36, 0
    %p136 = por %p134, %p135
    %s138 = sadd.s32 %s137, 1
    %p141 = scmp.eq.s32.totalorder %s30, 1
    %p142 = scmp.ne.s32.totalorder %s137, %s139
    %p143 = scmp.eq.s32.totalorder %s30, 0
    %p144 = por %p142, %p143
    %p145 = scmp.ne.s32.totalorder %s137, %s139
    %p146 = scmp.eq.s32.totalorder %s35, 1
    %p147 = por %p145, %p146
    %p148 = scmp.ne.s32.totalorder %s139, %s140
    %p149 = scmp.eq.s32.totalorder %s35, 0
    %p150 = por %p148, %p149
    %p151 = scmp.ne.s32.totalorder %s139, %s140
    %p152 = scmp.eq.s32.totalorder %s36, 1
    %p153 = por %p151, %p152
    %p155 = scmp.ne.s32.totalorder %s140, %s154
    %p156 = scmp.eq.s32.totalorder %s36, 0
    %p157 = por %p155, %p156
    %s159 = sadd.s32 %s158, 1
    %p162 = scmp.eq.s32.totalorder %s30, 1
    %p163 = scmp.ne.s32.totalorder %s158, %s160
    %p164 = scmp.eq.s32.totalorder %s30, 0
    %p165 = por %p163, %p164
    %p166 = scmp.ne.s32.totalorder %s158, %s160
    %p167 = scmp.eq.s32.totalorder %s35, 1
    %p168 = por %p166, %p167
    %p169 = scmp.ne.s32.totalorder %s160, %s161
    %p170 = scmp.eq.s32.totalorder %s35, 0
    %p171 = por %p169, %p170
    %p172 = scmp.ne.s32.totalorder %s160, %s161
    %p173 = scmp.eq.s32.totalorder %s36, 1
    %p174 = por %p172, %p173
    %p176 = scmp.ne.s32.totalorder %s161, %s175
    %p177 = scmp.eq.s32.totalorder %s36, 0
    %p178 = por %p176, %p177
    %s180 = sadd.s32 %s179, 1
    %p183 = scmp.eq.s32.totalorder %s30, 1
    %p184 = scmp.ne.s32.totalorder %s179, %s181
    %p185 = scmp.eq.s32.totalorder %s30, 0
    %p186 = por %p184, %p185
    %p187 = scmp.ne.s32.totalorder %s179, %s181
    %p188 = scmp.eq.s32.totalorder %s35, 1
    %p189 = por %p187, %p188
    %p190 = scmp.ne.s32.totalorder %s181, %s182
    %p191 = scmp.eq.s32.totalorder %s35, 0
    %p192 = por %p190, %p191
    %p193 = scmp.ne.s32.totalorder %s181, %s182
    %p194 = scmp.eq.s32.totalorder %s36, 1
    %p195 = por %p193, %p194
    %p197 = scmp.ne.s32.totalorder %s182, %s196
    %p198 = scmp.eq.s32.totalorder %s36, 0
    %p199 = por %p197, %p198
    %s201 = sadd.s32 %s200, 1
    %p204 = scmp.eq.s32.totalorder %s30, 1
    %p205 = scmp.ne.s32.totalorder %s200, %s202
    %p206 = scmp.eq.s32.totalorder %s30, 0
    %p207 = por %p205, %p206
    %p208 = scmp.ne.s32.totalorder %s200, %s202
    %p209 = scmp.eq.s32.totalorder %s35, 1
    %p210 = por %p208, %p209
    %p211 = scmp.ne.s32.totalorder %s202, %s203
    %p212 = scmp.eq.s32.totalorder %s35, 0
    %p213 = por %p211, %p212
    %p214 = scmp.ne.s32.totalorder %s202, %s203
    %p215 = scmp.eq.s32.totalorder %s36, 1
    %p216 = por %p214, %p215
    %p218 = scmp.ne.s32.totalorder %s203, %s217
    %p219 = scmp.eq.s32.totalorder %s36, 0
    %p220 = por %p218, %p219
    %s222 = sadd.s32 %s221, 1
    %p225 = scmp.eq.s32.totalorder %s30, 1
    %p226 = scmp.ne.s32.totalorder %s221, %s223
    %p227 = scmp.eq.s32.totalorder %s30, 0
    %p228 = por %p226, %p227
    %p229 = scmp.ne.s32.totalorder %s221, %s223
    %p230 = scmp.eq.s32.totalorder %s35, 1
    %p231 = por %p229, %p230
    %p232 = scmp.ne.s32.totalorder %s223, %s224
    %p233 = scmp.eq.s32.totalorder %s35, 0
    %p234 = por %p232, %p233
    %p235 = scmp.ne.s32.totalorder %s223, %s224
    %p236 = scmp.eq.s32.totalorder %s36, 1
    %p237 = por %p235, %p236
    %p239 = scmp.ne.s32.totalorder %s224, %s238
    %p240 = scmp.eq.s32.totalorder %s36, 0
    %p241 = por %p239, %p240
    %s243 = sadd.s32 %s242, 1
    %p246 = scmp.eq.s32.totalorder %s30, 1
    %p247 = scmp.ne.s32.totalorder %s242, %s244
    %p248 = scmp.eq.s32.totalorder %s30, 0
    %p249 = por %p247, %p248
    %p250 = scmp.ne.s32.totalorder %s242, %s244
    %p251 = scmp.eq.s32.totalorder %s35, 1
    %p252 = por %p250, %p251
    %p253 = scmp.ne.s32.totalorder %s244, %s245
    %p254 = scmp.eq.s32.totalorder %s35, 0
    %p255 = por %p253, %p254
    %p256 = scmp.ne.s32.totalorder %s244, %s245
    %p257 = scmp.eq.s32.totalorder %s36, 1
    %p258 = por %p256, %p257
    %p260 = scmp.ne.s32.totalorder %s245, %s259
    %p261 = scmp.eq.s32.totalorder %s36, 0
    %p262 = por %p260, %p261
    %s264 = sadd.s32 %s263, 1
    %p267 = scmp.eq.s32.totalorder %s30, 1
    %p268 = scmp.ne.s32.totalorder %s263, %s265
    %p269 = scmp.eq.s32.totalorder %s30, 0
    %p270 = por %p268, %p269
    %p271 = scmp.ne.s32.totalorder %s263, %s265
    %p272 = scmp.eq.s32.totalorder %s35, 1
    %p273 = por %p271, %p272
    %p274 = scmp.ne.s32.totalorder %s265, %s266
    %p275 = scmp.eq.s32.totalorder %s35, 0
    %p276 = por %p274, %p275
    %p277 = scmp.ne.s32.totalorder %s265, %s266
    %p278 = scmp.eq.s32.totalorder %s36, 1
    %p279 = por %p277, %p278
    %p281 = scmp.ne.s32.totalorder %s266, %s280
    %p282 = scmp.eq.s32.totalorder %s36, 0
    %p283 = por %p281, %p282
    %s285 = sadd.s32 %s284, 1
    %p288 = scmp.eq.s32.totalorder %s30, 1
    %p289 = scmp.ne.s32.totalorder %s284, %s286
    %p290 = scmp.eq.s32.totalorder %s30, 0
    %p291 = por %p289, %p290
    %p292 = scmp.ne.s32.totalorder %s284, %s286
    %p293 = scmp.eq.s32.totalorder %s35, 1
    %p294 = por %p292, %p293
    %p295 = scmp.ne.s32.totalorder %s286, %s287
    %p296 = scmp.eq.s32.totalorder %s35, 0
    %p297 = por %p295, %p296
    %p298 = scmp.ne.s32.totalorder %s286, %s287
    %p299 = scmp.eq.s32.totalorder %s36, 1
    %p300 = por %p298, %p299
    %p302 = scmp.ne.s32.totalorder %s287, %s301
    %p303 = scmp.eq.s32.totalorder %s36, 0
    %p304 = por %p302, %p303
    %s306 = sadd.s32 %s305, 1
    %p309 = scmp.eq.s32.totalorder %s30, 1
    %p310 = scmp.ne.s32.totalorder %s305, %s307
    %p311 = scmp.eq.s32.totalorder %s30, 0
    %p312 = por %p310, %p311
    %p313 = scmp.ne.s32.totalorder %s305, %s307
    %p314 = scmp.eq.s32.totalorder %s35, 1
    %p315 = por %p313, %p314
    %p316 = scmp.ne.s32.totalorder %s307, %s308
    %p317 = scmp.eq.s32.totalorder %s35, 0
    %p318 = por %p316, %p317
    %p319 = scmp.ne.s32.totalorder %s307, %s308
    %p320 = scmp.eq.s32.totalorder %s36, 1
    %p321 = por %p319, %p320
    %p323 = scmp.ne.s32.totalorder %s308, %s322
    %p324 = scmp.eq.s32.totalorder %s36, 0
    %p325 = por %p323, %p324
    %s327 = sadd.s32 %s326, 1
    %p330 = scmp.eq.s32.totalorder %s30, 1
    %p331 = scmp.ne.s32.totalorder %s326, %s328
    %p332 = scmp.eq.s32.totalorder %s30, 0
    %p333 = por %p331, %p332
    %p334 = scmp.ne.s32.totalorder %s326, %s328
    %p335 = scmp.eq.s32.totalorder %s35, 1
    %p336 = por %p334, %p335
    %p337 = scmp.ne.s32.totalorder %s328, %s329
    %p338 = scmp.eq.s32.totalorder %s35, 0
    %p339 = por %p337, %p338
    %p340 = scmp.ne.s32.totalorder %s328, %s329
    %p341 = scmp.eq.s32.totalorder %s36, 1
    %p342 = por %p340, %p341
    %p344 = scmp.ne.s32.totalorder %s329, %s343
    %p345 = scmp.eq.s32.totalorder %s36, 0
    %p346 = por %p344, %p345
    %s348 = sadd.s32 %s347, 1
    %p351 = scmp.eq.s32.totalorder %s30, 1
    %p352 = scmp.ne.s32.totalorder %s347, %s349
    %p353 = scmp.eq.s32.totalorder %s30, 0
    %p354 = por %p352, %p353
    %p355 = scmp.ne.s32.totalorder %s347, %s349
    %p356 = scmp.eq.s32.totalorder %s35, 1
    %p357 = por %p355, %p356
    %p358 = scmp.ne.s32.totalorder %s349, %s350
    %p359 = scmp.eq.s32.totalorder %s35, 0
    %p360 = por %p358, %p359
    %p361 = scmp.ne.s32.totalorder %s349, %s350
    %p362 = scmp.eq.s32.totalorder %s36, 1
    %p363 = por %p361, %p362
    %p365 = scmp.ne.s32.totalorder %s350, %s364
    %p366 = scmp.eq.s32.totalorder %s36, 0
    %p367 = por %p365, %p366
    %s369 = sadd.s32 %s368, 1
    %p372 = scmp.eq.s32.totalorder %s30, 1
    %p373 = scmp.ne.s32.totalorder %s368, %s370
    %p374 = scmp.eq.s32.totalorder %s30, 0
    %p375 = por %p373, %p374
    %p376 = scmp.ne.s32.totalorder %s368, %s370
    %p377 = scmp.eq.s32.totalorder %s35, 1
    %p378 = por %p376, %p377
    %p379 = scmp.ne.s32.totalorder %s370, %s371
    %p380 = scmp.eq.s32.totalorder %s35, 0
    %p381 = por %p379, %p380
    %p382 = scmp.ne.s32.totalorder %s370, %s371
    %p383 = scmp.eq.s32.totalorder %s36, 1
    %p384 = por %p382, %p383
    %p386 = scmp.ne.s32.totalorder %s371, %s385
    %p387 = scmp.eq.s32.totalorder %s36, 0
    %p388 = por %p386, %p387
    %s390 = sadd.s32 %s389, 1
    %p393 = scmp.eq.s32.totalorder %s30, 1
    %p394 = scmp.ne.s32.totalorder %s389, %s391
    %p395 = scmp.eq.s32.totalorder %s30, 0
    %p396 = por %p394, %p395
    %p397 = scmp.ne.s32.totalorder %s389, %s391
    %p398 = scmp.eq.s32.totalorder %s35, 1
    %p399 = por %p397, %p398
    %p400 = scmp.ne.s32.totalorder %s391, %s392
    %p401 = scmp.eq.s32.totalorder %s35, 0
    %p402 = por %p400, %p401
    %p403 = scmp.ne.s32.totalorder %s391, %s392
    %p404 = scmp.eq.s32.totalorder %s36, 1
    %p405 = por %p403, %p404
    %p407 = scmp.ne.s32.totalorder %s392, %s406
    %p408 = scmp.eq.s32.totalorder %s36, 0
    %p409 = por %p407, %p408
    %s411 = sadd.s32 %s410, 1
    %p414 = scmp.eq.s32.totalorder %s30, 1
    %p415 = scmp.ne.s32.totalorder %s410, %s412
    %p416 = scmp.eq.s32.totalorder %s30, 0
    %p417 = por %p415, %p416
    %p418 = scmp.ne.s32.totalorder %s410, %s412
    %p419 = scmp.eq.s32.totalorder %s35, 1
    %p420 = por %p418, %p419
    %p421 = scmp.ne.s32.totalorder %s412, %s413
    %p422 = scmp.eq.s32.totalorder %s35, 0
    %p423 = por %p421, %p422
    %p424 = scmp.ne.s32.totalorder %s412, %s413
    %p425 = scmp.eq.s32.totalorder %s36, 1
    %p426 = por %p424, %p425
    %p428 = scmp.ne.s32.totalorder %s413, %s427
    %p429 = scmp.eq.s32.totalorder %s36, 0
    %p430 = por %p428, %p429
    %s432 = sadd.s32 %s431, 1
    %p435 = scmp.eq.s32.totalorder %s30, 1
    %p436 = scmp.ne.s32.totalorder %s431, %s433
    %p437 = scmp.eq.s32.totalorder %s30, 0
    %p438 = por %p436, %p437
    %p439 = scmp.ne.s32.totalorder %s431, %s433
    %p440 = scmp.eq.s32.totalorder %s35, 1
    %p441 = por %p439, %p440
    %p442 = scmp.ne.s32.totalorder %s433, %s434
    %p443 = scmp.eq.s32.totalorder %s35, 0
    %p444 = por %p442, %p443
    %p445 = scmp.ne.s32.totalorder %s433, %s434
    %p446 = scmp.eq.s32.totalorder %s36, 1
    %p447 = por %p445, %p446
    %p449 = scmp.ne.s32.totalorder %s434, %s448
    %p450 = scmp.eq.s32.totalorder %s36, 0
    %p451 = por %p449, %p450
    %s453 = sadd.s32 %s452, 1
    %p456 = scmp.eq.s32.totalorder %s30, 1
    %p457 = scmp.ne.s32.totalorder %s452, %s454
    %p458 = scmp.eq.s32.totalorder %s30, 0
    %p459 = por %p457, %p458
    %p460 = scmp.ne.s32.totalorder %s452, %s454
    %p461 = scmp.eq.s32.totalorder %s35, 1
    %p462 = por %p460, %p461
    %p463 = scmp.ne.s32.totalorder %s454, %s455
    %p464 = scmp.eq.s32.totalorder %s35, 0
    %p465 = por %p463, %p464
    %p466 = scmp.ne.s32.totalorder %s454, %s455
    %p467 = scmp.eq.s32.totalorder %s36, 1
    %p468 = por %p466, %p467
    %p470 = scmp.ne.s32.totalorder %s455, %s469
    %p471 = scmp.eq.s32.totalorder %s36, 0
    %p472 = por %p470, %p471
    %s474 = sadd.s32 %s473, 1
    %p477 = scmp.eq.s32.totalorder %s30, 1
    %p478 = scmp.ne.s32.totalorder %s473, %s475
    %p479 = scmp.eq.s32.totalorder %s30, 0
    %p480 = por %p478, %p479
    %p481 = scmp.ne.s32.totalorder %s473, %s475
    %p482 = scmp.eq.s32.totalorder %s35, 1
    %p483 = por %p481, %p482
    %p484 = scmp.ne.s32.totalorder %s475, %s476
    %p485 = scmp.eq.s32.totalorder %s35, 0
    %p486 = por %p484, %p485
    %p487 = scmp.ne.s32.totalorder %s475, %s476
    %p488 = scmp.eq.s32.totalorder %s36, 1
    %p489 = por %p487, %p488
    %p491 = scmp.ne.s32.totalorder %s476, %s490
    %p492 = scmp.eq.s32.totalorder %s36, 0
    %p493 = por %p491, %p492
    %s495 = sadd.s32 %s494, 1
    %p498 = scmp.eq.s32.totalorder %s30, 1
    %p499 = scmp.ne.s32.totalorder %s494, %s496
    %p500 = scmp.eq.s32.totalorder %s30, 0
    %p501 = por %p499, %p500
    %p502 = scmp.ne.s32.totalorder %s494, %s496
    %p503 = scmp.eq.s32.totalorder %s35, 1
    %p504 = por %p502, %p503
    %p505 = scmp.ne.s32.totalorder %s496, %s497
    %p506 = scmp.eq.s32.totalorder %s35, 0
    %p507 = por %p505, %p506
    %p508 = scmp.ne.s32.totalorder %s496, %s497
    %p509 = scmp.eq.s32.totalorder %s36, 1
    %p510 = por %p508, %p509
    %p512 = scmp.ne.s32.totalorder %s497, %s511
    %p513 = scmp.eq.s32.totalorder %s36, 0
    %p514 = por %p512, %p513
    %s516 = sadd.s32 %s515, 1
    %p519 = scmp.eq.s32.totalorder %s30, 1
    %p520 = scmp.ne.s32.totalorder %s515, %s517
    %p521 = scmp.eq.s32.totalorder %s30, 0
    %p522 = por %p520, %p521
    %p523 = scmp.ne.s32.totalorder %s515, %s517
    %p524 = scmp.eq.s32.totalorder %s35, 1
    %p525 = por %p523, %p524
    %p526 = scmp.ne.s32.totalorder %s517, %s518
    %p527 = scmp.eq.s32.totalorder %s35, 0
    %p528 = por %p526, %p527
    %p529 = scmp.ne.s32.totalorder %s517, %s518
    %p530 = scmp.eq.s32.totalorder %s36, 1
    %p531 = por %p529, %p530
    %p533 = scmp.ne.s32.totalorder %s518, %s532
    %p534 = scmp.eq.s32.totalorder %s36, 0
    %p535 = por %p533, %p534
    %s537 = sadd.s32 %s536, 1
    %p540 = scmp.eq.s32.totalorder %s30, 1
    %p541 = scmp.ne.s32.totalorder %s536, %s538
    %p542 = scmp.eq.s32.totalorder %s30, 0
    %p543 = por %p541, %p542
    %p544 = scmp.ne.s32.totalorder %s536, %s538
    %p545 = scmp.eq.s32.totalorder %s35, 1
    %p546 = por %p544, %p545
    %p547 = scmp.ne.s32.totalorder %s538, %s539
    %p548 = scmp.eq.s32.totalorder %s35, 0
    %p549 = por %p547, %p548
    %p550 = scmp.ne.s32.totalorder %s538, %s539
    %p551 = scmp.eq.s32.totalorder %s36, 1
    %p552 = por %p550, %p551
    %p554 = scmp.ne.s32.totalorder %s539, %s553
    %p555 = scmp.eq.s32.totalorder %s36, 0
    %p556 = por %p554, %p555
    %s557 = ssub.s32 %s30, %s37
    %p558 = scmp.eq.s32.totalorder %s557, 0
    %s560 = sadd.s32 %s559, 1
    %s561 = scalar_select %p558, %s559, %s560
    %p564 = pneg %p558
    %p565 = scmp.eq.s32.totalorder %s30, 1
    %p566 = por %p564, %p565
    %p567 = scmp.ne.s32.totalorder %s559, %s562
    %p568 = scmp.eq.s32.totalorder %s30, 0
    %p569 = por %p567, %p568
    %p570 = scmp.ne.s32.totalorder %s559, %s562
    %p571 = scmp.eq.s32.totalorder %s35, 1
    %p572 = por %p570, %p571
    %p573 = scmp.ne.s32.totalorder %s562, %s563
    %p574 = scmp.eq.s32.totalorder %s35, 0
    %p575 = por %p573, %p574
    %p576 = scmp.ne.s32.totalorder %s562, %s563
    %p577 = scmp.eq.s32.totalorder %s36, 1
    %p578 = por %p576, %p577
    %p580 = scmp.ne.s32.totalorder %s563, %s579
    %p581 = scmp.eq.s32.totalorder %s36, 0
    %p582 = por %p580, %p581
    %p583 = scmp.le.s32.totalorder 1, %s30
    %p584 = scmp.lt.s32.totalorder %s30, 3
    %p585 = pnand %p583, %p584
    %p586 = pneg %p585
    // Predicated region
    $region9: #{transformer_fwd.7} parent=5 // pred_check
      _
    $region10: #{transformer_fwd.7} parent=5 // pred_check_branch
      %588 = sbr.rel (%p585) target = $region12
    $region11: #{transformer_fwd.7} parent=5 // pred_region
      %s589 = ssub.s32 %s30, 1
      // Predicated region
      $region13: #{transformer_fwd.7} parent=11 // pred_check
        %p590 = pneg %p103
      $region14: #{transformer_fwd.7} parent=11 // pred_check_branch
        %592 = sbr.rel (%p590) target = $region16
      $region15: #{transformer_fwd.7} parent=11 // pred_region
        _
      $region16: #{transformer_fwd.7} parent=11 // pred_fallthru
        _
      // Predicated region
      $region17: #{transformer_fwd.7} parent=11 // pred_check
        %p593 = pneg %p150
      $region18: #{transformer_fwd.7} parent=11 // pred_check_branch
        %595 = sbr.rel (%p593) target = $region20
      $region19: #{transformer_fwd.7} parent=11 // pred_region
        _
      $region20: #{transformer_fwd.7} parent=11 // pred_fallthru
        _
      // Predicated region
      $region21: #{transformer_fwd.7} parent=11 // pred_check
        %p596 = pneg %p171
      $region22: #{transformer_fwd.7} parent=11 // pred_check_branch
        %598 = sbr.rel (%p596) target = $region24
      $region23: #{transformer_fwd.7} parent=11 // pred_region
        _
      $region24: #{transformer_fwd.7} parent=11 // pred_fallthru
        _
      // Predicated region
      $region25: #{transformer_fwd.7} parent=11 // pred_check
        %p599 = pneg %p192
      $region26: #{transformer_fwd.7} parent=11 // pred_check_branch
        %601 = sbr.rel (%p599) target = $region28
      $region27: #{transformer_fwd.7} parent=11 // pred_region
        _
      $region28: #{transformer_fwd.7} parent=11 // pred_fallthru
        _
      // Predicated region
      $region29: #{transformer_fwd.7} parent=11 // pred_check
        %p602 = pneg %p213
      $region30: #{transformer_fwd.7} parent=11 // pred_check_branch
        %604 = sbr.rel (%p602) target = $region32
      $region31: #{transformer_fwd.7} parent=11 // pred_region
        _
      $region32: #{transformer_fwd.7} parent=11 // pred_fallthru
        _
      // Predicated region
      $region33: #{transformer_fwd.7} parent=11 // pred_check
        %p605 = pneg %p234
      $region34: #{transformer_fwd.7} parent=11 // pred_check_branch
        %607 = sbr.rel (%p605) target = $region36
      $region35: #{transformer_fwd.7} parent=11 // pred_region
        _
      $region36: #{transformer_fwd.7} parent=11 // pred_fallthru
        _
      // Predicated region
      $region37: #{transformer_fwd.7} parent=11 // pred_check
        %p608 = pneg %p255
      $region38: #{transformer_fwd.7} parent=11 // pred_check_branch
        %610 = sbr.rel (%p608) target = $region40
      $region39: #{transformer_fwd.7} parent=11 // pred_region
        _
      $region40: #{transformer_fwd.7} parent=11 // pred_fallthru
        _
      // Predicated region
      $region41: #{transformer_fwd.7} parent=11 // pred_check
        %p611 = pneg %p276
      $region42: #{transformer_fwd.7} parent=11 // pred_check_branch
        %613 = sbr.rel (%p611) target = $region44
      $region43: #{transformer_fwd.7} parent=11 // pred_region
        _
      $region44: #{transformer_fwd.7} parent=11 // pred_fallthru
        _
      // Predicated region
      $region45: #{transformer_fwd.7} parent=11 // pred_check
        %p614 = pneg %p297
      $region46: #{transformer_fwd.7} parent=11 // pred_check_branch
        %616 = sbr.rel (%p614) target = $region48
      $region47: #{transformer_fwd.7} parent=11 // pred_region
        _
      $region48: #{transformer_fwd.7} parent=11 // pred_fallthru
        _
      // Predicated region
      $region49: #{transformer_fwd.7} parent=11 // pred_check
        %p617 = pneg %p318
      $region50: #{transformer_fwd.7} parent=11 // pred_check_branch
        %619 = sbr.rel (%p617) target = $region52
      $region51: #{transformer_fwd.7} parent=11 // pred_region
        _
      $region52: #{transformer_fwd.7} parent=11 // pred_fallthru
        _
      // Predicated region
      $region53: #{transformer_fwd.7} parent=11 // pred_check
        %p620 = pneg %p339
      $region54: #{transformer_fwd.7} parent=11 // pred_check_branch
        %622 = sbr.rel (%p620) target = $region56
      $region55: #{transformer_fwd.7} parent=11 // pred_region
        _
      $region56: #{transformer_fwd.7} parent=11 // pred_fallthru
        _
      // Predicated region
      $region57: #{transformer_fwd.7} parent=11 // pred_check
        %p623 = pneg %p360
      $region58: #{transformer_fwd.7} parent=11 // pred_check_branch
        %625 = sbr.rel (%p623) target = $region60
      $region59: #{transformer_fwd.7} parent=11 // pred_region
        _
      $region60: #{transformer_fwd.7} parent=11 // pred_fallthru
        _
      // Predicated region
      $region61: #{transformer_fwd.7} parent=11 // pred_check
        %p626 = pneg %p381
      $region62: #{transformer_fwd.7} parent=11 // pred_check_branch
        %628 = sbr.rel (%p626) target = $region64
      $region63: #{transformer_fwd.7} parent=11 // pred_region
        _
      $region64: #{transformer_fwd.7} parent=11 // pred_fallthru
        _
      // Predicated region
      $region65: #{transformer_fwd.7} parent=11 // pred_check
        %p629 = pneg %p402
      $region66: #{transformer_fwd.7} parent=11 // pred_check_branch
        %631 = sbr.rel (%p629) target = $region68
      $region67: #{transformer_fwd.7} parent=11 // pred_region
        _
      $region68: #{transformer_fwd.7} parent=11 // pred_fallthru
        _
      // Predicated region
      $region69: #{transformer_fwd.7} parent=11 // pred_check
        %p632 = pneg %p423
      $region70: #{transformer_fwd.7} parent=11 // pred_check_branch
        %634 = sbr.rel (%p632) target = $region72
      $region71: #{transformer_fwd.7} parent=11 // pred_region
        _
      $region72: #{transformer_fwd.7} parent=11 // pred_fallthru
        _
      // Predicated region
      $region73: #{transformer_fwd.7} parent=11 // pred_check
        %p635 = pneg %p444
      $region74: #{transformer_fwd.7} parent=11 // pred_check_branch
        %637 = sbr.rel (%p635) target = $region76
      $region75: #{transformer_fwd.7} parent=11 // pred_region
        _
      $region76: #{transformer_fwd.7} parent=11 // pred_fallthru
        _
      // Predicated region
      $region77: #{transformer_fwd.7} parent=11 // pred_check
        %p638 = pneg %p465
      $region78: #{transformer_fwd.7} parent=11 // pred_check_branch
        %640 = sbr.rel (%p638) target = $region80
      $region79: #{transformer_fwd.7} parent=11 // pred_region
        _
      $region80: #{transformer_fwd.7} parent=11 // pred_fallthru
        _
      // Predicated region
      $region81: #{transformer_fwd.7} parent=11 // pred_check
        %p641 = pneg %p486
      $region82: #{transformer_fwd.7} parent=11 // pred_check_branch
        %643 = sbr.rel (%p641) target = $region84
      $region83: #{transformer_fwd.7} parent=11 // pred_region
        _
      $region84: #{transformer_fwd.7} parent=11 // pred_fallthru
        _
      // Predicated region
      $region85: #{transformer_fwd.7} parent=11 // pred_check
        %p644 = pneg %p507
      $region86: #{transformer_fwd.7} parent=11 // pred_check_branch
        %646 = sbr.rel (%p644) target = $region88
      $region87: #{transformer_fwd.7} parent=11 // pred_region
        _
      $region88: #{transformer_fwd.7} parent=11 // pred_fallthru
        _
      // Predicated region
      $region89: #{transformer_fwd.7} parent=11 // pred_check
        %p647 = pneg %p528
      $region90: #{transformer_fwd.7} parent=11 // pred_check_branch
        %649 = sbr.rel (%p647) target = $region92
      $region91: #{transformer_fwd.7} parent=11 // pred_region
        _
      $region92: #{transformer_fwd.7} parent=11 // pred_fallthru
        _
      // Predicated region
      $region93: #{transformer_fwd.7} parent=11 // pred_check
        %p650 = pneg %p549
      $region94: #{transformer_fwd.7} parent=11 // pred_check_branch
        %652 = sbr.rel (%p650) target = $region96
      $region95: #{transformer_fwd.7} parent=11 // pred_region
        _
      $region96: #{transformer_fwd.7} parent=11 // pred_fallthru
        _
    $region12: #{transformer_fwd.7} parent=5 // pred_fallthru
      _
    %p653 = scmp.lt.s32.totalorder %s30, 2
    // Predicated region
    $region97: #{transformer_fwd.7} parent=5 // pred_check
      %p654 = pneg %p653
    $region98: #{transformer_fwd.7} parent=5 // pred_check_branch
      %656 = sbr.rel (%p654) target = $region100
    $region99: #{transformer_fwd.7} parent=5 // pred_region
      // Predicated region
      $region101: #{transformer_fwd.7} parent=99 // pred_check
        %p657 = pneg %p50
      $region102: #{transformer_fwd.7} parent=99 // pred_check_branch
        %659 = sbr.rel (%p657) target = $region104
      $region103: #{transformer_fwd.7} parent=99 // pred_region
        %p660 = scmp.lt.s32.totalorder %s30, 1
        %s661 = scalar_select %p660, %s30, 1
        %s662 = smul.addr %s661, 8
        %s663 = scalar_lea.vmem %s0, %s662
      $region104: #{transformer_fwd.7} parent=99 // pred_fallthru
        _
      // Predicated region
      $region105: #{transformer_fwd.7} parent=99 // pred_check
        %p664 = pneg %p76
      $region106: #{transformer_fwd.7} parent=99 // pred_check_branch
        %666 = sbr.rel (%p664) target = $region108
      $region107: #{transformer_fwd.7} parent=99 // pred_region
        %p667 = scmp.lt.s32.totalorder %s30, 1
        %s668 = scalar_select %p667, %s30, 1
        %s669 = smul.addr %s668, 8
        %s670 = scalar_lea.vmem %s1, %s669
      $region108: #{transformer_fwd.7} parent=99 // pred_fallthru
        _
      // Predicated region
      $region109: #{transformer_fwd.7} parent=99 // pred_check
        %p671 = pneg %p123
      $region110: #{transformer_fwd.7} parent=99 // pred_check_branch
        %673 = sbr.rel (%p671) target = $region112
      $region111: #{transformer_fwd.7} parent=99 // pred_region
        %p674 = scmp.lt.s32.totalorder %s30, 1
        %s675 = scalar_select %p674, %s30, 1
        %s676 = scalar_lea.vmem %s3, %s675
      $region112: #{transformer_fwd.7} parent=99 // pred_fallthru
        _
    $region100: #{transformer_fwd.7} parent=5 // pred_fallthru
      _
    %p677 = scmp.le.s32.totalorder 1, %s30
    %p678 = scmp.lt.s32.totalorder %s30, 3
    %p679 = pnand %p677, %p678
    %p680 = pneg %p679
    // Predicated region
    $region113: #{transformer_fwd.7} parent=5 // pred_check
      _
    $region114: #{transformer_fwd.7} parent=5 // pred_check_branch
      %682 = sbr.rel (%p679) target = $region116
    $region115: #{transformer_fwd.7} parent=5 // pred_region
      %s683 = ssub.s32 %s30, 1
      %p684 = scmp.lt.s32.totalorder %s35, 1
      %s685 = scalar_select %p684, %s35, 1
      %s686 = smul.addr %s685, 8
      %s687 = scalar_lea.vmem %s0, %s686
      %p688 = pneg %p56
      %p689 = pneg %p53
      %p690 = scmp.lt.s32.totalorder %s35, 1
      %s691 = scalar_select %p690, %s35, 1
      %s692 = smul.addr %s691, 8
      %s693 = scalar_lea.vmem %s1, %s692
      %p694 = pneg %p82
      %p695 = pneg %p79
      %p696 = pneg %p103
      %p697 = pneg %p100
      %p698 = scmp.lt.s32.totalorder %s35, 1
      %s699 = scalar_select %p698, %s35, 1
      %s700 = scalar_lea.vmem %s3, %s699
      %p701 = pneg %p129
      %p702 = pneg %p126
      %p703 = pneg %p150
      %p704 = pneg %p147
      %p705 = pneg %p171
      %p706 = pneg %p168
      %p707 = pneg %p192
      %p708 = pneg %p189
      %p709 = pneg %p213
      %p710 = pneg %p210
      %p711 = pneg %p234
      %p712 = pneg %p231
      %p713 = pneg %p255
      %p714 = pneg %p252
      %p715 = pneg %p276
      %p716 = pneg %p273
      %p717 = pneg %p297
      %p718 = pneg %p294
      %p719 = pneg %p318
      %p720 = pneg %p315
      %p721 = pneg %p339
      %p722 = pneg %p336
      %p723 = pneg %p360
      %p724 = pneg %p357
      %p725 = pneg %p381
      %p726 = pneg %p378
      %p727 = pneg %p402
      %p728 = pneg %p399
      %p729 = pneg %p423
      %p730 = pneg %p420
      %p731 = pneg %p444
      %p732 = pneg %p441
      %p733 = pneg %p465
      %p734 = pneg %p462
      %p735 = pneg %p486
      %p736 = pneg %p483
      %p737 = pneg %p507
      %p738 = pneg %p504
      %p739 = pneg %p528
      %p740 = pneg %p525
      %p741 = pneg %p549
      %p742 = pneg %p546
      %p743 = pneg %p575
      %p744 = pneg %p572
      %p745 = scmp.lt.s32.totalorder %s35, 1
      %s746 = scalar_select %p745, %s35, 1
      %s747 = smul.addr %s746, 8
      %s748 = scalar_lea.vmem %s24, %s747
      %p749 = scmp.lt.s32.totalorder %s35, 1
      %s750 = scalar_select %p749, %s35, 1
      %s751 = smul.addr %s750, 8
      %s752 = scalar_lea.vmem %s0, %s751
      %p753 = scmp.lt.s32.totalorder %s35, 1
      %s754 = scalar_select %p753, %s35, 1
      %s755 = smul.addr %s754, 8
      %s756 = scalar_lea.vmem %s1, %s755
      %p757 = scmp.lt.s32.totalorder %s35, 1
      %s758 = scalar_select %p757, %s35, 1
      %s759 = scalar_lea.vmem %s3, %s758
      %p760 = scmp.lt.s32.totalorder %s35, 1
      %s761 = scalar_select %p760, %s35, 1
      %s762 = smul.addr %s761, 8
      %s763 = scalar_lea.vmem %s24, %s762
      %v765 = vld [vmem:[%s752] sm:$0xff]
      %v766 = vld [vmem:[%s2] sm:$0xff]
      %v767 = vld [vmem:[%s4] sm:$0xf]
      %v768 = vld [vmem:[%s4 + $0x4] sm:$0xf]
      %v769 = vld [vmem:[%s4 + $0x8] sm:$0xf]
      %v770 = vld [vmem:[%s4 + $0xc] sm:$0xf]
      %v771 = vld [vmem:[%s5] sm:$0xf]
      %v772 = vld [vmem:[%s5 + $0x4] sm:$0xf]
      %v773 = vld [vmem:[%s5 + $0x8] sm:$0xf]
      %v774 = vld [vmem:[%s5 + $0xc] sm:$0xf]
      %v775 = vld [vmem:[%s6] sm:$0xf]
      %v776 = vld [vmem:[%s6 + $0x4] sm:$0xf]
      %v777 = vld [vmem:[%s6 + $0x8] sm:$0xf]
      %v778 = vld [vmem:[%s6 + $0xc] sm:$0xf]
      %v779 = vld [vmem:[%s7] sm:$0xf]
      %v780 = vld [vmem:[%s7 + $0x4] sm:$0xf]
      %v781 = vld [vmem:[%s7 + $0x8] sm:$0xf]
      %v782 = vld [vmem:[%s7 + $0xc] sm:$0xf]
      %v783 = vld [vmem:[%s8] sm:$0x1]
      %v784 = vpack.c.bf16 %v765, %v765
      %v789 = vunpack.c.l.b16 %v767
      %v790 = vunpack.c.l.b16 %v768
      %v791 = vunpack.c.l.b16 %v769
      %v792 = vunpack.c.l.b16 %v770
      %v793 = vpack.c.b16 %v790, %v789
      %v794 = vpack.c.b16 %v792, %v791
      %vm797 = vcmask 261120
      %v799 = vsel %vm797, %v784, 0
      %801 = vmatprep.subr.bf16.mxu0 0
      %802 = vmatpush1.bf16.msra.mxu0 %v793
      %803 = vmatprep.subr.bf16.mxu0 0
      %804 = vmatpush1.bf16.msra.mxu0 %v794
      %805 = vmatprep.subr.bf16.mxu0 0
      %806 = vmatpush1.bf16.msra.mxu0 0
      %807 = vmatprep.subr.bf16.mxu0 0
      %808 = vmatpush1.bf16.msra.mxu0 0
      %809 = vmatprep.subr.bf16.mxu0 0
      %810 = vmatpush1.bf16.msra.mxu0 0
      %811 = vmatprep.subr.bf16.mxu0 0
      %812 = vmatpush1.bf16.msra.mxu0 0
      %813 = vmatprep.subr.bf16.mxu0 0
      %814 = vmatpush1.bf16.msra.mxu0 0
      %815 = vmatprep.subr.bf16.mxu0 0
      %816 = vmatpush1.bf16.msra.mxu0 0
      %817 = vmatprep.subr.bf16.mxu0 0
      %818 = vmatpush1.bf16.msra.mxu0 0
      %819 = vmatprep.subr.bf16.mxu0 0
      %820 = vmatpush1.bf16.msra.mxu0 0
      %821 = vmatprep.subr.bf16.mxu0 0
      %822 = vmatpush1.bf16.msra.mxu0 0
      %823 = vmatprep.subr.bf16.mxu0 0
      %824 = vmatpush1.bf16.msra.mxu0 0
      %825 = vmatprep.subr.bf16.mxu0 0
      %826 = vmatpush1.bf16.msra.mxu0 0
      %827 = vmatprep.subr.bf16.mxu0 0
      %828 = vmatpush1.bf16.msra.mxu0 0
      %829 = vmatprep.subr.bf16.mxu0 0
      %830 = vmatpush1.bf16.msra.mxu0 0
      %831 = vmatprep.subr.bf16.mxu0 0
      %832 = vmatpush1.bf16.msra.mxu0 0
      %833 = vmatprep.mubr.bf16.mxu0 0
      %834 = vmatmul.mubr.bf16.gmra.mrb[0].mxu0 %v799
      %v835 = vpop.f32.mrb[0].mxu0
      %v836 = vadd.f32 0.0, %v835
      %v837 = vpop.f32.mrb[0].mxu0
      %v838 = vpop.f32.mrb[0].mxu0
      %v839 = vpop.f32.mrb[0].mxu0
      %840 = vdwg.mxu0
      %v845 = vunpack.c.l.b16 %v771
      %v846 = vunpack.c.l.b16 %v772
      %v847 = vunpack.c.l.b16 %v773
      %v848 = vunpack.c.l.b16 %v774
      %v849 = vpack.c.b16 %v846, %v845
      %v850 = vpack.c.b16 %v848, %v847
      %853 = vmatprep.subr.bf16.mxu0 0
      %854 = vmatpush1.bf16.msra.mxu0 %v849
      %855 = vmatprep.subr.bf16.mxu0 0
      %856 = vmatpush1.bf16.msra.mxu0 %v850
      %857 = vmatprep.subr.bf16.mxu0 0
      %858 = vmatpush1.bf16.msra.mxu0 0
      %859 = vmatprep.subr.bf16.mxu0 0
      %860 = vmatpush1.bf16.msra.mxu0 0
      %861 = vmatprep.subr.bf16.mxu0 0
      %862 = vmatpush1.bf16.msra.mxu0 0
      %863 = vmatprep.subr.bf16.mxu0 0
      %864 = vmatpush1.bf16.msra.mxu0 0
      %865 = vmatprep.subr.bf16.mxu0 0
      %866 = vmatpush1.bf16.msra.mxu0 0
      %867 = vmatprep.subr.bf16.mxu0 0
      %868 = vmatpush1.bf16.msra.mxu0 0
      %869 = vmatprep.subr.bf16.mxu0 0
      %870 = vmatpush1.bf16.msra.mxu0 0
      %871 = vmatprep.subr.bf16.mxu0 0
      %872 = vmatpush1.bf16.msra.mxu0 0
      %873 = vmatprep.subr.bf16.mxu0 0
      %874 = vmatpush1.bf16.msra.mxu0 0
      %875 = vmatprep.subr.bf16.mxu0 0
      %876 = vmatpush1.bf16.msra.mxu0 0
      %877 = vmatprep.subr.bf16.mxu0 0
      %878 = vmatpush1.bf16.msra.mxu0 0
      %879 = vmatprep.subr.bf16.mxu0 0
      %880 = vmatpush1.bf16.msra.mxu0 0
      %881 = vmatprep.subr.bf16.mxu0 0
      %882 = vmatpush1.bf16.msra.mxu0 0
      %883 = vmatprep.subr.bf16.mxu0 0
      %884 = vmatpush1.bf16.msra.mxu0 0
      %885 = vmatprep.mubr.bf16.mxu0 0
      %886 = vmatmul.mubr.bf16.gmra.mrb[0].mxu0 %v799
      %v887 = vpop.f32.mrb[0].mxu0
      %v888 = vadd.f32 0.0, %v887
      %v889 = vpop.f32.mrb[0].mxu0
      %v890 = vpop.f32.mrb[0].mxu0
      %v891 = vpop.f32.mrb[0].mxu0
      %892 = vdwg.mxu0
      %v897 = vunpack.c.l.b16 %v775
      %v898 = vunpack.c.l.b16 %v776
      %v899 = vunpack.c.l.b16 %v777
      %v900 = vunpack.c.l.b16 %v778
      %v901 = vpack.c.b16 %v898, %v897
      %v902 = vpack.c.b16 %v900, %v899
      %905 = vmatprep.subr.bf16.mxu0 0
      %906 = vmatpush1.bf16.msra.mxu0 %v901
      %907 = vmatprep.subr.bf16.mxu0 0
      %908 = vmatpush1.bf16.msra.mxu0 %v902
      %909 = vmatprep.subr.bf16.mxu0 0
      %910 = vmatpush1.bf16.msra.mxu0 0
      %911 = vmatprep.subr.bf16.mxu0 0
      %912 = vmatpush1.bf16.msra.mxu0 0
      %913 = vmatprep.subr.bf16.mxu0 0
      %914 = vmatpush1.bf16.msra.mxu0 0
      %915 = vmatprep.subr.bf16.mxu0 0
      %916 = vmatpush1.bf16.msra.mxu0 0
      %917 = vmatprep.subr.bf16.mxu0 0
      %918 = vmatpush1.bf16.msra.mxu0 0
      %919 = vmatprep.subr.bf16.mxu0 0
      %920 = vmatpush1.bf16.msra.mxu0 0
      %921 = vmatprep.subr.bf16.mxu0 0
      %922 = vmatpush1.bf16.msra.mxu0 0
      %923 = vmatprep.subr.bf16.mxu0 0
      %924 = vmatpush1.bf16.msra.mxu0 0
      %925 = vmatprep.subr.bf16.mxu0 0
      %926 = vmatpush1.bf16.msra.mxu0 0
      %927 = vmatprep.subr.bf16.mxu0 0
      %928 = vmatpush1.bf16.msra.mxu0 0
      %929 = vmatprep.subr.bf16.mxu0 0
      %930 = vmatpush1.bf16.msra.mxu0 0
      %931 = vmatprep.subr.bf16.mxu0 0
      %932 = vmatpush1.bf16.msra.mxu0 0
      %933 = vmatprep.subr.bf16.mxu0 0
      %934 = vmatpush1.bf16.msra.mxu0 0
      %935 = vmatprep.subr.bf16.mxu0 0
      %936 = vmatpush1.bf16.msra.mxu0 0
      %937 = vmatprep.mubr.bf16.mxu0 0
      %938 = vmatmul.mubr.bf16.gmra.mrb[0].mxu0 %v799
      %v939 = vpop.f32.mrb[0].mxu0
      %v940 = vadd.f32 0.0, %v939
      %v941 = vpop.f32.mrb[0].mxu0
      %v942 = vpop.f32.mrb[0].mxu0
      %v943 = vpop.f32.mrb[0].mxu0
      %944 = vdwg.mxu0
      %v945 = vpack.c.bf16 %v836, %v836
      %v946 = vpack.c.bf16 %v888, %v888
      %v947 = vpack.c.bf16 %v940, %v940
      %vm948 = vcmask 130048
      %v950 = vsel %vm948, %v945, 0
      %v953 = vsel %vm948, %v946, 0
      %955 = vmatprep.subr.bf16.mxu0 0
      %956 = vmatpush1.bf16.xpose.msra.mxu0 %v953
      %957 = vmatprep.subr.bf16.mxu0 0
      %958 = vmatpush1.bf16.xpose.msra.mxu0 0
      %959 = vmatprep.subr.bf16.mxu0 0
      %960 = vmatpush1.bf16.xpose.msra.mxu0 0
      %961 = vmatprep.subr.bf16.mxu0 0
      %962 = vmatpush1.bf16.xpose.msra.mxu0 0
      %963 = vmatprep.subr.bf16.mxu0 0
      %964 = vmatpush1.bf16.xpose.msra.mxu0 0
      %965 = vmatprep.subr.bf16.mxu0 0
      %966 = vmatpush1.bf16.xpose.msra.mxu0 0
      %967 = vmatprep.subr.bf16.mxu0 0
      %968 = vmatpush1.bf16.xpose.msra.mxu0 0
      %969 = vmatprep.subr.bf16.mxu0 0
      %970 = vmatpush1.bf16.xpose.msra.mxu0 0
      %971 = vmatprep.subr.bf16.mxu0 0
      %972 = vmatpush1.bf16.xpose.msra.mxu0 0
      %973 = vmatprep.subr.bf16.mxu0 0
      %974 = vmatpush1.bf16.xpose.msra.mxu0 0
      %975 = vmatprep.subr.bf16.mxu0 0
      %976 = vmatpush1.bf16.xpose.msra.mxu0 0
      %977 = vmatprep.subr.bf16.mxu0 0
      %978 = vmatpush1.bf16.xpose.msra.mxu0 0
      %979 = vmatprep.subr.bf16.mxu0 0
      %980 = vmatpush1.bf16.xpose.msra.mxu0 0
      %981 = vmatprep.subr.bf16.mxu0 0
      %982 = vmatpush1.bf16.xpose.msra.mxu0 0
      %983 = vmatprep.subr.bf16.mxu0 0
      %984 = vmatpush1.bf16.xpose.msra.mxu0 0
      %985 = vmatprep.subr.bf16.mxu0 0
      %986 = vmatpush1.bf16.xpose.msra.mxu0 0
      %987 = vmatprep.mubr.bf16.mxu0 0
      %988 = vmatmul.mubr.bf16.gmra.mrb[0].mxu0 %v950
      %v989 = vpop.f32.mrb[0].mxu0
      %v990 = vadd.f32 %v766, %v989
      %v991 = vpop.f32.mrb[0].mxu0
      %v992 = vpop.f32.mrb[0].mxu0
      %v993 = vpop.f32.mrb[0].mxu0
      %994 = vdwg.mxu0
      %v995 = vmul.f32 %v990, 0.125
      %vm996 = vcmask 64512
      %v997 = vsel %vm996, %v995, -inf
      %998 = vmax.xlane.f32.xlu0 %v997
      %v999 = vpop.xlane.xlu0 %998
      %v1000 = vsub.f32 %v995, %v999
      %v1001 = vmul.f32 %v1000, 1.442695
      %v1002 = vpow.pop %v1001
      %v1003 = vsel %vm996, %v1002, 0.0
      %1004 = vadd.xlane.f32.xlu0 %v1003
      %v1005 = vpop.xlane.xlu0 %1004
      %v1006 = vrcp.pop %v1005
      %v1007 = vmul.f32 %v1002, %v1006
      %v1008 = vpack.c.bf16 %v1007, %v1007
      %v1010 = vsel %vm996, %v1008, 0
      %vm1012 = vcmask 1043456
      %v1014 = vsel %vm1012, %v947, 0
      %1016 = vmatprep.subr.bf16.mxu0 0
      %1017 = vmatpush1.bf16.msra.mxu0 %v1014
      %1018 = vmatprep.subr.bf16.mxu0 0
      %1019 = vmatpush1.bf16.msra.mxu0 0
      %1020 = vmatprep.subr.bf16.mxu0 0
      %1021 = vmatpush1.bf16.msra.mxu0 0
      %1022 = vmatprep.subr.bf16.mxu0 0
      %1023 = vmatpush1.bf16.msra.mxu0 0
      %1024 = vmatprep.subr.bf16.mxu0 0
      %1025 = vmatpush1.bf16.msra.mxu0 0
      %1026 = vmatprep.subr.bf16.mxu0 0
      %1027 = vmatpush1.bf16.msra.mxu0 0
      %1028 = vmatprep.subr.bf16.mxu0 0
      %1029 = vmatpush1.bf16.msra.mxu0 0
      %1030 = vmatprep.subr.bf16.mxu0 0
      %1031 = vmatpush1.bf16.msra.mxu0 0
      %1032 = vmatprep.subr.bf16.mxu0 0
      %1033 = vmatpush1.bf16.msra.mxu0 0
      %1034 = vmatprep.subr.bf16.mxu0 0
      %1035 = vmatpush1.bf16.msra.mxu0 0
      %1036 = vmatprep.subr.bf16.mxu0 0
      %1037 = vmatpush1.bf16.msra.mxu0 0
      %1038 = vmatprep.subr.bf16.mxu0 0
      %1039 = vmatpush1.bf16.msra.mxu0 0
      %1040 = vmatprep.subr.bf16.mxu0 0
      %1041 = vmatpush1.bf16.msra.mxu0 0
      %1042 = vmatprep.subr.bf16.mxu0 0
      %1043 = vmatpush1.bf16.msra.mxu0 0
      %1044 = vmatprep.subr.bf16.mxu0 0
      %1045 = vmatpush1.bf16.msra.mxu0 0
      %1046 = vmatprep.subr.bf16.mxu0 0
      %1047 = vmatpush1.bf16.msra.mxu0 0
      %1048 = vmatprep.mubr.bf16.mxu0 0
      %1049 = vmatmul.mubr.bf16.gmra.mrb[0].mxu0 %v1010
      %v1050 = vpop.f32.mrb[0].mxu0
      %v1051 = vadd.f32 0.0, %v1050
      %v1052 = vpop.f32.mrb[0].mxu0
      %v1053 = vpop.f32.mrb[0].mxu0
      %v1054 = vpop.f32.mrb[0].mxu0
      %1055 = vdwg.mxu0
      %v1056 = vpack.c.bf16 %v1051, %v1051
      %1058 = vrot.lane.b32.xlu0 %v945, 112
      %v1059 = vpop.permute.xlu0 %1058
      %1061 = vrot.lane.b32.xlu0 %v946, 112
      %v1062 = vpop.permute.xlu0 %1061
      %v1064 = vsel %vm948, %v1059, 0
      %v1067 = vsel %vm948, %v1062, 0
      %1069 = vmatprep.subr.bf16.mxu0 0
      %1070 = vmatpush1.bf16.xpose.msra.mxu0 %v1067
      %1071 = vmatprep.subr.bf16.mxu0 0
      %1072 = vmatpush1.bf16.xpose.msra.mxu0 0
      %1073 = vmatprep.subr.bf16.mxu0 0
      %1074 = vmatpush1.bf16.xpose.msra.mxu0 0
      %1075 = vmatprep.subr.bf16.mxu0 0
      %1076 = vmatpush1.bf16.xpose.msra.mxu0 0
      %1077 = vmatprep.subr.bf16.mxu0 0
      %1078 = vmatpush1.bf16.xpose.msra.mxu0 0
      %1079 = vmatprep.subr.bf16.mxu0 0
      %1080 = vmatpush1.bf16.xpose.msra.mxu0 0
      %1081 = vmatprep.subr.bf16.mxu0 0
      %1082 = vmatpush1.bf16.xpose.msra.mxu0 0
      %1083 = vmatprep.subr.bf16.mxu0 0
      %1084 = vmatpush1.bf16.xpose.msra.mxu0 0
      %1085 = vmatprep.subr.bf16.mxu0 0
      %1086 = vmatpush1.bf16.xpose.msra.mxu0 0
      %1087 = vmatprep.subr.bf16.mxu0 0
      %1088 = vmatpush1.bf16.xpose.msra.mxu0 0
      %1089 = vmatprep.subr.bf16.mxu0 0
      %1090 = vmatpush1.bf16.xpose.msra.mxu0 0
      %1091 = vmatprep.subr.bf16.mxu0 0
      %1092 = vmatpush1.bf16.xpose.msra.mxu0 0
      %1093 = vmatprep.subr.bf16.mxu0 0
      %1094 = vmatpush1.bf16.xpose.msra.mxu0 0
      %1095 = vmatprep.subr.bf16.mxu0 0
      %1096 = vmatpush1.bf16.xpose.msra.mxu0 0
      %1097 = vmatprep.subr.bf16.mxu0 0
      %1098 = vmatpush1.bf16.xpose.msra.mxu0 0
      %1099 = vmatprep.subr.bf16.mxu0 0
      %1100 = vmatpush1.bf16.xpose.msra.mxu0 0
      %1101 = vmatprep.mubr.bf16.mxu0 0
      %1102 = vmatmul.mubr.bf16.gmra.mrb[0].mxu0 %v1064
      %v1103 = vpop.f32.mrb[0].mxu0
      %v1104 = vadd.f32 %v766, %v1103
      %v1105 = vpop.f32.mrb[0].mxu0
      %v1106 = vpop.f32.mrb[0].mxu0
      %v1107 = vpop.f32.mrb[0].mxu0
      %1108 = vdwg.mxu0
      %v1109 = vmul.f32 %v1104, 0.125
      %v1110 = vsel %vm996, %v1109, -inf
      %1111 = vmax.xlane.f32.xlu0 %v1110
      %v1112 = vpop.xlane.xlu0 %1111
      %v1113 = vsub.f32 %v1109, %v1112
      %v1114 = vmul.f32 %v1113, 1.442695
      %v1115 = vpow.pop %v1114
      %v1116 = vsel %vm996, %v1115, 0.0
      %1117 = vadd.xlane.f32.xlu0 %v1116
      %v1118 = vpop.xlane.xlu0 %1117
      %v1119 = vrcp.pop %v1118
      %v1120 = vmul.f32 %v1115, %v1119
      %v1121 = vpack.c.bf16 %v1120, %v1120
      %1123 = vrot.lane.b32.xlu0 %v947, 112
      %v1124 = vpop.permute.xlu0 %1123
      %v1126 = vsel %vm996, %v1121, 0
      %v1129 = vsel %vm1012, %v1124, 0
      %1131 = vmatprep.subr.bf16.mxu0 0
      %1132 = vmatpush1.bf16.msra.mxu0 %v1129
      %1133 = vmatprep.subr.bf16.mxu0 0
      %1134 = vmatpush1.bf16.msra.mxu0 0
      %1135 = vmatprep.subr.bf16.mxu0 0
      %1136 = vmatpush1.bf16.msra.mxu0 0
      %1137 = vmatprep.subr.bf16.mxu0 0
      %1138 = vmatpush1.bf16.msra.mxu0 0
      %1139 = vmatprep.subr.bf16.mxu0 0
      %1140 = vmatpush1.bf16.msra.mxu0 0
      %1141 = vmatprep.subr.bf16.mxu0 0
      %1142 = vmatpush1.bf16.msra.mxu0 0
      %1143 = vmatprep.subr.bf16.mxu0 0
      %1144 = vmatpush1.bf16.msra.mxu0 0
      %1145 = vmatprep.subr.bf16.mxu0 0
      %1146 = vmatpush1.bf16.msra.mxu0 0
      %1147 = vmatprep.subr.bf16.mxu0 0
      %1148 = vmatpush1.bf16.msra.mxu0 0
      %1149 = vmatprep.subr.bf16.mxu0 0
      %1150 = vmatpush1.bf16.msra.mxu0 0
      %1151 = vmatprep.subr.bf16.mxu0 0
      %1152 = vmatpush1.bf16.msra.mxu0 0
      %1153 = vmatprep.subr.bf16.mxu0 0
      %1154 = vmatpush1.bf16.msra.mxu0 0
      %1155 = vmatprep.subr.bf16.mxu0 0
      %1156 = vmatpush1.bf16.msra.mxu0 0
      %1157 = vmatprep.subr.bf16.mxu0 0
      %1158 = vmatpush1.bf16.msra.mxu0 0
      %1159 = vmatprep.subr.bf16.mxu0 0
      %1160 = vmatpush1.bf16.msra.mxu0 0
      %1161 = vmatprep.subr.bf16.mxu0 0
      %1162 = vmatpush1.bf16.msra.mxu0 0
      %1163 = vmatprep.mubr.bf16.mxu0 0
      %1164 = vmatmul.mubr.bf16.gmra.mrb[0].mxu0 %v1126
      %v1165 = vpop.f32.mrb[0].mxu0
      %v1166 = vadd.f32 0.0, %v1165
      %v1167 = vpop.f32.mrb[0].mxu0
      %v1168 = vpop.f32.mrb[0].mxu0
      %v1169 = vpop.f32.mrb[0].mxu0
      %1170 = vdwg.mxu0
      %v1171 = vpack.c.bf16 %v1166, %v1166
      %v1174 = vunpack.c.l.b16 %v781
      %v1175 = vunpack.c.l.b16 %v782
      %v1176 = vpack.c.b16 %v1175, %v1174
      %v1179 = vsel %vm948, %v1171, 0
      %1181 = vmatprep.subr.bf16.mxu0 0
      %1182 = vmatpush1.bf16.msra.mxu0 %v1176
      %1183 = vmatprep.subr.bf16.mxu0 0
      %1184 = vmatpush1.bf16.msra.mxu0 0
      %1185 = vmatprep.subr.bf16.mxu0 0
      %1186 = vmatpush1.bf16.msra.mxu0 0
      %1187 = vmatprep.subr.bf16.mxu0 0
      %1188 = vmatpush1.bf16.msra.mxu0 0
      %1189 = vmatprep.subr.bf16.mxu0 0
      %1190 = vmatpush1.bf16.msra.mxu0 0
      %1191 = vmatprep.subr.bf16.mxu0 0
      %1192 = vmatpush1.bf16.msra.mxu0 0
      %1193 = vmatprep.subr.bf16.mxu0 0
      %1194 = vmatpush1.bf16.msra.mxu0 0
      %1195 = vmatprep.subr.bf16.mxu0 0
      %1196 = vmatpush1.bf16.msra.mxu0 0
      %1197 = vmatprep.subr.bf16.mxu0 0
      %1198 = vmatpush1.bf16.msra.mxu0 0
      %1199 = vmatprep.subr.bf16.mxu0 0
      %1200 = vmatpush1.bf16.msra.mxu0 0
      %1201 = vmatprep.subr.bf16.mxu0 0
      %1202 = vmatpush1.bf16.msra.mxu0 0
      %1203 = vmatprep.subr.bf16.mxu0 0
      %1204 = vmatpush1.bf16.msra.mxu0 0
      %1205 = vmatprep.subr.bf16.mxu0 0
      %1206 = vmatpush1.bf16.msra.mxu0 0
      %1207 = vmatprep.subr.bf16.mxu0 0
      %1208 = vmatpush1.bf16.msra.mxu0 0
      %1209 = vmatprep.subr.bf16.mxu0 0
      %1210 = vmatpush1.bf16.msra.mxu0 0
      %1211 = vmatprep.subr.bf16.mxu0 0
      %1212 = vmatpush1.bf16.msra.mxu0 0
      %1213 = vmatprep.mubr.bf16.mxu0 0
      %1214 = vmatmul.mubr.bf16.gmra.mrb[0].mxu0 %v1179
      %v1215 = vpop.f32.mrb[0].mxu0
      %v1216 = vadd.f32 0.0, %v1215
      %v1217 = vpop.f32.mrb[0].mxu0
      %v1218 = vpop.f32.mrb[0].mxu0
      %v1219 = vpop.f32.mrb[0].mxu0
      %1220 = vdwg.mxu0
      %v1223 = vunpack.c.l.b16 %v779
      %v1224 = vunpack.c.l.b16 %v780
      %v1225 = vpack.c.b16 %v1224, %v1223
      %v1228 = vsel %vm948, %v1056, 0
      %1230 = vmatprep.subr.bf16.mxu0 0
      %1231 = vmatpush1.bf16.msra.mxu0 %v1225
      %1232 = vmatprep.subr.bf16.mxu0 0
      %1233 = vmatpush1.bf16.msra.mxu0 0
      %1234 = vmatprep.subr.bf16.mxu0 0
      %1235 = vmatpush1.bf16.msra.mxu0 0
      %1236 = vmatprep.subr.bf16.mxu0 0
      %1237 = vmatpush1.bf16.msra.mxu0 0
      %1238 = vmatprep.subr.bf16.mxu0 0
      %1239 = vmatpush1.bf16.msra.mxu0 0
      %1240 = vmatprep.subr.bf16.mxu0 0
      %1241 = vmatpush1.bf16.msra.mxu0 0
      %1242 = vmatprep.subr.bf16.mxu0 0
      %1243 = vmatpush1.bf16.msra.mxu0 0
      %1244 = vmatprep.subr.bf16.mxu0 0
      %1245 = vmatpush1.bf16.msra.mxu0 0
      %1246 = vmatprep.subr.bf16.mxu0 0
      %1247 = vmatpush1.bf16.msra.mxu0 0
      %1248 = vmatprep.subr.bf16.mxu0 0
      %1249 = vmatpush1.bf16.msra.mxu0 0
      %1250 = vmatprep.subr.bf16.mxu0 0
      %1251 = vmatpush1.bf16.msra.mxu0 0
      %1252 = vmatprep.subr.bf16.mxu0 0
      %1253 = vmatpush1.bf16.msra.mxu0 0
      %1254 = vmatprep.subr.bf16.mxu0 0
      %1255 = vmatpush1.bf16.msra.mxu0 0
      %1256 = vmatprep.subr.bf16.mxu0 0
      %1257 = vmatpush1.bf16.msra.mxu0 0
      %1258 = vmatprep.subr.bf16.mxu0 0
      %1259 = vmatpush1.bf16.msra.mxu0 0
      %1260 = vmatprep.subr.bf16.mxu0 0
      %1261 = vmatpush1.bf16.msra.mxu0 0
      %1262 = vmatprep.mubr.bf16.mxu0 0
      %1263 = vmatmul.mubr.bf16.gmra.mrb[0].mxu0 %v1228
      %v1264 = vpop.f32.mrb[0].mxu0
      %v1265 = vadd.f32 %v1216, %v1264
      %v1266 = vpop.f32.mrb[0].mxu0
      %v1267 = vpop.f32.mrb[0].mxu0
      %v1268 = vpop.f32.mrb[0].mxu0
      %1269 = vdwg.mxu0
      %v1271 = vlaneseq
      %v1272 = vshrl.u32 %v1271, 7
      %v1273 = vsub.s32 0, %v1272
      %v1274 = vrot.slane %v783, %v1273
      %v1276 = vadd.f32 %v1265, %v1274
      %v1277 = vadd.f32 %v1276, %v765
      %v1278 = vld [vmem:[%s9] sm:$0x1]
      %v1279 = vld [vmem:[%s10] sm:$0x1]
      %v1280 = vsel %vm797, %v1277, 0.0
      %1281 = vadd.xlane.f32.xlu0 %v1280
      %v1282 = vpop.xlane.xlu0 %1281
      %v1283 = vrcp.pop 32.0
      %v1284 = vmul.f32 %v1282, %v1283
      %v1285 = vsub.f32 %v1277, %v1284
      %v1286 = vmul.f32 %v1285, %v1285
      %v1287 = vsel %vm797, %v1286, 0.0
      %1288 = vadd.xlane.f32.xlu0 %v1287
      %v1289 = vpop.xlane.xlu0 %1288
      %v1290 = vmul.f32 %v1289, %v1283
      %v1291 = vadd.f32 %v1290, 1e-05
      %v1292 = vrsqrt.pop %v1291
      %v1293 = vmul.f32 %v1285, %v1292
      %v1295 = vlaneseq
      %v1296 = vshrl.u32 %v1295, 7
      %v1297 = vsub.s32 0, %v1296
      %v1298 = vrot.slane %v1278, %v1297
      %v1300 = vmul.f32 %v1293, %v1298
      %v1302 = vlaneseq
      %v1303 = vshrl.u32 %v1302, 7
      %v1304 = vsub.s32 0, %v1303
      %v1305 = vrot.slane %v1279, %v1304
      %v1307 = vadd.f32 %v1300, %v1305
      %v1308 = vld [vmem:[%s756] sm:$0xff]
      %v1309 = vld [vmem:[%s759] sm:$0x1]
      %v1310 = vld [vmem:[%s11] sm:$0xf]
      %v1311 = vld [vmem:[%s11 + $0x4] sm:$0xf]
      %v1312 = vld [vmem:[%s11 + $0x8] sm:$0xf]
      %v1313 = vld [vmem:[%s11 + $0xc] sm:$0xf]
      %v1314 = vld [vmem:[%s12] sm:$0xf]
      %v1315 = vld [vmem:[%s12 + $0x4] sm:$0xf]
      %v1316 = vld [vmem:[%s12 + $0x8] sm:$0xf]
      %v1317 = vld [vmem:[%s12 + $0xc] sm:$0xf]
      %v1318 = vld [vmem:[%s13] sm:$0xf]
      %v1319 = vld [vmem:[%s13 + $0x4] sm:$0xf]
      %v1320 = vld [vmem:[%s13 + $0x8] sm:$0xf]
      %v1321 = vld [vmem:[%s13 + $0xc] sm:$0xf]
      %v1322 = vld [vmem:[%s14] sm:$0xf]
      %v1323 = vld [vmem:[%s14 + $0x4] sm:$0xf]
      %v1324 = vld [vmem:[%s14 + $0x8] sm:$0xf]
      %v1325 = vld [vmem:[%s14 + $0xc] sm:$0xf]
      %v1326 = vld [vmem:[%s15] sm:$0x1]
      %v1327 = vpack.c.bf16 %v1307, %v1307
      %v1328 = vpack.c.bf16 %v1308, %v1308
      %v1333 = vunpack.c.l.b16 %v1310
      %v1334 = vunpack.c.l.b16 %v1311
      %v1335 = vunpack.c.l.b16 %v1312
      %v1336 = vunpack.c.l.b16 %v1313
      %v1337 = vpack.c.b16 %v1334, %v1333
      %v1338 = vpack.c.b16 %v1336, %v1335
      %v1342 = vsel %vm797, %v1327, 0
      %1344 = vmatprep.subr.bf16.mxu0 0
      %1345 = vmatpush1.bf16.msra.mxu0 %v1337
      %1346 = vmatprep.subr.bf16.mxu0 0
      %1347 = vmatpush1.bf16.msra.mxu0 %v1338
      %1348 = vmatprep.subr.bf16.mxu0 0
      %1349 = vmatpush1.bf16.msra.mxu0 0
      %1350 = vmatprep.subr.bf16.mxu0 0
      %1351 = vmatpush1.bf16.msra.mxu0 0
      %1352 = vmatprep.subr.bf16.mxu0 0
      %1353 = vmatpush1.bf16.msra.mxu0 0
      %1354 = vmatprep.subr.bf16.mxu0 0
      %1355 = vmatpush1.bf16.msra.mxu0 0
      %1356 = vmatprep.subr.bf16.mxu0 0
      %1357 = vmatpush1.bf16.msra.mxu0 0
      %1358 = vmatprep.subr.bf16.mxu0 0
      %1359 = vmatpush1.bf16.msra.mxu0 0
      %1360 = vmatprep.subr.bf16.mxu0 0
      %1361 = vmatpush1.bf16.msra.mxu0 0
      %1362 = vmatprep.subr.bf16.mxu0 0
      %1363 = vmatpush1.bf16.msra.mxu0 0
      %1364 = vmatprep.subr.bf16.mxu0 0
      %1365 = vmatpush1.bf16.msra.mxu0 0
      %1366 = vmatprep.subr.bf16.mxu0 0
      %1367 = vmatpush1.bf16.msra.mxu0 0
      %1368 = vmatprep.subr.bf16.mxu0 0
      %1369 = vmatpush1.bf16.msra.mxu0 0
      %1370 = vmatprep.subr.bf16.mxu0 0
      %1371 = vmatpush1.bf16.msra.mxu0 0
      %1372 = vmatprep.subr.bf16.mxu0 0
      %1373 = vmatpush1.bf16.msra.mxu0 0
      %1374 = vmatprep.subr.bf16.mxu0 0
      %1375 = vmatpush1.bf16.msra.mxu0 0
      %1376 = vmatprep.mubr.bf16.mxu0 0
      %1377 = vmatmul.mubr.bf16.gmra.mrb[0].mxu0 %v1342
      %v1378 = vpop.f32.mrb[0].mxu0
      %v1379 = vadd.f32 0.0, %v1378
      %v1380 = vpop.f32.mrb[0].mxu0
      %v1381 = vpop.f32.mrb[0].mxu0
      %v1382 = vpop.f32.mrb[0].mxu0
      %1383 = vdwg.mxu0
      %v1388 = vunpack.c.l.b16 %v1314
      %v1389 = vunpack.c.l.b16 %v1315
      %v1390 = vunpack.c.l.b16 %v1316
      %v1391 = vunpack.c.l.b16 %v1317
      %v1392 = vpack.c.b16 %v1389, %v1388
      %v1393 = vpack.c.b16 %v1391, %v1390
      %v1397 = vsel %vm797, %v1328, 0
      %1399 = vmatprep.subr.bf16.mxu0 0
      %1400 = vmatpush1.bf16.msra.mxu0 %v1392
      %1401 = vmatprep.subr.bf16.mxu0 0
      %1402 = vmatpush1.bf16.msra.mxu0 %v1393
      %1403 = vmatprep.subr.bf16.mxu0 0
      %1404 = vmatpush1.bf16.msra.mxu0 0
      %1405 = vmatprep.subr.bf16.mxu0 0
      %1406 = vmatpush1.bf16.msra.mxu0 0
      %1407 = vmatprep.subr.bf16.mxu0 0
      %1408 = vmatpush1.bf16.msra.mxu0 0
      %1409 = vmatprep.subr.bf16.mxu0 0
      %1410 = vmatpush1.bf16.msra.mxu0 0
      %1411 = vmatprep.subr.bf16.mxu0 0
      %1412 = vmatpush1.bf16.msra.mxu0 0
      %1413 = vmatprep.subr.bf16.mxu0 0
      %1414 = vmatpush1.bf16.msra.mxu0 0
      %1415 = vmatprep.subr.bf16.mxu0 0
      %1416 = vmatpush1.bf16.msra.mxu0 0
      %1417 = vmatprep.subr.bf16.mxu0 0
      %1418 = vmatpush1.bf16.msra.mxu0 0
      %1419 = vmatprep.subr.bf16.mxu0 0
      %1420 = vmatpush1.bf16.msra.mxu0 0
      %1421 = vmatprep.subr.bf16.mxu0 0
      %1422 = vmatpush1.bf16.msra.mxu0 0
      %1423 = vmatprep.subr.bf16.mxu0 0
      %1424 = vmatpush1.bf16.msra.mxu0 0
      %1425 = vmatprep.subr.bf16.mxu0 0
      %1426 = vmatpush1.bf16.msra.mxu0 0
      %1427 = vmatprep.subr.bf16.mxu0 0
      %1428 = vmatpush1.bf16.msra.mxu0 0
      %1429 = vmatprep.subr.bf16.mxu0 0
      %1430 = vmatpush1.bf16.msra.mxu0 0
      %1431 = vmatprep.mubr.bf16.mxu0 0
      %1432 = vmatmul.mubr.bf16.gmra.mrb[0].mxu0 %v1397
      %v1433 = vpop.f32.mrb[0].mxu0
      %v1434 = vadd.f32 0.0, %v1433
      %v1435 = vpop.f32.mrb[0].mxu0
      %v1436 = vpop.f32.mrb[0].mxu0
      %v1437 = vpop.f32.mrb[0].mxu0
      %1438 = vdwg.mxu0
      %v1443 = vunpack.c.l.b16 %v1318
      %v1444 = vunpack.c.l.b16 %v1319
      %v1445 = vunpack.c.l.b16 %v1320
      %v1446 = vunpack.c.l.b16 %v1321
      %v1447 = vpack.c.b16 %v1444, %v1443
      %v1448 = vpack.c.b16 %v1446, %v1445
      %1451 = vmatprep.subr.bf16.mxu0 0
      %1452 = vmatpush1.bf16.msra.mxu0 %v1447
      %1453 = vmatprep.subr.bf16.mxu0 0
      %1454 = vmatpush1.bf16.msra.mxu0 %v1448
      %1455 = vmatprep.subr.bf16.mxu0 0
      %1456 = vmatpush1.bf16.msra.mxu0 0
      %1457 = vmatprep.subr.bf16.mxu0 0
      %1458 = vmatpush1.bf16.msra.mxu0 0
      %1459 = vmatprep.subr.bf16.mxu0 0
      %1460 = vmatpush1.bf16.msra.mxu0 0
      %1461 = vmatprep.subr.bf16.mxu0 0
      %1462 = vmatpush1.bf16.msra.mxu0 0
      %1463 = vmatprep.subr.bf16.mxu0 0
      %1464 = vmatpush1.bf16.msra.mxu0 0
      %1465 = vmatprep.subr.bf16.mxu0 0
      %1466 = vmatpush1.bf16.msra.mxu0 0
      %1467 = vmatprep.subr.bf16.mxu0 0
      %1468 = vmatpush1.bf16.msra.mxu0 0
      %1469 = vmatprep.subr.bf16.mxu0 0
      %1470 = vmatpush1.bf16.msra.mxu0 0
      %1471 = vmatprep.subr.bf16.mxu0 0
      %1472 = vmatpush1.bf16.msra.mxu0 0
      %1473 = vmatprep.subr.bf16.mxu0 0
      %1474 = vmatpush1.bf16.msra.mxu0 0
      %1475 = vmatprep.subr.bf16.mxu0 0
      %1476 = vmatpush1.bf16.msra.mxu0 0
      %1477 = vmatprep.subr.bf16.mxu0 0
      %1478 = vmatpush1.bf16.msra.mxu0 0
      %1479 = vmatprep.subr.bf16.mxu0 0
      %1480 = vmatpush1.bf16.msra.mxu0 0
      %1481 = vmatprep.subr.bf16.mxu0 0
      %1482 = vmatpush1.bf16.msra.mxu0 0
      %1483 = vmatprep.mubr.bf16.mxu0 0
      %1484 = vmatmul.mubr.bf16.gmra.mrb[0].mxu0 %v1397
      %v1485 = vpop.f32.mrb[0].mxu0
      %v1486 = vadd.f32 0.0, %v1485
      %v1487 = vpop.f32.mrb[0].mxu0
      %v1488 = vpop.f32.mrb[0].mxu0
      %v1489 = vpop.f32.mrb[0].mxu0
      %1490 = vdwg.mxu0
      %v1491 = vpack.c.bf16 %v1379, %v1379
      %v1492 = vpack.c.bf16 %v1434, %v1434
      %v1493 = vpack.c.bf16 %v1486, %v1486
      %v1495 = vlaneseq
      %v1496 = vshrl.u32 %v1495, 7
      %v1497 = vsub.s32 0, %v1496
      %v1498 = vrot.slane %v1309, %v1497
      %v1501 = vsel %vm948, %v1491, 0
      %v1504 = vsel %vm948, %v1492, 0
      %1506 = vmatprep.subr.bf16.mxu0 0
      %1507 = vmatpush1.bf16.xpose.msra.mxu0 %v1504
      %1508 = vmatprep.subr.bf16.mxu0 0
      %1509 = vmatpush1.bf16.xpose.msra.mxu0 0
      %1510 = vmatprep.subr.bf16.mxu0 0
      %1511 = vmatpush1.bf16.xpose.msra.mxu0 0
      %1512 = vmatprep.subr.bf16.mxu0 0
      %1513 = vmatpush1.bf16.xpose.msra.mxu0 0
      %1514 = vmatprep.subr.bf16.mxu0 0
      %1515 = vmatpush1.bf16.xpose.msra.mxu0 0
      %1516 = vmatprep.subr.bf16.mxu0 0
      %1517 = vmatpush1.bf16.xpose.msra.mxu0 0
      %1518 = vmatprep.subr.bf16.mxu0 0
      %1519 = vmatpush1.bf16.xpose.msra.mxu0 0
      %1520 = vmatprep.subr.bf16.mxu0 0
      %1521 = vmatpush1.bf16.xpose.msra.mxu0 0
      %1522 = vmatprep.subr.bf16.mxu0 0
      %1523 = vmatpush1.bf16.xpose.msra.mxu0 0
      %1524 = vmatprep.subr.bf16.mxu0 0
      %1525 = vmatpush1.bf16.xpose.msra.mxu0 0
      %1526 = vmatprep.subr.bf16.mxu0 0
      %1527 = vmatpush1.bf16.xpose.msra.mxu0 0
      %1528 = vmatprep.subr.bf16.mxu0 0
      %1529 = vmatpush1.bf16.xpose.msra.mxu0 0
      %1530 = vmatprep.subr.bf16.mxu0 0
      %1531 = vmatpush1.bf16.xpose.msra.mxu0 0
      %1532 = vmatprep.subr.bf16.mxu0 0
      %1533 = vmatpush1.bf16.xpose.msra.mxu0 0
      %1534 = vmatprep.subr.bf16.mxu0 0
      %1535 = vmatpush1.bf16.xpose.msra.mxu0 0
      %1536 = vmatprep.subr.bf16.mxu0 0
      %1537 = vmatpush1.bf16.xpose.msra.mxu0 0
      %1538 = vmatprep.mubr.bf16.mxu0 0
      %1539 = vmatmul.mubr.bf16.gmra.mrb[0].mxu0 %v1501
      %v1540 = vpop.f32.mrb[0].mxu0
      %v1541 = vadd.f32 %v1498, %v1540
      %v1542 = vpop.f32.mrb[0].mxu0
      %v1543 = vpop.f32.mrb[0].mxu0
      %v1544 = vpop.f32.mrb[0].mxu0
      %1545 = vdwg.mxu0
      %v1546 = vmul.f32 %v1541, 0.125
      %v1547 = vsel %vm996, %v1546, -inf
      %1548 = vmax.xlane.f32.xlu0 %v1547
      %v1549 = vpop.xlane.xlu0 %1548
      %v1550 = vsub.f32 %v1546, %v1549
      %v1551 = vmul.f32 %v1550, 1.442695
      %v1552 = vpow.pop %v1551
      %v1553 = vsel %vm996, %v1552, 0.0
      %1554 = vadd.xlane.f32.xlu0 %v1553
      %v1555 = vpop.xlane.xlu0 %1554
      %v1556 = vrcp.pop %v1555
      %v1557 = vmul.f32 %v1552, %v1556
      %v1558 = vpack.c.bf16 %v1557, %v1557
      %v1560 = vsel %vm996, %v1558, 0
      %v1563 = vsel %vm1012, %v1493, 0
      %1565 = vmatprep.subr.bf16.mxu0 0
      %1566 = vmatpush1.bf16.msra.mxu0 %v1563
      %1567 = vmatprep.subr.bf16.mxu0 0
      %1568 = vmatpush1.bf16.msra.mxu0 0
      %1569 = vmatprep.subr.bf16.mxu0 0
      %1570 = vmatpush1.bf16.msra.mxu0 0
      %1571 = vmatprep.subr.bf16.mxu0 0
      %1572 = vmatpush1.bf16.msra.mxu0 0
      %1573 = vmatprep.subr.bf16.mxu0 0
      %1574 = vmatpush1.bf16.msra.mxu0 0
      %1575 = vmatprep.subr.bf16.mxu0 0
      %1576 = vmatpush1.bf16.msra.mxu0 0
      %1577 = vmatprep.subr.bf16.mxu0 0
      %1578 = vmatpush1.bf16.msra.mxu0 0
      %1579 = vmatprep.subr.bf16.mxu0 0
      %1580 = vmatpush1.bf16.msra.mxu0 0
      %1581 = vmatprep.subr.bf16.mxu0 0
      %1582 = vmatpush1.bf16.msra.mxu0 0
      %1583 = vmatprep.subr.bf16.mxu0 0
      %1584 = vmatpush1.bf16.msra.mxu0 0
      %1585 = vmatprep.subr.bf16.mxu0 0
      %1586 = vmatpush1.bf16.msra.mxu0 0
      %1587 = vmatprep.subr.bf16.mxu0 0
      %1588 = vmatpush1.bf16.msra.mxu0 0
      %1589 = vmatprep.subr.bf16.mxu0 0
      %1590 = vmatpush1.bf16.msra.mxu0 0
      %1591 = vmatprep.subr.bf16.mxu0 0
      %1592 = vmatpush1.bf16.msra.mxu0 0
      %1593 = vmatprep.subr.bf16.mxu0 0
      %1594 = vmatpush1.bf16.msra.mxu0 0
      %1595 = vmatprep.subr.bf16.mxu0 0
      %1596 = vmatpush1.bf16.msra.mxu0 0
      %1597 = vmatprep.mubr.bf16.mxu0 0
      %1598 = vmatmul.mubr.bf16.gmra.mrb[0].mxu0 %v1560
      %v1599 = vpop.f32.mrb[0].mxu0
      %v1600 = vadd.f32 0.0, %v1599
      %v1601 = vpop.f32.mrb[0].mxu0
      %v1602 = vpop.f32.mrb[0].mxu0
      %v1603 = vpop.f32.mrb[0].mxu0
      %1604 = vdwg.mxu0
      %v1605 = vpack.c.bf16 %v1600, %v1600
      %1607 = vrot.lane.b32.xlu0 %v1491, 112
      %v1608 = vpop.permute.xlu0 %1607
      %1610 = vrot.lane.b32.xlu0 %v1492, 112
      %v1611 = vpop.permute.xlu0 %1610
      %v1613 = vsel %vm948, %v1608, 0
      %v1616 = vsel %vm948, %v1611, 0
      %1618 = vmatprep.subr.bf16.mxu0 0
      %1619 = vmatpush1.bf16.xpose.msra.mxu0 %v1616
      %1620 = vmatprep.subr.bf16.mxu0 0
      %1621 = vmatpush1.bf16.xpose.msra.mxu0 0
      %1622 = vmatprep.subr.bf16.mxu0 0
      %1623 = vmatpush1.bf16.xpose.msra.mxu0 0
      %1624 = vmatprep.subr.bf16.mxu0 0
      %1625 = vmatpush1.bf16.xpose.msra.mxu0 0
      %1626 = vmatprep.subr.bf16.mxu0 0
      %1627 = vmatpush1.bf16.xpose.msra.mxu0 0
      %1628 = vmatprep.subr.bf16.mxu0 0
      %1629 = vmatpush1.bf16.xpose.msra.mxu0 0
      %1630 = vmatprep.subr.bf16.mxu0 0
      %1631 = vmatpush1.bf16.xpose.msra.mxu0 0
      %1632 = vmatprep.subr.bf16.mxu0 0
      %1633 = vmatpush1.bf16.xpose.msra.mxu0 0
      %1634 = vmatprep.subr.bf16.mxu0 0
      %1635 = vmatpush1.bf16.xpose.msra.mxu0 0
      %1636 = vmatprep.subr.bf16.mxu0 0
      %1637 = vmatpush1.bf16.xpose.msra.mxu0 0
      %1638 = vmatprep.subr.bf16.mxu0 0
      %1639 = vmatpush1.bf16.xpose.msra.mxu0 0
      %1640 = vmatprep.subr.bf16.mxu0 0
      %1641 = vmatpush1.bf16.xpose.msra.mxu0 0
      %1642 = vmatprep.subr.bf16.mxu0 0
      %1643 = vmatpush1.bf16.xpose.msra.mxu0 0
      %1644 = vmatprep.subr.bf16.mxu0 0
      %1645 = vmatpush1.bf16.xpose.msra.mxu0 0
      %1646 = vmatprep.subr.bf16.mxu0 0
      %1647 = vmatpush1.bf16.xpose.msra.mxu0 0
      %1648 = vmatprep.subr.bf16.mxu0 0
      %1649 = vmatpush1.bf16.xpose.msra.mxu0 0
      %1650 = vmatprep.mubr.bf16.mxu0 0
      %1651 = vmatmul.mubr.bf16.gmra.mrb[0].mxu0 %v1613
      %v1652 = vpop.f32.mrb[0].mxu0
      %v1653 = vadd.f32 %v1498, %v1652
      %v1654 = vpop.f32.mrb[0].mxu0
      %v1655 = vpop.f32.mrb[0].mxu0
      %v1656 = vpop.f32.mrb[0].mxu0
      %1657 = vdwg.mxu0
      %v1658 = vmul.f32 %v1653, 0.125
      %v1659 = vsel %vm996, %v1658, -inf
      %1660 = vmax.xlane.f32.xlu0 %v1659
      %v1661 = vpop.xlane.xlu0 %1660
      %v1662 = vsub.f32 %v1658, %v1661
      %v1663 = vmul.f32 %v1662, 1.442695
      %v1664 = vpow.pop %v1663
      %v1665 = vsel %vm996, %v1664, 0.0
      %1666 = vadd.xlane.f32.xlu0 %v1665
      %v1667 = vpop.xlane.xlu0 %1666
      %v1668 = vrcp.pop %v1667
      %v1669 = vmul.f32 %v1664, %v1668
      %v1670 = vpack.c.bf16 %v1669, %v1669
      %1672 = vrot.lane.b32.xlu0 %v1493, 112
      %v1673 = vpop.permute.xlu0 %1672
      %v1675 = vsel %vm996, %v1670, 0
      %v1678 = vsel %vm1012, %v1673, 0
      %1680 = vmatprep.subr.bf16.mxu0 0
      %1681 = vmatpush1.bf16.msra.mxu0 %v1678
      %1682 = vmatprep.subr.bf16.mxu0 0
      %1683 = vmatpush1.bf16.msra.mxu0 0
      %1684 = vmatprep.subr.bf16.mxu0 0
      %1685 = vmatpush1.bf16.msra.mxu0 0
      %1686 = vmatprep.subr.bf16.mxu0 0
      %1687 = vmatpush1.bf16.msra.mxu0 0
      %1688 = vmatprep.subr.bf16.mxu0 0
      %1689 = vmatpush1.bf16.msra.mxu0 0
      %1690 = vmatprep.subr.bf16.mxu0 0
      %1691 = vmatpush1.bf16.msra.mxu0 0
      %1692 = vmatprep.subr.bf16.mxu0 0
      %1693 = vmatpush1.bf16.msra.mxu0 0
      %1694 = vmatprep.subr.bf16.mxu0 0
      %1695 = vmatpush1.bf16.msra.mxu0 0
      %1696 = vmatprep.subr.bf16.mxu0 0
      %1697 = vmatpush1.bf16.msra.mxu0 0
      %1698 = vmatprep.subr.bf16.mxu0 0
      %1699 = vmatpush1.bf16.msra.mxu0 0
      %1700 = vmatprep.subr.bf16.mxu0 0
      %1701 = vmatpush1.bf16.msra.mxu0 0
      %1702 = vmatprep.subr.bf16.mxu0 0
      %1703 = vmatpush1.bf16.msra.mxu0 0
      %1704 = vmatprep.subr.bf16.mxu0 0
      %1705 = vmatpush1.bf16.msra.mxu0 0
      %1706 = vmatprep.subr.bf16.mxu0 0
      %1707 = vmatpush1.bf16.msra.mxu0 0
      %1708 = vmatprep.subr.bf16.mxu0 0
      %1709 = vmatpush1.bf16.msra.mxu0 0
      %1710 = vmatprep.subr.bf16.mxu0 0
      %1711 = vmatpush1.bf16.msra.mxu0 0
      %1712 = vmatprep.mubr.bf16.mxu0 0
      %1713 = vmatmul.mubr.bf16.gmra.mrb[0].mxu0 %v1675
      %v1714 = vpop.f32.mrb[0].mxu0
      %v1715 = vadd.f32 0.0, %v1714
      %v1716 = vpop.f32.mrb[0].mxu0
      %v1717 = vpop.f32.mrb[0].mxu0
      %v1718 = vpop.f32.mrb[0].mxu0
      %1719 = vdwg.mxu0
      %v1720 = vpack.c.bf16 %v1715, %v1715
      %v1723 = vunpack.c.l.b16 %v1324
      %v1724 = vunpack.c.l.b16 %v1325
      %v1725 = vpack.c.b16 %v1724, %v1723
      %v1728 = vsel %vm948, %v1720, 0
      %1730 = vmatprep.subr.bf16.mxu0 0
      %1731 = vmatpush1.bf16.msra.mxu0 %v1725
      %1732 = vmatprep.subr.bf16.mxu0 0
      %1733 = vmatpush1.bf16.msra.mxu0 0
      %1734 = vmatprep.subr.bf16.mxu0 0
      %1735 = vmatpush1.bf16.msra.mxu0 0
      %1736 = vmatprep.subr.bf16.mxu0 0
      %1737 = vmatpush1.bf16.msra.mxu0 0
      %1738 = vmatprep.subr.bf16.mxu0 0
      %1739 = vmatpush1.bf16.msra.mxu0 0
      %1740 = vmatprep.subr.bf16.mxu0 0
      %1741 = vmatpush1.bf16.msra.mxu0 0
      %1742 = vmatprep.subr.bf16.mxu0 0
      %1743 = vmatpush1.bf16.msra.mxu0 0
      %1744 = vmatprep.subr.bf16.mxu0 0
      %1745 = vmatpush1.bf16.msra.mxu0 0
      %1746 = vmatprep.subr.bf16.mxu0 0
      %1747 = vmatpush1.bf16.msra.mxu0 0
      %1748 = vmatprep.subr.bf16.mxu0 0
      %1749 = vmatpush1.bf16.msra.mxu0 0
      %1750 = vmatprep.subr.bf16.mxu0 0
      %1751 = vmatpush1.bf16.msra.mxu0 0
      %1752 = vmatprep.subr.bf16.mxu0 0
      %1753 = vmatpush1.bf16.msra.mxu0 0
      %1754 = vmatprep.subr.bf16.mxu0 0
      %1755 = vmatpush1.bf16.msra.mxu0 0
      %1756 = vmatprep.subr.bf16.mxu0 0
      %1757 = vmatpush1.bf16.msra.mxu0 0
      %1758 = vmatprep.subr.bf16.mxu0 0
      %1759 = vmatpush1.bf16.msra.mxu0 0
      %1760 = vmatprep.subr.bf16.mxu0 0
      %1761 = vmatpush1.bf16.msra.mxu0 0
      %1762 = vmatprep.mubr.bf16.mxu0 0
      %1763 = vmatmul.mubr.bf16.gmra.mrb[0].mxu0 %v1728
      %v1764 = vpop.f32.mrb[0].mxu0
      %v1765 = vadd.f32 0.0, %v1764
      %v1766 = vpop.f32.mrb[0].mxu0
      %v1767 = vpop.f32.mrb[0].mxu0
      %v1768 = vpop.f32.mrb[0].mxu0
      %1769 = vdwg.mxu0
      %v1772 = vunpack.c.l.b16 %v1322
      %v1773 = vunpack.c.l.b16 %v1323
      %v1774 = vpack.c.b16 %v1773, %v1772
      %v1777 = vsel %vm948, %v1605, 0
      %1779 = vmatprep.subr.bf16.mxu0 0
      %1780 = vmatpush1.bf16.msra.mxu0 %v1774
      %1781 = vmatprep.subr.bf16.mxu0 0
      %1782 = vmatpush1.bf16.msra.mxu0 0
      %1783 = vmatprep.subr.bf16.mxu0 0
      %1784 = vmatpush1.bf16.msra.mxu0 0
      %1785 = vmatprep.subr.bf16.mxu0 0
      %1786 = vmatpush1.bf16.msra.mxu0 0
      %1787 = vmatprep.subr.bf16.mxu0 0
      %1788 = vmatpush1.bf16.msra.mxu0 0
      %1789 = vmatprep.subr.bf16.mxu0 0
      %1790 = vmatpush1.bf16.msra.mxu0 0
      %1791 = vmatprep.subr.bf16.mxu0 0
      %1792 = vmatpush1.bf16.msra.mxu0 0
      %1793 = vmatprep.subr.bf16.mxu0 0
      %1794 = vmatpush1.bf16.msra.mxu0 0
      %1795 = vmatprep.subr.bf16.mxu0 0
      %1796 = vmatpush1.bf16.msra.mxu0 0
      %1797 = vmatprep.subr.bf16.mxu0 0
      %1798 = vmatpush1.bf16.msra.mxu0 0
      %1799 = vmatprep.subr.bf16.mxu0 0
      %1800 = vmatpush1.bf16.msra.mxu0 0
      %1801 = vmatprep.subr.bf16.mxu0 0
      %1802 = vmatpush1.bf16.msra.mxu0 0
      %1803 = vmatprep.subr.bf16.mxu0 0
      %1804 = vmatpush1.bf16.msra.mxu0 0
      %1805 = vmatprep.subr.bf16.mxu0 0
      %1806 = vmatpush1.bf16.msra.mxu0 0
      %1807 = vmatprep.subr.bf16.mxu0 0
      %1808 = vmatpush1.bf16.msra.mxu0 0
      %1809 = vmatprep.subr.bf16.mxu0 0
      %1810 = vmatpush1.bf16.msra.mxu0 0
      %1811 = vmatprep.mubr.bf16.mxu0 0
      %1812 = vmatmul.mubr.bf16.gmra.mrb[0].mxu0 %v1777
      %v1813 = vpop.f32.mrb[0].mxu0
      %v1814 = vadd.f32 %v1765, %v1813
      %v1815 = vpop.f32.mrb[0].mxu0
      %v1816 = vpop.f32.mrb[0].mxu0
      %v1817 = vpop.f32.mrb[0].mxu0
      %1818 = vdwg.mxu0
      %v1820 = vlaneseq
      %v1821 = vshrl.u32 %v1820, 7
      %v1822 = vsub.s32 0, %v1821
      %v1823 = vrot.slane %v1326, %v1822
      %v1825 = vadd.f32 %v1814, %v1823
      %v1826 = vadd.f32 %v1825, %v1307
      %v1827 = vld [vmem:[%s16] sm:$0x1]
      %v1828 = vld [vmem:[%s17] sm:$0x1]
      %v1829 = vsel %vm797, %v1826, 0.0
      %1830 = vadd.xlane.f32.xlu0 %v1829
      %v1831 = vpop.xlane.xlu0 %1830
      %v1832 = vmul.f32 %v1831, %v1283
      %v1833 = vsub.f32 %v1826, %v1832
      %v1834 = vmul.f32 %v1833, %v1833
      %v1835 = vsel %vm797, %v1834, 0.0
      %1836 = vadd.xlane.f32.xlu0 %v1835
      %v1837 = vpop.xlane.xlu0 %1836
      %v1838 = vmul.f32 %v1837, %v1283
      %v1839 = vadd.f32 %v1838, 1e-05
      %v1840 = vrsqrt.pop %v1839
      %v1841 = vmul.f32 %v1833, %v1840
      %v1843 = vlaneseq
      %v1844 = vshrl.u32 %v1843, 7
      %v1845 = vsub.s32 0, %v1844
      %v1846 = vrot.slane %v1827, %v1845
      %v1848 = vmul.f32 %v1841, %v1846
      %v1850 = vlaneseq
      %v1851 = vshrl.u32 %v1850, 7
      %v1852 = vsub.s32 0, %v1851
      %v1853 = vrot.slane %v1828, %v1852
      %v1855 = vadd.f32 %v1848, %v1853
      %v1856 = vld [vmem:[%s18] sm:$0xf]
      %v1857 = vld [vmem:[%s18 + $0x4] sm:$0xf]
      %v1858 = vld [vmem:[%s18 + $0x8] sm:$0xf]
      %v1859 = vld [vmem:[%s18 + $0xc] sm:$0xf]
      %v1860 = vld [vmem:[%s19] sm:$0x1]
      %v1861 = vld [vmem:[%s20] sm:$0xf]
      %v1862 = vld [vmem:[%s20 + $0x4] sm:$0xf]
      %v1863 = vld [vmem:[%s20 + $0x8] sm:$0xf]
      %v1864 = vld [vmem:[%s20 + $0xc] sm:$0xf]
      %v1865 = vld [vmem:[%s20 + $0x10] sm:$0xf]
      %v1866 = vld [vmem:[%s20 + $0x14] sm:$0xf]
      %v1867 = vld [vmem:[%s20 + $0x18] sm:$0xf]
      %v1868 = vld [vmem:[%s20 + $0x1c] sm:$0xf]
      %v1869 = vld [vmem:[%s20 + $0x20] sm:$0xf]
      %v1870 = vld [vmem:[%s20 + $0x24] sm:$0xf]
      %v1871 = vld [vmem:[%s20 + $0x28] sm:$0xf]
      %v1872 = vld [vmem:[%s20 + $0x2c] sm:$0xf]
      %v1873 = vld [vmem:[%s20 + $0x30] sm:$0xf]
      %v1874 = vld [vmem:[%s20 + $0x34] sm:$0xf]
      %v1875 = vld [vmem:[%s20 + $0x38] sm:$0xf]
      %v1876 = vld [vmem:[%s20 + $0x3c] sm:$0xf]
      %v1877 = vld [vmem:[%s21] sm:$0x1]
      %v1878 = vpack.c.bf16 %v1855, %v1855
      %v1880 = vlaneseq
      %v1881 = vshrl.u32 %v1880, 7
      %v1882 = vsub.s32 0, %v1881
      %v1883 = vrot.slane %v1860, %v1882
      %v1889 = vunpack.c.l.b16 %v1856
      %v1890 = vunpack.c.l.b16 %v1857
      %v1891 = vunpack.c.l.b16 %v1858
      %v1892 = vunpack.c.l.b16 %v1859
      %v1893 = vpack.c.b16 %v1890, %v1889
      %v1894 = vpack.c.b16 %v1892, %v1891
      %v1898 = vsel %vm797, %v1878, 0
      %1900 = vmatprep.subr.bf16.mxu0 0
      %1901 = vmatpush1.bf16.msra.mxu0 %v1893
      %1902 = vmatprep.subr.bf16.mxu0 0
      %1903 = vmatpush1.bf16.msra.mxu0 %v1894
      %1904 = vmatprep.subr.bf16.mxu0 0
      %1905 = vmatpush1.bf16.msra.mxu0 0
      %1906 = vmatprep.subr.bf16.mxu0 0
      %1907 = vmatpush1.bf16.msra.mxu0 0
      %1908 = vmatprep.subr.bf16.mxu0 0
      %1909 = vmatpush1.bf16.msra.mxu0 0
      %1910 = vmatprep.subr.bf16.mxu0 0
      %1911 = vmatpush1.bf16.msra.mxu0 0
      %1912 = vmatprep.subr.bf16.mxu0 0
      %1913 = vmatpush1.bf16.msra.mxu0 0
      %1914 = vmatprep.subr.bf16.mxu0 0
      %1915 = vmatpush1.bf16.msra.mxu0 0
      %1916 = vmatprep.subr.bf16.mxu0 0
      %1917 = vmatpush1.bf16.msra.mxu0 0
      %1918 = vmatprep.subr.bf16.mxu0 0
      %1919 = vmatpush1.bf16.msra.mxu0 0
      %1920 = vmatprep.subr.bf16.mxu0 0
      %1921 = vmatpush1.bf16.msra.mxu0 0
      %1922 = vmatprep.subr.bf16.mxu0 0
      %1923 = vmatpush1.bf16.msra.mxu0 0
      %1924 = vmatprep.subr.bf16.mxu0 0
      %1925 = vmatpush1.bf16.msra.mxu0 0
      %1926 = vmatprep.subr.bf16.mxu0 0
      %1927 = vmatpush1.bf16.msra.mxu0 0
      %1928 = vmatprep.subr.bf16.mxu0 0
      %1929 = vmatpush1.bf16.msra.mxu0 0
      %1930 = vmatprep.subr.bf16.mxu0 0
      %1931 = vmatpush1.bf16.msra.mxu0 0
      %1932 = vmatprep.mubr.bf16.mxu0 0
      %1933 = vmatmul.mubr.bf16.gmra.mrb[0].mxu0 %v1898
      %v1934 = vpop.f32.mrb[0].mxu0
      %v1935 = vadd.f32 %v1883, %v1934
      %v1936 = vpop.f32.mrb[0].mxu0
      %v1937 = vpop.f32.mrb[0].mxu0
      %v1938 = vpop.f32.mrb[0].mxu0
      %1939 = vdwg.mxu0
      %v1940 = vmax.f32 %v1935, 0.0
      %v1941 = vpack.c.bf16 %v1940, %v1940
      %v1943 = vlaneseq
      %v1944 = vshrl.u32 %v1943, 7
      %v1945 = vsub.s32 0, %v1944
      %v1946 = vrot.slane %v1877, %v1945
      %v1964 = vunpack.c.l.b16 %v1861
      %v1965 = vunpack.c.l.b16 %v1862
      %v1966 = vunpack.c.l.b16 %v1863
      %v1967 = vunpack.c.l.b16 %v1864
      %v1968 = vunpack.c.l.b16 %v1865
      %v1969 = vunpack.c.l.b16 %v1866
      %v1970 = vunpack.c.l.b16 %v1867
      %v1971 = vunpack.c.l.b16 %v1868
      %v1972 = vunpack.c.l.b16 %v1869
      %v1973 = vunpack.c.l.b16 %v1870
      %v1974 = vunpack.c.l.b16 %v1871
      %v1975 = vunpack.c.l.b16 %v1872
      %v1976 = vunpack.c.l.b16 %v1873
      %v1977 = vunpack.c.l.b16 %v1874
      %v1978 = vunpack.c.l.b16 %v1875
      %v1979 = vunpack.c.l.b16 %v1876
      %v1980 = vpack.c.b16 %v1965, %v1964
      %v1981 = vpack.c.b16 %v1967, %v1966
      %v1982 = vpack.c.b16 %v1969, %v1968
      %v1983 = vpack.c.b16 %v1971, %v1970
      %v1984 = vpack.c.b16 %v1973, %v1972
      %v1985 = vpack.c.b16 %v1975, %v1974
      %v1986 = vpack.c.b16 %v1977, %v1976
      %v1987 = vpack.c.b16 %v1979, %v1978
      %1996 = vmatprep.subr.bf16.mxu0 0
      %1997 = vmatpush1.bf16.msra.mxu0 %v1980
      %1998 = vmatprep.subr.bf16.mxu0 0
      %1999 = vmatpush1.bf16.msra.mxu0 %v1981
      %2000 = vmatprep.subr.bf16.mxu0 0
      %2001 = vmatpush1.bf16.msra.mxu0 %v1982
      %2002 = vmatprep.subr.bf16.mxu0 0
      %2003 = vmatpush1.bf16.msra.mxu0 %v1983
      %2004 = vmatprep.subr.bf16.mxu0 0
      %2005 = vmatpush1.bf16.msra.mxu0 %v1984
      %2006 = vmatprep.subr.bf16.mxu0 0
      %2007 = vmatpush1.bf16.msra.mxu0 %v1985
      %2008 = vmatprep.subr.bf16.mxu0 0
      %2009 = vmatpush1.bf16.msra.mxu0 %v1986
      %2010 = vmatprep.subr.bf16.mxu0 0
      %2011 = vmatpush1.bf16.msra.mxu0 %v1987
      %2012 = vmatprep.subr.bf16.mxu0 0
      %2013 = vmatpush1.bf16.msra.mxu0 0
      %2014 = vmatprep.subr.bf16.mxu0 0
      %2015 = vmatpush1.bf16.msra.mxu0 0
      %2016 = vmatprep.subr.bf16.mxu0 0
      %2017 = vmatpush1.bf16.msra.mxu0 0
      %2018 = vmatprep.subr.bf16.mxu0 0
      %2019 = vmatpush1.bf16.msra.mxu0 0
      %2020 = vmatprep.subr.bf16.mxu0 0
      %2021 = vmatpush1.bf16.msra.mxu0 0
      %2022 = vmatprep.subr.bf16.mxu0 0
      %2023 = vmatpush1.bf16.msra.mxu0 0
      %2024 = vmatprep.subr.bf16.mxu0 0
      %2025 = vmatpush1.bf16.msra.mxu0 0
      %2026 = vmatprep.subr.bf16.mxu0 0
      %2027 = vmatpush1.bf16.msra.mxu0 0
      %2028 = vmatprep.mubr.bf16.mxu0 0
      %2029 = vmatmul.mubr.bf16.gmra.mrb[0].mxu0 %v1941
      %v2030 = vpop.f32.mrb[0].mxu0
      %v2031 = vadd.f32 %v1946, %v2030
      %v2032 = vpop.f32.mrb[0].mxu0
      %v2033 = vpop.f32.mrb[0].mxu0
      %v2034 = vpop.f32.mrb[0].mxu0
      %2035 = vdwg.mxu0
      %v2036 = vadd.f32 %v2031, %v1855
      %v2037 = vld [vmem:[%s22] sm:$0x1]
      %v2038 = vld [vmem:[%s23] sm:$0x1]
      %v2039 = vsel %vm797, %v2036, 0.0
      %2040 = vadd.xlane.f32.xlu0 %v2039
      %v2041 = vpop.xlane.xlu0 %2040
      %v2042 = vmul.f32 %v2041, %v1283
      %v2043 = vsub.f32 %v2036, %v2042
      %v2044 = vmul.f32 %v2043, %v2043
      %v2045 = vsel %vm797, %v2044, 0.0
      %2046 = vadd.xlane.f32.xlu0 %v2045
      %v2047 = vpop.xlane.xlu0 %2046
      %v2048 = vmul.f32 %v2047, %v1283
      %v2049 = vadd.f32 %v2048, 1e-05
      %v2050 = vrsqrt.pop %v2049
      %v2051 = vmul.f32 %v2043, %v2050
      %v2053 = vlaneseq
      %v2054 = vshrl.u32 %v2053, 7
      %v2055 = vsub.s32 0, %v2054
      %v2056 = vrot.slane %v2037, %v2055
      %v2058 = vmul.f32 %v2051, %v2056
      %v2060 = vlaneseq
      %v2061 = vshrl.u32 %v2060, 7
      %v2062 = vsub.s32 0, %v2061
      %v2063 = vrot.slane %v2038, %v2062
      %v2065 = vadd.f32 %v2058, %v2063
      %2066 = vst.msk [vmem:[%s763] sm:$0xff] %vm797, %v2065
      %p2067 = scmp.lt.s32.totalorder %s35, 1
      %s2068 = scalar_select %p2067, %s35, 1
      %s2069 = smul.addr %s2068, 8
      %s2070 = scalar_lea.vmem %s24, %s2069
      // Predicated region
      $region117: #{transformer_fwd.7} parent=115 // pred_check
        %p2071 = pneg %p572
      $region118: #{transformer_fwd.7} parent=115 // pred_check_branch
        %2073 = sbr.rel (%p2071) target = $region120
      $region119: #{transformer_fwd.7} parent=115 // pred_region
        _
      $region120: #{transformer_fwd.7} parent=115 // pred_fallthru
        _
    $region116: #{transformer_fwd.7} parent=5 // pred_fallthru
      _
    %p2074 = scmp.le.s32.totalorder 2, %s30
    // Predicated region
    $region121: #{transformer_fwd.7} parent=5 // pred_check
      %p2075 = pneg %p2074
    $region122: #{transformer_fwd.7} parent=5 // pred_check_branch
      %2077 = sbr.rel (%p2075) target = $region124
    $region123: #{transformer_fwd.7} parent=5 // pred_region
      %s2078 = ssub.s32 %s30, 2
      // Predicated region
      $region125: #{transformer_fwd.7} parent=123 // pred_check
        %p2079 = pneg %p578
      $region126: #{transformer_fwd.7} parent=123 // pred_check_branch
        %2081 = sbr.rel (%p2079) target = $region128
      $region127: #{transformer_fwd.7} parent=123 // pred_region
        %p2082 = scmp.lt.s32.totalorder %s36, 1
        %s2083 = scalar_select %p2082, %s36, 1
        %s2084 = smul.addr %s2083, 8
        %s2085 = scalar_lea.vmem %s24, %s2084
      $region128: #{transformer_fwd.7} parent=123 // pred_fallthru
        _
    $region124: #{transformer_fwd.7} parent=5 // pred_fallthru
      _
  $region6: #{transformer_fwd.7} parent=0 // loop_footer
    %s34 = sadd.s32 1, %s30
  $region7: #{transformer_fwd.7} parent=0 // loop_footer_branch
    %29 = sbr.rel target = $region3
  $region8: #{transformer_fwd.7} parent=0 // loop_exit
    _

</llo_original>
